<compile_context>
chip_gen: v5e
topology: v5e:2x2
jax: 0.10.0
libtpu: 0.0.40
codegen_flags: <defaults>
</compile_context>

<pallas_src>
import functools
import math

import jax
import jax.numpy as jnp
from jax.experimental import pallas as pl
from jax.experimental.pallas import tpu as pltpu


def _round_up(x, m):
    return ((x + m - 1) // m) * m


def _round_down(x, m):
    return (x // m) * m


def _next_pow2(x):
    return 1 if x <= 1 else 1 << (int(x) - 1).bit_length()


def _path_input_embedding_kernel(ids_ref, feat_ref, r_ref, w_ref, out_ref, *, kb):
    # ids_ref : (tr, p)          int32  p consecutive segment ids per packed row
    # feat_ref: (tr, p*F)        f32    p consecutive feature rows, lane-dense
    # r_ref   : (p, p*kb)        f32    lane-replication matrix (row j = ones on block j)
    # w_ref   : (p*kb+p*F, p*N)  f32    fused block-diag [embedding table | feat selector]
    # out_ref : (tr, p*N)        f32    p packed [emb | feat] rows, lane-dense store
    hi = jax.lax.Precision.HIGHEST  # exact f32 MXU path: the gather must match the table

    # Replicate each of the p ids across its kb-wide one-hot block.  Doing this with a
    # tiny MXU matmul keeps the ids lane-indexed end-to-end (no lane<->sublane relayout).
    idsf = ids_ref[...].astype(jnp.float32)                              # (tr, p)
    ids_rep = jnp.dot(idsf, r_ref[...],
                      preferred_element_type=jnp.float32, precision=hi)  # (tr, p*kb)

    # One-hot against the lane-index-within-block (kb is a power of two -> cheap mask).
    lane = jax.lax.broadcasted_iota(jnp.int32, ids_rep.shape, 1)
    kpat = (lane & (kb - 1)).astype(jnp.float32)
    onehot = (jnp.abs(ids_rep - kpat) < 0.5).astype(jnp.float32)         # (tr, p*kb)

    # Fused LHS = [one-hot | packed features]; a single matmul against the resident
    # block-diagonal RHS emits the packed [embedding | feature] rows directly.
    lhs = jnp.concatenate([onehot, feat_ref[...].astype(jnp.float32)], axis=1)
    out_ref[...] = jnp.dot(lhs, w_ref[...],
                           preferred_element_type=jnp.float32,
                           precision=hi).astype(out_ref.dtype)


def path_input_embedding(segment_ids, embedding_table, path_segment_feat,
                         *, tile_m=2048):
    """segment_ids: [P, S, 1] int; embedding_table: [V, B];
    path_segment_feat: [P, S, F]  ->  [P, S, B + F] float32
    (== torch.cat([Embedding(ids.squeeze(-1)), pathSegmentFeat], dim=2))."""
    P, S = segment_ids.shape[0], segment_ids.shape[1]
    V, B = embedding_table.shape
    F = path_segment_feat.shape[-1]
    N = B + F
    M = P * S

    # Super-row packing factor: p rows per packed output row so p*N is a multiple of 128.
    p = 128 // math.gcd(N, 128)
    kb = max(_next_pow2(V), 128 // p)        # one-hot block width (>= V, power of two)
    # TODO(synk): for large vocab / awkward N the one-hot MXU gather stops being cheap;
    # switch to a true gather (pl.Element row index_map / manual DMA) past p*kb ~ 4096.
    assert p * kb <= 4096, "vocab/feature widths too large for the one-hot MXU gather"

    K1 = p * kb           # one-hot lanes of the fused LHS
    Kt = K1 + p * F       # fused LHS width
    No = p * N            # packed output lanes (multiple of 128)

    Mp = _round_up(M, 8 * p)                 # packed-row count must be a multiple of 8
    Rtot = Mp // p

    ids = segment_ids.reshape(M).astype(jnp.int32)
    feat = path_segment_feat.reshape(M, F).astype(jnp.float32)
    if Mp != M:   # ragged tail only: pad rows (copy), sliced off after the kernel
        ids = jnp.pad(ids, (0, Mp - M))
        feat = jnp.pad(feat, ((0, Mp - M), (0, 0)))
    ids_d = ids.reshape(Rtot, p)             # free row-major reshape, dense DMA
    feat_d = feat.reshape(Rtot, p * F)       # free row-major reshape, dense DMA

    # Tiny resident operands (built per call here; per weight update in real use):
    #  W : block-diagonal embedding table + identity feature selector.
    #  R : replicates lane j of the ids tile across one-hot block j.
    tab = embedding_table.astype(jnp.float32)
    eyeF = jnp.eye(F, dtype=jnp.float32)
    W = jnp.zeros((Kt, No), jnp.float32)
    R = jnp.zeros((p, K1), jnp.float32)
    for j in range(p):
        W = W.at[j * kb:j * kb + V, j * N:j * N + B].set(tab)
        W = W.at[K1 + j * F:K1 + (j + 1) * F, j * N + B:j * N + N].set(eyeF)
        R = R.at[j, j * kb:(j + 1) * kb].set(1.0)

    # Tile: as big as requested, but keep >= 4 grid steps (2 per v7x core) when possible.
    tr_cap = Rtot if Rtot < 32 else max(8, _round_down(Rtot // 4, 8))
    tr = max(8, min(tile_m // p, tr_cap, Rtot))
    grid = (pl.cdiv(Rtot, tr),)

    kernel = functools.partial(_path_input_embedding_kernel, kb=kb)
    out = pl.pallas_call(
        kernel,
        out_shape=jax.ShapeDtypeStruct((Rtot, No), jnp.float32),
        grid_spec=pltpu.PrefetchScalarGridSpec(
            num_scalar_prefetch=0,
            grid=grid,
            in_specs=[
                pl.BlockSpec((tr, p), lambda i: (i, 0)),        # ids, dense
                pl.BlockSpec((tr, p * F), lambda i: (i, 0)),    # feat, dense
                pl.BlockSpec((p, K1), lambda i: (0, 0)),        # R, resident
                pl.BlockSpec((Kt, No), lambda i: (0, 0)),       # W, resident
            ],
            out_specs=pl.BlockSpec((tr, No), lambda i: (i, 0)),
        ),
        compiler_params=pltpu.CompilerParams(
            dimension_semantics=("parallel",),       # split packed rows across v7x's 2 TCs
            vmem_limit_bytes=32 * 1024 * 1024,       # explicit; safe on v5e/v6e/v7x
        ),
    )(ids_d, feat_d, R, W)

    # (Rtot, p*N) is byte-identical to row-major (Mp, N): reshapes below are free.
    out = out.reshape(Mp, N)
    if Mp != M:
        out = out[:M]
    return out.reshape(P, S, N)


# TODO(synk): the DGL batch_graph plumbing (reading/writing node data dicts) has no
# Pallas equivalent; only the Embedding + concat compute is implemented.


if __name__ == "__main__":
    key = jax.random.PRNGKey(0)
    k_tab, k_ids, k_feat = jax.random.split(key, 3)

    # Module hyperparameters: a = number of segments, b = embedding dim.
    a, b = 20, 32                 # vocab = a + 1
    P, S, F = 16, 128, 16         # paths, path length (seq), segment feature dim

    embedding_table = jax.random.normal(k_tab, (a + 1, b), dtype=jnp.float32)
    segment_ids = jax.random.randint(k_ids, (P, S, 1), 0, a + 1, dtype=jnp.int32)
    path_segment_feat = jax.random.normal(k_feat, (P, S, F), dtype=jnp.float32)

    out = path_input_embedding(segment_ids, embedding_table, path_segment_feat)
    out = jax.block_until_ready(out)

    # Reference check (plain JAX) for the same semantics.
    ids = jnp.squeeze(segment_ids, axis=-1).astype(jnp.int32)
    ref = jnp.concatenate([embedding_table[ids], path_segment_feat], axis=2)
    assert out.shape == (P, S, b + F)
    assert jnp.allclose(out, ref, atol=1e-5, rtol=1e-5)

    print("KERNEL_OK")
</pallas_src>

<mosaic_0001>
module attributes {stable_mosaic.version = 11 : i64} {
  func.func @_path_input_embedding_kernel(%arg0: i32, %arg1: memref<64x8xi32, #tpu.memory_space<vmem>>, %arg2: memref<64x128xf32, #tpu.memory_space<vmem>>, %arg3: memref<8x256xf32, #tpu.memory_space<vmem>>, %arg4: memref<384x384xf32, #tpu.memory_space<vmem>>, %arg5: memref<64x384xf32, #tpu.memory_space<vmem>>) attributes {dimension_semantics = [#tpu.dimension_semantics<parallel>], iteration_bounds = array<i64: 4>, scalar_prefetch = 0 : i64, scratch_operands = 0 : i64, tpu.core_type = #tpu.core_type<tc>, window_params = [{transform_indices = @transform_0, window_bounds = array<i64: 64, 8>}, {transform_indices = @transform_1, window_bounds = array<i64: 64, 128>}, {pipeline_mode = #tpu.pipeline_mode<synchronous>, transform_indices = @transform_2, window_bounds = array<i64: 8, 256>}, {pipeline_mode = #tpu.pipeline_mode<synchronous>, transform_indices = @transform_3, window_bounds = array<i64: 384, 384>}, {transform_indices = @transform_4, window_bounds = array<i64: 64, 384>}]} {
    %c0 = arith.constant 0 : index
    %c0_0 = arith.constant 0 : index
    %0 = vector.load %arg1[%c0, %c0_0] : memref<64x8xi32, #tpu.memory_space<vmem>>, vector<64x8xi32>
    %1 = arith.sitofp %0 : vector<64x8xi32> to vector<64x8xf32>
    %c0_1 = arith.constant 0 : index
    %c0_2 = arith.constant 0 : index
    %2 = vector.load %arg3[%c0_1, %c0_2] : memref<8x256xf32, #tpu.memory_space<vmem>>, vector<8x256xf32>
    %cst = arith.constant dense<0.000000e+00> : vector<64x256xf32>
    %3 = tpu.matmul %1, %2, %cst {dimension_numbers = #tpu.dot_dimension_numbers<[1], [0], [0], [1], [0, 0, 1, 1], [], []>, precision = #tpu.contract_precision<fp32>} : vector<64x8xf32>, vector<8x256xf32>, vector<64x256xf32> -> vector<64x256xf32>
    %4 = tpu.iota {dimensions = array<i32: 1>} : vector<64x256xi32>
    %c31_i32 = arith.constant 31 : i32
    %5 = vector.broadcast %c31_i32 : i32 to vector<64x256xi32>
    %6 = arith.andi %4, %5 : vector<64x256xi32>
    %7 = arith.sitofp %6 : vector<64x256xi32> to vector<64x256xf32>
    %8 = arith.subf %3, %7 : vector<64x256xf32>
    %9 = math.absf %8 : vector<64x256xf32>
    %cst_3 = arith.constant 5.000000e-01 : f32
    %10 = vector.broadcast %cst_3 : f32 to vector<64x256xf32>
    %11 = arith.cmpf olt, %9, %10 : vector<64x256xf32>
    %12 = arith.extui %11 : vector<64x256xi1> to vector<64x256xi32>
    %13 = arith.sitofp %12 : vector<64x256xi32> to vector<64x256xf32>
    %c0_4 = arith.constant 0 : index
    %c0_5 = arith.constant 0 : index
    %14 = vector.load %arg2[%c0_4, %c0_5] : memref<64x128xf32, #tpu.memory_space<vmem>>, vector<64x128xf32>
    %15 = tpu.concatenate %13, %14 in 1 : vector<64x256xf32>, vector<64x128xf32> -> vector<64x384xf32>
    %c0_6 = arith.constant 0 : index
    %c0_7 = arith.constant 0 : index
    %16 = vector.load %arg4[%c0_6, %c0_7] : memref<384x384xf32, #tpu.memory_space<vmem>>, vector<384x384xf32>
    %cst_8 = arith.constant dense<0.000000e+00> : vector<64x384xf32>
    %17 = tpu.matmul %15, %16, %cst_8 {dimension_numbers = #tpu.dot_dimension_numbers<[1], [0], [0], [1], [0, 0, 1, 1], [], []>, precision = #tpu.contract_precision<fp32>} : vector<64x384xf32>, vector<384x384xf32>, vector<64x384xf32> -> vector<64x384xf32>
    %c0_9 = arith.constant 0 : index
    %c0_10 = arith.constant 0 : index
    %18 = vector.load %arg5[%c0_9, %c0_10] : memref<64x384xf32, #tpu.memory_space<vmem>>, vector<64x384xf32>
    tpu.vector_store %arg5[%c0_9, %c0_10], %17 {strides = array<i32>} : memref<64x384xf32, #tpu.memory_space<vmem>>, vector<64x384xf32>,
    return
  }
  func.func @transform_0(%arg0: i32) -> (i32, i32) {
    %c0_i32 = arith.constant 0 : i32
    %c0_i32_0 = arith.constant 0 : i32
    return %arg0, %c0_i32 : i32, i32
  }
  func.func @transform_1(%arg0: i32) -> (i32, i32) {
    %c0_i32 = arith.constant 0 : i32
    %c0_i32_0 = arith.constant 0 : i32
    return %arg0, %c0_i32 : i32, i32
  }
  func.func @transform_2(%arg0: i32) -> (i32, i32) {
    %c0_i32 = arith.constant 0 : i32
    %c0_i32_0 = arith.constant 0 : i32
    %c0_i32_1 = arith.constant 0 : i32
    return %c0_i32, %c0_i32_0 : i32, i32
  }
  func.func @transform_3(%arg0: i32) -> (i32, i32) {
    %c0_i32 = arith.constant 0 : i32
    %c0_i32_0 = arith.constant 0 : i32
    %c0_i32_1 = arith.constant 0 : i32
    return %c0_i32, %c0_i32_0 : i32, i32
  }
  func.func @transform_4(%arg0: i32) -> (i32, i32) {
    %c0_i32 = arith.constant 0 : i32
    %c0_i32_0 = arith.constant 0 : i32
    return %arg0, %c0_i32 : i32, i32
  }
}

</mosaic_0001>

<llo_original>
// kernel: tpu_custom_call.1
$region0: #{tpu_custom_call.1}
  #allocation0 [shape = 'u32[]', space=smem, size = 0x4, offset = 0x4, fixed_abs, tag = 'smem constant byte address 0x4 - core index']
  #allocation1 [shape = 'u32[72,128]{1,0:T(1,128)}', space=vmem, size = 0x9000, scoped, tag = 'internal scratch']
  %s0 = inlined_call_operand.vmem [shape: s32[256,8], index: 0, kind: input, shape index: {}]
  %s1 = inlined_call_operand.vmem [shape: f32[256,128], index: 1, kind: input, shape index: {}]
  %s2 = inlined_call_operand.vmem [shape: f32[8,256], index: 2, kind: input, shape index: {}]
  %s3 = inlined_call_operand.hbm [shape: f32[384,384], index: 3, kind: input, shape index: {}]
  %s4 = inlined_call_operand.hbm [shape: f32[256,384], index: 4, kind: output, shape index: {}]
  %s5 = sld [smem:[#allocation0]]
  $region53: #{tpu_custom_call.1} parent=0
    _
  %s7 = ssub.s32 1, %s5
  %s8 = scalar_select 0, %s7, %s5
  $region1: #{tpu_custom_call.1} parent=0
    #allocation2 [shape = 'u8[589824]{0}', space=vmem, size = 0x90000, scoped, tag = 'input window, operand 3, single buffered']
    #allocation3 [shape = 's32[2]{0}', space=sflag, size = 0x8, scoped, tag = 'scoped memory for tpu_custom_call.1']
    #allocation4 [shape = 's32[2]{0}', space=sflag, size = 0x8, scoped, tag = 'scoped memory for tpu_custom_call.1']
    #allocation5 [shape = 'u8[196608]{0}', space=vmem, size = 0x30000, scoped, tag = 'output window, operand 0']
    %9 = vsyncpa [#allocation3], 0
    %10 = vsyncpa [#allocation4], 0
    %s11 = scalar_lea.sflag [#allocation4], 1
    %12 = vsyncpa %s11, 0
    loop: start=0, step=1, limit=6
    $region2: #{tpu_custom_call.1} parent=1 // loop_pre_header
      _
    $region3: #{tpu_custom_call.1} parent=1 // loop_header
      %s14 = sphi 0, %s18
      %p15 = scmp.ge.s32.totalorder %s14, 6
      %s24 = sphi 0, %s26
      %s27 = sphi 0, %s24
      %s28 = sphi 0, %s27
      %s44 = sphi 0, %s28
      %s50 = sphi 0, %s52
      %s53 = sphi 0, %s50
      %s54 = sphi 0, %s53
      %s70 = sphi 0, %s54
      %s74 = sphi 0, %s74
      %s76 = sphi 0, %s74
      %s77 = sphi 0, %s76
      %s91 = sphi 0, %s77
      %s95 = sphi 0, %s95
      %s97 = sphi 0, %s95
      %s98 = sphi 0, %s97
      %s112 = sphi 0, %s98
      %s118 = sphi 0, %s120
      %s121 = sphi 0, %s118
      %s122 = sphi 0, %s121
      %s138 = sphi 0, %s122
    $region4: #{tpu_custom_call.1} parent=1 // loop_header_branch
      %17 = sbr.rel (%p15) target = $region8
    $region5: #{tpu_custom_call.1} parent=1 // loop_body
      %s19 = ssub.s32 %s14, 1
      %s20 = ssub.s32 %s14, 2
      %s21 = sadd.s32 %s14, 1
      %s22 = ssub.s32 %s14, %s21
      %p23 = scmp.eq.s32.totalorder %s22, 0
      %s25 = sadd.s32 %s24, 1
      %s26 = scalar_select %p23, %s24, %s25
      %p29 = pneg %p23
      %p30 = scmp.eq.s32.totalorder %s14, 3
      %p31 = por %p29, %p30
      %p32 = scmp.ne.s32.totalorder %s24, %s27
      %p33 = scmp.eq.s32.totalorder %s14, 0
      %p34 = por %p32, %p33
      %p35 = scmp.ne.s32.totalorder %s24, %s27
      %p36 = scmp.eq.s32.totalorder %s19, 3
      %p37 = por %p35, %p36
      %p38 = scmp.ne.s32.totalorder %s27, %s28
      %p39 = scmp.eq.s32.totalorder %s19, 0
      %p40 = por %p38, %p39
      %p41 = scmp.ne.s32.totalorder %s27, %s28
      %p42 = scmp.eq.s32.totalorder %s20, 3
      %p43 = por %p41, %p42
      %p45 = scmp.ne.s32.totalorder %s28, %s44
      %p46 = scmp.eq.s32.totalorder %s20, 0
      %p47 = por %p45, %p46
      %s48 = ssub.s32 %s14, %s21
      %p49 = scmp.eq.s32.totalorder %s48, 0
      %s51 = sadd.s32 %s50, 1
      %s52 = scalar_select %p49, %s50, %s51
      %p55 = pneg %p49
      %p56 = scmp.eq.s32.totalorder %s14, 3
      %p57 = por %p55, %p56
      %p58 = scmp.ne.s32.totalorder %s50, %s53
      %p59 = scmp.eq.s32.totalorder %s14, 0
      %p60 = por %p58, %p59
      %p61 = scmp.ne.s32.totalorder %s50, %s53
      %p62 = scmp.eq.s32.totalorder %s19, 3
      %p63 = por %p61, %p62
      %p64 = scmp.ne.s32.totalorder %s53, %s54
      %p65 = scmp.eq.s32.totalorder %s19, 0
      %p66 = por %p64, %p65
      %p67 = scmp.ne.s32.totalorder %s53, %s54
      %p68 = scmp.eq.s32.totalorder %s20, 3
      %p69 = por %p67, %p68
      %p71 = scmp.ne.s32.totalorder %s54, %s70
      %p72 = scmp.eq.s32.totalorder %s20, 0
      %p73 = por %p71, %p72
      %s75 = sadd.s32 %s74, 1
      %p78 = scmp.eq.s32.totalorder %s14, 3
      %p79 = scmp.ne.s32.totalorder %s74, %s76
      %p80 = scmp.eq.s32.totalorder %s14, 0
      %p81 = por %p79, %p80
      %p82 = scmp.ne.s32.totalorder %s74, %s76
      %p83 = scmp.eq.s32.totalorder %s19, 3
      %p84 = por %p82, %p83
      %p85 = scmp.ne.s32.totalorder %s76, %s77
      %p86 = scmp.eq.s32.totalorder %s19, 0
      %p87 = por %p85, %p86
      %p88 = scmp.ne.s32.totalorder %s76, %s77
      %p89 = scmp.eq.s32.totalorder %s20, 3
      %p90 = por %p88, %p89
      %p92 = scmp.ne.s32.totalorder %s77, %s91
      %p93 = scmp.eq.s32.totalorder %s20, 0
      %p94 = por %p92, %p93
      %s96 = sadd.s32 %s95, 1
      %p99 = scmp.eq.s32.totalorder %s14, 3
      %p100 = scmp.ne.s32.totalorder %s95, %s97
      %p101 = scmp.eq.s32.totalorder %s14, 0
      %p102 = por %p100, %p101
      %p103 = scmp.ne.s32.totalorder %s95, %s97
      %p104 = scmp.eq.s32.totalorder %s19, 3
      %p105 = por %p103, %p104
      %p106 = scmp.ne.s32.totalorder %s97, %s98
      %p107 = scmp.eq.s32.totalorder %s19, 0
      %p108 = por %p106, %p107
      %p109 = scmp.ne.s32.totalorder %s97, %s98
      %p110 = scmp.eq.s32.totalorder %s20, 3
      %p111 = por %p109, %p110
      %p113 = scmp.ne.s32.totalorder %s98, %s112
      %p114 = scmp.eq.s32.totalorder %s20, 0
      %p115 = por %p113, %p114
      %s116 = ssub.s32 %s14, %s21
      %p117 = scmp.eq.s32.totalorder %s116, 0
      %s119 = sadd.s32 %s118, 1
      %s120 = scalar_select %p117, %s118, %s119
      %p123 = pneg %p117
      %p124 = scmp.eq.s32.totalorder %s14, 3
      %p125 = por %p123, %p124
      %p126 = scmp.ne.s32.totalorder %s118, %s121
      %p127 = scmp.eq.s32.totalorder %s14, 0
      %p128 = por %p126, %p127
      %p129 = scmp.ne.s32.totalorder %s118, %s121
      %p130 = scmp.eq.s32.totalorder %s19, 3
      %p131 = por %p129, %p130
      %p132 = scmp.ne.s32.totalorder %s121, %s122
      %p133 = scmp.eq.s32.totalorder %s19, 0
      %p134 = por %p132, %p133
      %p135 = scmp.ne.s32.totalorder %s121, %s122
      %p136 = scmp.eq.s32.totalorder %s20, 3
      %p137 = por %p135, %p136
      %p139 = scmp.ne.s32.totalorder %s122, %s138
      %p140 = scmp.eq.s32.totalorder %s20, 0
      %p141 = por %p139, %p140
      %p142 = scmp.le.s32.totalorder 1, %s14
      %p143 = scmp.lt.s32.totalorder %s14, 5
      %p144 = pnand %p142, %p143
      %p145 = pneg %p144
      // Predicated region
      $region9: #{tpu_custom_call.1} parent=5 // pred_check
        _
      $region10: #{tpu_custom_call.1} parent=5 // pred_check_branch
        %147 = sbr.rel (%p144) target = $region12
      $region11: #{tpu_custom_call.1} parent=5 // pred_region
        %s148 = ssub.s32 %s14, 1
        // Predicated region
        $region13: #{tpu_custom_call.1} parent=11 // pred_check
          %p149 = pneg %p87
        $region14: #{tpu_custom_call.1} parent=11 // pred_check_branch
          %151 = sbr.rel (%p149) target = $region16
        $region15: #{tpu_custom_call.1} parent=11 // pred_region
          _
        $region16: #{tpu_custom_call.1} parent=11 // pred_fallthru
          _
        // Predicated region
        $region17: #{tpu_custom_call.1} parent=11 // pred_check
          %p152 = pneg %p108
        $region18: #{tpu_custom_call.1} parent=11 // pred_check_branch
          %154 = sbr.rel (%p152) target = $region20
        $region19: #{tpu_custom_call.1} parent=11 // pred_region
          %156 = vsyncadd [#allocation3], 0
          %s157 = sshll.u32 %s3, 4
          %s158 = int_to_ptr.hbm [resolvable:$true] %s157
          %s159 = sshll.u32 [#allocation2], 4
          %s160 = int_to_ptr.vmem [resolvable:$true] %s159
          %165 = dma.hbm_to_vmem [thread:$0]  %s158, 18432, %s160, [#allocation3], 384, 384, 24
        $region20: #{tpu_custom_call.1} parent=11 // pred_fallthru
          _
      $region12: #{tpu_custom_call.1} parent=5 // pred_fallthru
        _
      %p166 = scmp.lt.s32.totalorder %s14, 4
      // Predicated region
      $region21: #{tpu_custom_call.1} parent=5 // pred_check
        %p167 = pneg %p166
      $region22: #{tpu_custom_call.1} parent=5 // pred_check_branch
        %169 = sbr.rel (%p167) target = $region24
      $region23: #{tpu_custom_call.1} parent=5 // pred_region
        // Predicated region
        $region25: #{tpu_custom_call.1} parent=23 // pred_check
          %p170 = pneg %p34
        $region26: #{tpu_custom_call.1} parent=23 // pred_check_branch
          %172 = sbr.rel (%p170) target = $region28
        $region27: #{tpu_custom_call.1} parent=23 // pred_region
          %s173 = smul.u32 8, %s14
          %p174 = scmp.lt.s32.totalorder %s173, 31
          %s175 = scalar_select %p174, %s173, 31
          %s176 = smul.addr %s175, 8
          %s177 = scalar_lea.vmem %s0, %s176
          %s178 = smul.u32 8, %s14
        $region28: #{tpu_custom_call.1} parent=23 // pred_fallthru
          _
        // Predicated region
        $region29: #{tpu_custom_call.1} parent=23 // pred_check
          %p179 = pneg %p60
        $region30: #{tpu_custom_call.1} parent=23 // pred_check_branch
          %181 = sbr.rel (%p179) target = $region32
        $region31: #{tpu_custom_call.1} parent=23 // pred_region
          %s182 = smul.u32 8, %s14
          %p183 = scmp.lt.s32.totalorder %s182, 31
          %s184 = scalar_select %p183, %s182, 31
          %s185 = smul.addr %s184, 8
          %s186 = scalar_lea.vmem %s1, %s185
          %s187 = smul.u32 8, %s14
        $region32: #{tpu_custom_call.1} parent=23 // pred_fallthru
          _
      $region24: #{tpu_custom_call.1} parent=5 // pred_fallthru
        _
      %p188 = scmp.le.s32.totalorder 1, %s14
      %p189 = scmp.lt.s32.totalorder %s14, 5
      %p190 = pnand %p188, %p189
      %p191 = pneg %p190
      // Predicated region
      $region33: #{tpu_custom_call.1} parent=5 // pred_check
        _
      $region34: #{tpu_custom_call.1} parent=5 // pred_check_branch
        %193 = sbr.rel (%p190) target = $region36
      $region35: #{tpu_custom_call.1} parent=5 // pred_region
        %s194 = ssub.s32 %s14, 1
        // Predicated region
        $region37: #{tpu_custom_call.1} parent=35 // pred_check
          %p195 = pneg %p108
        $region38: #{tpu_custom_call.1} parent=35 // pred_check_branch
          %197 = sbr.rel (%p195) target = $region40
        $region39: #{tpu_custom_call.1} parent=35 // pred_region
          %199 = dma.done [#allocation3], 18432
        $region40: #{tpu_custom_call.1} parent=35 // pred_fallthru
          _
        %s200 = smul.u32 8, %s19
        %p201 = scmp.lt.s32.totalorder %s200, 31
        %s202 = scalar_select %p201, %s200, 31
        %s203 = smul.addr %s202, 8
        %s204 = scalar_lea.vmem %s0, %s203
        %p205 = pneg %p40
        %p206 = pneg %p37
        %s207 = smul.u32 8, %s19
        %p208 = scmp.lt.s32.totalorder %s207, 31
        %s209 = scalar_select %p208, %s207, 31
        %s210 = smul.addr %s209, 8
        %s211 = scalar_lea.vmem %s1, %s210
        %p212 = pneg %p66
        %p213 = pneg %p63
        %p214 = pneg %p87
        %p215 = pneg %p84
        %p216 = pneg %p108
        %p217 = pneg %p105
        %p218 = pneg %p134
        %p219 = pneg %p131
        %s220 = sand.u32 %s121, 1
        %s221 = scalar_lea.sflag [#allocation4], %s220
        %s222 = sand.u32 %s121, 1
        %s223 = smul.addr %s222, 192
        %s224 = scalar_lea.vmem [#allocation5], %s223
        %s225 = smul.u32 8, %s19
        %p226 = scmp.lt.s32.totalorder %s225, 31
        %s227 = scalar_select %p226, %s225, 31
        %s228 = smul.addr %s227, 8
        %s229 = scalar_lea.vmem %s0, %s228
        %s230 = smul.u32 8, %s19
        %s231 = smul.u32 8, %s19
        %p232 = scmp.lt.s32.totalorder %s231, 31
        %s233 = scalar_select %p232, %s231, 31
        %s234 = smul.addr %s233, 8
        %s235 = scalar_lea.vmem %s1, %s234
        %s236 = smul.u32 8, %s19
        %s237 = smul.u32 8, %s19
        %v238 = vld [vmem:[%s229] sm:$0xff]
        %v239 = vld [vmem:[%s229 + $0x8] sm:$0xff]
        %v240 = vld [vmem:[%s229 + $0x10] sm:$0xff]
        %v241 = vld [vmem:[%s229 + $0x18] sm:$0xff]
        %v242 = vld [vmem:[%s229 + $0x20] sm:$0xff]
        %v243 = vld [vmem:[%s229 + $0x28] sm:$0xff]
        %v244 = vld [vmem:[%s229 + $0x30] sm:$0xff]
        %v245 = vld [vmem:[%s229 + $0x38] sm:$0xff]
        %v246 = vcvt.s32.f32 %v238
        %v247 = vcvt.s32.f32 %v239
        %v248 = vcvt.s32.f32 %v240
        %v249 = vcvt.s32.f32 %v241
        %v250 = vcvt.s32.f32 %v242
        %v251 = vcvt.s32.f32 %v243
        %v252 = vcvt.s32.f32 %v244
        %v253 = vcvt.s32.f32 %v245
        %v254 = vld [vmem:[%s2] sm:$0xff]
        %v255 = vld [vmem:[%s2 + $0x8] sm:$0xff]
        %vm256 = vcmask 64512
        %v258 = vsel %vm256, %v246, 0
        %v261 = vsel %vm256, %v247, 0
        %v264 = vsel %vm256, %v248, 0
        %v267 = vsel %vm256, %v249, 0
        %v270 = vsel %vm256, %v250, 0
        %v273 = vsel %vm256, %v251, 0
        %v276 = vsel %vm256, %v252, 0
        %v279 = vsel %vm256, %v253, 0
        %281 = vmatpush.msra.mxu0 0.0
        %282 = vmatpush.msra.mxu0 0.0
        %283 = vmatpush.msra.mxu0 0.0
        %284 = vmatpush.msra.mxu0 0.0
        %285 = vmatpush.msra.mxu0 0.0
        %286 = vmatpush.msra.mxu0 0.0
        %287 = vmatpush.msra.mxu0 0.0
        %288 = vmatpush.msra.mxu0 0.0
        %289 = vmatpush.msra.mxu0 0.0
        %290 = vmatpush.msra.mxu0 0.0
        %291 = vmatpush.msra.mxu0 0.0
        %292 = vmatpush.msra.mxu0 0.0
        %293 = vmatpush.msra.mxu0 0.0
        %294 = vmatpush.msra.mxu0 0.0
        %295 = vmatpush.msra.mxu0 0.0
        %v296 = vand.u32 %v254, 4294901760
        %297 = vmatpush.msra.mxu0 %v296
        %v298 = vand.u32 %v258, 4294901760
        %v299 = vsub.f32 %v258, %v298
        %v300 = vand.u32 %v299, 4294901760
        %v301 = vsub.f32 %v299, %v300
        %v302 = vand.u32 %v301, 4294901760
        %303 = vmatmul.f32.gmra.mxu0 %v302
        %v304 = vpop.f32.mrf.mxu0
        %v305 = vadd.f32 0.0, %v304
        %v306 = vand.u32 %v261, 4294901760
        %v307 = vsub.f32 %v261, %v306
        %v308 = vand.u32 %v307, 4294901760
        %v309 = vsub.f32 %v307, %v308
        %v310 = vand.u32 %v309, 4294901760
        %311 = vmatmul.f32.gmra.mxu0 %v310
        %v312 = vpop.f32.mrf.mxu0
        %v313 = vadd.f32 0.0, %v312
        %v314 = vand.u32 %v264, 4294901760
        %v315 = vsub.f32 %v264, %v314
        %v316 = vand.u32 %v315, 4294901760
        %v317 = vsub.f32 %v315, %v316
        %v318 = vand.u32 %v317, 4294901760
        %319 = vmatmul.f32.gmra.mxu0 %v318
        %v320 = vpop.f32.mrf.mxu0
        %v321 = vadd.f32 0.0, %v320
        %v322 = vand.u32 %v267, 4294901760
        %v323 = vsub.f32 %v267, %v322
        %v324 = vand.u32 %v323, 4294901760
        %v325 = vsub.f32 %v323, %v324
        %v326 = vand.u32 %v325, 4294901760
        %327 = vmatmul.f32.gmra.mxu0 %v326
        %v328 = vpop.f32.mrf.mxu0
        %v329 = vadd.f32 0.0, %v328
        %v330 = vand.u32 %v270, 4294901760
        %v331 = vsub.f32 %v270, %v330
        %v332 = vand.u32 %v331, 4294901760
        %v333 = vsub.f32 %v331, %v332
        %v334 = vand.u32 %v333, 4294901760
        %335 = vmatmul.f32.gmra.mxu0 %v334
        %v336 = vpop.f32.mrf.mxu0
        %v337 = vadd.f32 0.0, %v336
        %v338 = vand.u32 %v273, 4294901760
        %v339 = vsub.f32 %v273, %v338
        %v340 = vand.u32 %v339, 4294901760
        %v341 = vsub.f32 %v339, %v340
        %v342 = vand.u32 %v341, 4294901760
        %343 = vmatmul.f32.gmra.mxu0 %v342
        %v344 = vpop.f32.mrf.mxu0
        %v345 = vadd.f32 0.0, %v344
        %v346 = vand.u32 %v276, 4294901760
        %v347 = vsub.f32 %v276, %v346
        %v348 = vand.u32 %v347, 4294901760
        %v349 = vsub.f32 %v347, %v348
        %v350 = vand.u32 %v349, 4294901760
        %351 = vmatmul.f32.gmra.mxu0 %v350
        %v352 = vpop.f32.mrf.mxu0
        %v353 = vadd.f32 0.0, %v352
        %v354 = vand.u32 %v279, 4294901760
        %v355 = vsub.f32 %v279, %v354
        %v356 = vand.u32 %v355, 4294901760
        %v357 = vsub.f32 %v355, %v356
        %v358 = vand.u32 %v357, 4294901760
        %359 = vmatmul.f32.gmra.mxu0 %v358
        %v360 = vpop.f32.mrf.mxu0
        %v361 = vadd.f32 0.0, %v360
        %362 = vdwg.mxu0
        %363 = vmatpush.msra.mxu0 0.0
        %364 = vmatpush.msra.mxu0 0.0
        %365 = vmatpush.msra.mxu0 0.0
        %366 = vmatpush.msra.mxu0 0.0
        %367 = vmatpush.msra.mxu0 0.0
        %368 = vmatpush.msra.mxu0 0.0
        %369 = vmatpush.msra.mxu0 0.0
        %370 = vmatpush.msra.mxu0 0.0
        %371 = vmatpush.msra.mxu0 0.0
        %372 = vmatpush.msra.mxu0 0.0
        %373 = vmatpush.msra.mxu0 0.0
        %374 = vmatpush.msra.mxu0 0.0
        %375 = vmatpush.msra.mxu0 0.0
        %376 = vmatpush.msra.mxu0 0.0
        %377 = vmatpush.msra.mxu0 0.0
        %v378 = vand.u32 %v254, 4294901760
        %v379 = vsub.f32 %v254, %v378
        %v380 = vand.u32 %v379, 4294901760
        %v381 = vsub.f32 %v379, %v380
        %v382 = vand.u32 %v381, 4294901760
        %383 = vmatpush.msra.mxu0 %v382
        %v384 = vand.u32 %v258, 4294901760
        %385 = vmatmul.f32.gmra.mxu0 %v384
        %v386 = vpop.f32.mrf.mxu0
        %v387 = vadd.f32 %v305, %v386
        %v388 = vand.u32 %v261, 4294901760
        %389 = vmatmul.f32.gmra.mxu0 %v388
        %v390 = vpop.f32.mrf.mxu0
        %v391 = vadd.f32 %v313, %v390
        %v392 = vand.u32 %v264, 4294901760
        %393 = vmatmul.f32.gmra.mxu0 %v392
        %v394 = vpop.f32.mrf.mxu0
        %v395 = vadd.f32 %v321, %v394
        %v396 = vand.u32 %v267, 4294901760
        %397 = vmatmul.f32.gmra.mxu0 %v396
        %v398 = vpop.f32.mrf.mxu0
        %v399 = vadd.f32 %v329, %v398
        %v400 = vand.u32 %v270, 4294901760
        %401 = vmatmul.f32.gmra.mxu0 %v400
        %v402 = vpop.f32.mrf.mxu0
        %v403 = vadd.f32 %v337, %v402
        %v404 = vand.u32 %v273, 4294901760
        %405 = vmatmul.f32.gmra.mxu0 %v404
        %v406 = vpop.f32.mrf.mxu0
        %v407 = vadd.f32 %v345, %v406
        %v408 = vand.u32 %v276, 4294901760
        %409 = vmatmul.f32.gmra.mxu0 %v408
        %v410 = vpop.f32.mrf.mxu0
        %v411 = vadd.f32 %v353, %v410
        %v412 = vand.u32 %v279, 4294901760
        %413 = vmatmul.f32.gmra.mxu0 %v412
        %v414 = vpop.f32.mrf.mxu0
        %v415 = vadd.f32 %v361, %v414
        %416 = vdwg.mxu0
        %417 = vmatpush.msra.mxu0 0.0
        %418 = vmatpush.msra.mxu0 0.0
        %419 = vmatpush.msra.mxu0 0.0
        %420 = vmatpush.msra.mxu0 0.0
        %421 = vmatpush.msra.mxu0 0.0
        %422 = vmatpush.msra.mxu0 0.0
        %423 = vmatpush.msra.mxu0 0.0
        %424 = vmatpush.msra.mxu0 0.0
        %425 = vmatpush.msra.mxu0 0.0
        %426 = vmatpush.msra.mxu0 0.0
        %427 = vmatpush.msra.mxu0 0.0
        %428 = vmatpush.msra.mxu0 0.0
        %429 = vmatpush.msra.mxu0 0.0
        %430 = vmatpush.msra.mxu0 0.0
        %431 = vmatpush.msra.mxu0 0.0
        %v432 = vand.u32 %v254, 4294901760
        %v433 = vsub.f32 %v254, %v432
        %434 = vmatpush.msra.mxu0 %v433
        %v435 = vand.u32 %v258, 4294901760
        %v436 = vsub.f32 %v258, %v435
        %437 = vmatmul.f32.gmra.mxu0 %v436
        %v438 = vpop.f32.mrf.mxu0
        %v439 = vadd.f32 %v387, %v438
        %v440 = vand.u32 %v261, 4294901760
        %v441 = vsub.f32 %v261, %v440
        %442 = vmatmul.f32.gmra.mxu0 %v441
        %v443 = vpop.f32.mrf.mxu0
        %v444 = vadd.f32 %v391, %v443
        %v445 = vand.u32 %v264, 4294901760
        %v446 = vsub.f32 %v264, %v445
        %447 = vmatmul.f32.gmra.mxu0 %v446
        %v448 = vpop.f32.mrf.mxu0
        %v449 = vadd.f32 %v395, %v448
        %v450 = vand.u32 %v267, 4294901760
        %v451 = vsub.f32 %v267, %v450
        %452 = vmatmul.f32.gmra.mxu0 %v451
        %v453 = vpop.f32.mrf.mxu0
        %v454 = vadd.f32 %v399, %v453
        %v455 = vand.u32 %v270, 4294901760
        %v456 = vsub.f32 %v270, %v455
        %457 = vmatmul.f32.gmra.mxu0 %v456
        %v458 = vpop.f32.mrf.mxu0
        %v459 = vadd.f32 %v403, %v458
        %v460 = vand.u32 %v273, 4294901760
        %v461 = vsub.f32 %v273, %v460
        %462 = vmatmul.f32.gmra.mxu0 %v461
        %v463 = vpop.f32.mrf.mxu0
        %v464 = vadd.f32 %v407, %v463
        %v465 = vand.u32 %v276, 4294901760
        %v466 = vsub.f32 %v276, %v465
        %467 = vmatmul.f32.gmra.mxu0 %v466
        %v468 = vpop.f32.mrf.mxu0
        %v469 = vadd.f32 %v411, %v468
        %v470 = vand.u32 %v279, 4294901760
        %v471 = vsub.f32 %v279, %v470
        %472 = vmatmul.f32.gmra.mxu0 %v471
        %v473 = vpop.f32.mrf.mxu0
        %v474 = vadd.f32 %v415, %v473
        %475 = vdwg.mxu0
        %476 = vmatpush.msra.mxu0 0.0
        %477 = vmatpush.msra.mxu0 0.0
        %478 = vmatpush.msra.mxu0 0.0
        %479 = vmatpush.msra.mxu0 0.0
        %480 = vmatpush.msra.mxu0 0.0
        %481 = vmatpush.msra.mxu0 0.0
        %482 = vmatpush.msra.mxu0 0.0
        %483 = vmatpush.msra.mxu0 0.0
        %484 = vmatpush.msra.mxu0 0.0
        %485 = vmatpush.msra.mxu0 0.0
        %486 = vmatpush.msra.mxu0 0.0
        %487 = vmatpush.msra.mxu0 0.0
        %488 = vmatpush.msra.mxu0 0.0
        %489 = vmatpush.msra.mxu0 0.0
        %490 = vmatpush.msra.mxu0 0.0
        %v491 = vand.u32 %v254, 4294901760
        %492 = vmatpush.msra.mxu0 %v491
        %v493 = vand.u32 %v258, 4294901760
        %v494 = vsub.f32 %v258, %v493
        %v495 = vand.u32 %v494, 4294901760
        %496 = vmatmul.f32.gmra.mxu0 %v495
        %v497 = vpop.f32.mrf.mxu0
        %v498 = vadd.f32 %v439, %v497
        %v499 = vand.u32 %v261, 4294901760
        %v500 = vsub.f32 %v261, %v499
        %v501 = vand.u32 %v500, 4294901760
        %502 = vmatmul.f32.gmra.mxu0 %v501
        %v503 = vpop.f32.mrf.mxu0
        %v504 = vadd.f32 %v444, %v503
        %v505 = vand.u32 %v264, 4294901760
        %v506 = vsub.f32 %v264, %v505
        %v507 = vand.u32 %v506, 4294901760
        %508 = vmatmul.f32.gmra.mxu0 %v507
        %v509 = vpop.f32.mrf.mxu0
        %v510 = vadd.f32 %v449, %v509
        %v511 = vand.u32 %v267, 4294901760
        %v512 = vsub.f32 %v267, %v511
        %v513 = vand.u32 %v512, 4294901760
        %514 = vmatmul.f32.gmra.mxu0 %v513
        %v515 = vpop.f32.mrf.mxu0
        %v516 = vadd.f32 %v454, %v515
        %v517 = vand.u32 %v270, 4294901760
        %v518 = vsub.f32 %v270, %v517
        %v519 = vand.u32 %v518, 4294901760
        %520 = vmatmul.f32.gmra.mxu0 %v519
        %v521 = vpop.f32.mrf.mxu0
        %v522 = vadd.f32 %v459, %v521
        %v523 = vand.u32 %v273, 4294901760
        %v524 = vsub.f32 %v273, %v523
        %v525 = vand.u32 %v524, 4294901760
        %526 = vmatmul.f32.gmra.mxu0 %v525
        %v527 = vpop.f32.mrf.mxu0
        %v528 = vadd.f32 %v464, %v527
        %v529 = vand.u32 %v276, 4294901760
        %v530 = vsub.f32 %v276, %v529
        %v531 = vand.u32 %v530, 4294901760
        %532 = vmatmul.f32.gmra.mxu0 %v531
        %v533 = vpop.f32.mrf.mxu0
        %v534 = vadd.f32 %v469, %v533
        %v535 = vand.u32 %v279, 4294901760
        %v536 = vsub.f32 %v279, %v535
        %v537 = vand.u32 %v536, 4294901760
        %538 = vmatmul.f32.gmra.mxu0 %v537
        %v539 = vpop.f32.mrf.mxu0
        %v540 = vadd.f32 %v474, %v539
        %541 = vdwg.mxu0
        %542 = vmatpush.msra.mxu0 0.0
        %543 = vmatpush.msra.mxu0 0.0
        %544 = vmatpush.msra.mxu0 0.0
        %545 = vmatpush.msra.mxu0 0.0
        %546 = vmatpush.msra.mxu0 0.0
        %547 = vmatpush.msra.mxu0 0.0
        %548 = vmatpush.msra.mxu0 0.0
        %549 = vmatpush.msra.mxu0 0.0
        %550 = vmatpush.msra.mxu0 0.0
        %551 = vmatpush.msra.mxu0 0.0
        %552 = vmatpush.msra.mxu0 0.0
        %553 = vmatpush.msra.mxu0 0.0
        %554 = vmatpush.msra.mxu0 0.0
        %555 = vmatpush.msra.mxu0 0.0
        %556 = vmatpush.msra.mxu0 0.0
        %v557 = vand.u32 %v254, 4294901760
        %v558 = vsub.f32 %v254, %v557
        %v559 = vand.u32 %v558, 4294901760
        %560 = vmatpush.msra.mxu0 %v559
        %v561 = vand.u32 %v258, 4294901760
        %562 = vmatmul.f32.gmra.mxu0 %v561
        %v563 = vpop.f32.mrf.mxu0
        %v564 = vadd.f32 %v498, %v563
        %v565 = vand.u32 %v261, 4294901760
        %566 = vmatmul.f32.gmra.mxu0 %v565
        %v567 = vpop.f32.mrf.mxu0
        %v568 = vadd.f32 %v504, %v567
        %v569 = vand.u32 %v264, 4294901760
        %570 = vmatmul.f32.gmra.mxu0 %v569
        %v571 = vpop.f32.mrf.mxu0
        %v572 = vadd.f32 %v510, %v571
        %v573 = vand.u32 %v267, 4294901760
        %574 = vmatmul.f32.gmra.mxu0 %v573
        %v575 = vpop.f32.mrf.mxu0
        %v576 = vadd.f32 %v516, %v575
        %v577 = vand.u32 %v270, 4294901760
        %578 = vmatmul.f32.gmra.mxu0 %v577
        %v579 = vpop.f32.mrf.mxu0
        %v580 = vadd.f32 %v522, %v579
        %v581 = vand.u32 %v273, 4294901760
        %582 = vmatmul.f32.gmra.mxu0 %v581
        %v583 = vpop.f32.mrf.mxu0
        %v584 = vadd.f32 %v528, %v583
        %v585 = vand.u32 %v276, 4294901760
        %586 = vmatmul.f32.gmra.mxu0 %v585
        %v587 = vpop.f32.mrf.mxu0
        %v588 = vadd.f32 %v534, %v587
        %v589 = vand.u32 %v279, 4294901760
        %590 = vmatmul.f32.gmra.mxu0 %v589
        %v591 = vpop.f32.mrf.mxu0
        %v592 = vadd.f32 %v540, %v591
        %593 = vdwg.mxu0
        %594 = vmatpush.msra.mxu0 0.0
        %595 = vmatpush.msra.mxu0 0.0
        %596 = vmatpush.msra.mxu0 0.0
        %597 = vmatpush.msra.mxu0 0.0
        %598 = vmatpush.msra.mxu0 0.0
        %599 = vmatpush.msra.mxu0 0.0
        %600 = vmatpush.msra.mxu0 0.0
        %601 = vmatpush.msra.mxu0 0.0
        %602 = vmatpush.msra.mxu0 0.0
        %603 = vmatpush.msra.mxu0 0.0
        %604 = vmatpush.msra.mxu0 0.0
        %605 = vmatpush.msra.mxu0 0.0
        %606 = vmatpush.msra.mxu0 0.0
        %607 = vmatpush.msra.mxu0 0.0
        %608 = vmatpush.msra.mxu0 0.0
        %v609 = vand.u32 %v254, 4294901760
        %610 = vmatpush.msra.mxu0 %v609
        %v611 = vand.u32 %v258, 4294901760
        %612 = vmatmul.f32.gmra.mxu0 %v611
        %v613 = vpop.f32.mrf.mxu0
        %v614 = vadd.f32 %v564, %v613
        %v615 = vand.u32 %v261, 4294901760
        %616 = vmatmul.f32.gmra.mxu0 %v615
        %v617 = vpop.f32.mrf.mxu0
        %v618 = vadd.f32 %v568, %v617
        %v619 = vand.u32 %v264, 4294901760
        %620 = vmatmul.f32.gmra.mxu0 %v619
        %v621 = vpop.f32.mrf.mxu0
        %v622 = vadd.f32 %v572, %v621
        %v623 = vand.u32 %v267, 4294901760
        %624 = vmatmul.f32.gmra.mxu0 %v623
        %v625 = vpop.f32.mrf.mxu0
        %v626 = vadd.f32 %v576, %v625
        %v627 = vand.u32 %v270, 4294901760
        %628 = vmatmul.f32.gmra.mxu0 %v627
        %v629 = vpop.f32.mrf.mxu0
        %v630 = vadd.f32 %v580, %v629
        %v631 = vand.u32 %v273, 4294901760
        %632 = vmatmul.f32.gmra.mxu0 %v631
        %v633 = vpop.f32.mrf.mxu0
        %v634 = vadd.f32 %v584, %v633
        %v635 = vand.u32 %v276, 4294901760
        %636 = vmatmul.f32.gmra.mxu0 %v635
        %v637 = vpop.f32.mrf.mxu0
        %v638 = vadd.f32 %v588, %v637
        %v639 = vand.u32 %v279, 4294901760
        %640 = vmatmul.f32.gmra.mxu0 %v639
        %v641 = vpop.f32.mrf.mxu0
        %v642 = vadd.f32 %v592, %v641
        %643 = vdwg.mxu0
        %644 = vmatpush.msra.mxu0 0.0
        %645 = vmatpush.msra.mxu0 0.0
        %646 = vmatpush.msra.mxu0 0.0
        %647 = vmatpush.msra.mxu0 0.0
        %648 = vmatpush.msra.mxu0 0.0
        %649 = vmatpush.msra.mxu0 0.0
        %650 = vmatpush.msra.mxu0 0.0
        %651 = vmatpush.msra.mxu0 0.0
        %652 = vmatpush.msra.mxu0 0.0
        %653 = vmatpush.msra.mxu0 0.0
        %654 = vmatpush.msra.mxu0 0.0
        %655 = vmatpush.msra.mxu0 0.0
        %656 = vmatpush.msra.mxu0 0.0
        %657 = vmatpush.msra.mxu0 0.0
        %658 = vmatpush.msra.mxu0 0.0
        %v659 = vand.u32 %v255, 4294901760
        %660 = vmatpush.msra.mxu0 %v659
        %v661 = vand.u32 %v258, 4294901760
        %v662 = vsub.f32 %v258, %v661
        %v663 = vand.u32 %v662, 4294901760
        %v664 = vsub.f32 %v662, %v663
        %v665 = vand.u32 %v664, 4294901760
        %666 = vmatmul.f32.gmra.mxu0 %v665
        %v667 = vpop.f32.mrf.mxu0
        %v668 = vadd.f32 0.0, %v667
        %v669 = vand.u32 %v261, 4294901760
        %v670 = vsub.f32 %v261, %v669
        %v671 = vand.u32 %v670, 4294901760
        %v672 = vsub.f32 %v670, %v671
        %v673 = vand.u32 %v672, 4294901760
        %674 = vmatmul.f32.gmra.mxu0 %v673
        %v675 = vpop.f32.mrf.mxu0
        %v676 = vadd.f32 0.0, %v675
        %v677 = vand.u32 %v264, 4294901760
        %v678 = vsub.f32 %v264, %v677
        %v679 = vand.u32 %v678, 4294901760
        %v680 = vsub.f32 %v678, %v679
        %v681 = vand.u32 %v680, 4294901760
        %682 = vmatmul.f32.gmra.mxu0 %v681
        %v683 = vpop.f32.mrf.mxu0
        %v684 = vadd.f32 0.0, %v683
        %v685 = vand.u32 %v267, 4294901760
        %v686 = vsub.f32 %v267, %v685
        %v687 = vand.u32 %v686, 4294901760
        %v688 = vsub.f32 %v686, %v687
        %v689 = vand.u32 %v688, 4294901760
        %690 = vmatmul.f32.gmra.mxu0 %v689
        %v691 = vpop.f32.mrf.mxu0
        %v692 = vadd.f32 0.0, %v691
        %v693 = vand.u32 %v270, 4294901760
        %v694 = vsub.f32 %v270, %v693
        %v695 = vand.u32 %v694, 4294901760
        %v696 = vsub.f32 %v694, %v695
        %v697 = vand.u32 %v696, 4294901760
        %698 = vmatmul.f32.gmra.mxu0 %v697
        %v699 = vpop.f32.mrf.mxu0
        %v700 = vadd.f32 0.0, %v699
        %v701 = vand.u32 %v273, 4294901760
        %v702 = vsub.f32 %v273, %v701
        %v703 = vand.u32 %v702, 4294901760
        %v704 = vsub.f32 %v702, %v703
        %v705 = vand.u32 %v704, 4294901760
        %706 = vmatmul.f32.gmra.mxu0 %v705
        %v707 = vpop.f32.mrf.mxu0
        %v708 = vadd.f32 0.0, %v707
        %v709 = vand.u32 %v276, 4294901760
        %v710 = vsub.f32 %v276, %v709
        %v711 = vand.u32 %v710, 4294901760
        %v712 = vsub.f32 %v710, %v711
        %v713 = vand.u32 %v712, 4294901760
        %714 = vmatmul.f32.gmra.mxu0 %v713
        %v715 = vpop.f32.mrf.mxu0
        %v716 = vadd.f32 0.0, %v715
        %v717 = vand.u32 %v279, 4294901760
        %v718 = vsub.f32 %v279, %v717
        %v719 = vand.u32 %v718, 4294901760
        %v720 = vsub.f32 %v718, %v719
        %v721 = vand.u32 %v720, 4294901760
        %722 = vmatmul.f32.gmra.mxu0 %v721
        %v723 = vpop.f32.mrf.mxu0
        %v724 = vadd.f32 0.0, %v723
        %725 = vdwg.mxu0
        %726 = vmatpush.msra.mxu0 0.0
        %727 = vmatpush.msra.mxu0 0.0
        %728 = vmatpush.msra.mxu0 0.0
        %729 = vmatpush.msra.mxu0 0.0
        %730 = vmatpush.msra.mxu0 0.0
        %731 = vmatpush.msra.mxu0 0.0
        %732 = vmatpush.msra.mxu0 0.0
        %733 = vmatpush.msra.mxu0 0.0
        %734 = vmatpush.msra.mxu0 0.0
        %735 = vmatpush.msra.mxu0 0.0
        %736 = vmatpush.msra.mxu0 0.0
        %737 = vmatpush.msra.mxu0 0.0
        %738 = vmatpush.msra.mxu0 0.0
        %739 = vmatpush.msra.mxu0 0.0
        %740 = vmatpush.msra.mxu0 0.0
        %v741 = vand.u32 %v255, 4294901760
        %v742 = vsub.f32 %v255, %v741
        %v743 = vand.u32 %v742, 4294901760
        %v744 = vsub.f32 %v742, %v743
        %v745 = vand.u32 %v744, 4294901760
        %746 = vmatpush.msra.mxu0 %v745
        %v747 = vand.u32 %v258, 4294901760
        %748 = vmatmul.f32.gmra.mxu0 %v747
        %v749 = vpop.f32.mrf.mxu0
        %v750 = vadd.f32 %v668, %v749
        %v751 = vand.u32 %v261, 4294901760
        %752 = vmatmul.f32.gmra.mxu0 %v751
        %v753 = vpop.f32.mrf.mxu0
        %v754 = vadd.f32 %v676, %v753
        %v755 = vand.u32 %v264, 4294901760
        %756 = vmatmul.f32.gmra.mxu0 %v755
        %v757 = vpop.f32.mrf.mxu0
        %v758 = vadd.f32 %v684, %v757
        %v759 = vand.u32 %v267, 4294901760
        %760 = vmatmul.f32.gmra.mxu0 %v759
        %v761 = vpop.f32.mrf.mxu0
        %v762 = vadd.f32 %v692, %v761
        %v763 = vand.u32 %v270, 4294901760
        %764 = vmatmul.f32.gmra.mxu0 %v763
        %v765 = vpop.f32.mrf.mxu0
        %v766 = vadd.f32 %v700, %v765
        %v767 = vand.u32 %v273, 4294901760
        %768 = vmatmul.f32.gmra.mxu0 %v767
        %v769 = vpop.f32.mrf.mxu0
        %v770 = vadd.f32 %v708, %v769
        %v771 = vand.u32 %v276, 4294901760
        %772 = vmatmul.f32.gmra.mxu0 %v771
        %v773 = vpop.f32.mrf.mxu0
        %v774 = vadd.f32 %v716, %v773
        %v775 = vand.u32 %v279, 4294901760
        %776 = vmatmul.f32.gmra.mxu0 %v775
        %v777 = vpop.f32.mrf.mxu0
        %v778 = vadd.f32 %v724, %v777
        %779 = vdwg.mxu0
        %780 = vmatpush.msra.mxu0 0.0
        %781 = vmatpush.msra.mxu0 0.0
        %782 = vmatpush.msra.mxu0 0.0
        %783 = vmatpush.msra.mxu0 0.0
        %784 = vmatpush.msra.mxu0 0.0
        %785 = vmatpush.msra.mxu0 0.0
        %786 = vmatpush.msra.mxu0 0.0
        %787 = vmatpush.msra.mxu0 0.0
        %788 = vmatpush.msra.mxu0 0.0
        %789 = vmatpush.msra.mxu0 0.0
        %790 = vmatpush.msra.mxu0 0.0
        %791 = vmatpush.msra.mxu0 0.0
        %792 = vmatpush.msra.mxu0 0.0
        %793 = vmatpush.msra.mxu0 0.0
        %794 = vmatpush.msra.mxu0 0.0
        %v795 = vand.u32 %v255, 4294901760
        %v796 = vsub.f32 %v255, %v795
        %797 = vmatpush.msra.mxu0 %v796
        %v798 = vand.u32 %v258, 4294901760
        %v799 = vsub.f32 %v258, %v798
        %800 = vmatmul.f32.gmra.mxu0 %v799
        %v801 = vpop.f32.mrf.mxu0
        %v802 = vadd.f32 %v750, %v801
        %v803 = vand.u32 %v261, 4294901760
        %v804 = vsub.f32 %v261, %v803
        %805 = vmatmul.f32.gmra.mxu0 %v804
        %v806 = vpop.f32.mrf.mxu0
        %v807 = vadd.f32 %v754, %v806
        %v808 = vand.u32 %v264, 4294901760
        %v809 = vsub.f32 %v264, %v808
        %810 = vmatmul.f32.gmra.mxu0 %v809
        %v811 = vpop.f32.mrf.mxu0
        %v812 = vadd.f32 %v758, %v811
        %v813 = vand.u32 %v267, 4294901760
        %v814 = vsub.f32 %v267, %v813
        %815 = vmatmul.f32.gmra.mxu0 %v814
        %v816 = vpop.f32.mrf.mxu0
        %v817 = vadd.f32 %v762, %v816
        %v818 = vand.u32 %v270, 4294901760
        %v819 = vsub.f32 %v270, %v818
        %820 = vmatmul.f32.gmra.mxu0 %v819
        %v821 = vpop.f32.mrf.mxu0
        %v822 = vadd.f32 %v766, %v821
        %v823 = vand.u32 %v273, 4294901760
        %v824 = vsub.f32 %v273, %v823
        %825 = vmatmul.f32.gmra.mxu0 %v824
        %v826 = vpop.f32.mrf.mxu0
        %v827 = vadd.f32 %v770, %v826
        %v828 = vand.u32 %v276, 4294901760
        %v829 = vsub.f32 %v276, %v828
        %830 = vmatmul.f32.gmra.mxu0 %v829
        %v831 = vpop.f32.mrf.mxu0
        %v832 = vadd.f32 %v774, %v831
        %v833 = vand.u32 %v279, 4294901760
        %v834 = vsub.f32 %v279, %v833
        %835 = vmatmul.f32.gmra.mxu0 %v834
        %v836 = vpop.f32.mrf.mxu0
        %v837 = vadd.f32 %v778, %v836
        %838 = vdwg.mxu0
        %839 = vmatpush.msra.mxu0 0.0
        %840 = vmatpush.msra.mxu0 0.0
        %841 = vmatpush.msra.mxu0 0.0
        %842 = vmatpush.msra.mxu0 0.0
        %843 = vmatpush.msra.mxu0 0.0
        %844 = vmatpush.msra.mxu0 0.0
        %845 = vmatpush.msra.mxu0 0.0
        %846 = vmatpush.msra.mxu0 0.0
        %847 = vmatpush.msra.mxu0 0.0
        %848 = vmatpush.msra.mxu0 0.0
        %849 = vmatpush.msra.mxu0 0.0
        %850 = vmatpush.msra.mxu0 0.0
        %851 = vmatpush.msra.mxu0 0.0
        %852 = vmatpush.msra.mxu0 0.0
        %853 = vmatpush.msra.mxu0 0.0
        %v854 = vand.u32 %v255, 4294901760
        %855 = vmatpush.msra.mxu0 %v854
        %v856 = vand.u32 %v258, 4294901760
        %v857 = vsub.f32 %v258, %v856
        %v858 = vand.u32 %v857, 4294901760
        %859 = vmatmul.f32.gmra.mxu0 %v858
        %v860 = vpop.f32.mrf.mxu0
        %v861 = vadd.f32 %v802, %v860
        %v862 = vand.u32 %v261, 4294901760
        %v863 = vsub.f32 %v261, %v862
        %v864 = vand.u32 %v863, 4294901760
        %865 = vmatmul.f32.gmra.mxu0 %v864
        %v866 = vpop.f32.mrf.mxu0
        %v867 = vadd.f32 %v807, %v866
        %v868 = vand.u32 %v264, 4294901760
        %v869 = vsub.f32 %v264, %v868
        %v870 = vand.u32 %v869, 4294901760
        %871 = vmatmul.f32.gmra.mxu0 %v870
        %v872 = vpop.f32.mrf.mxu0
        %v873 = vadd.f32 %v812, %v872
        %v874 = vand.u32 %v267, 4294901760
        %v875 = vsub.f32 %v267, %v874
        %v876 = vand.u32 %v875, 4294901760
        %877 = vmatmul.f32.gmra.mxu0 %v876
        %v878 = vpop.f32.mrf.mxu0
        %v879 = vadd.f32 %v817, %v878
        %v880 = vand.u32 %v270, 4294901760
        %v881 = vsub.f32 %v270, %v880
        %v882 = vand.u32 %v881, 4294901760
        %883 = vmatmul.f32.gmra.mxu0 %v882
        %v884 = vpop.f32.mrf.mxu0
        %v885 = vadd.f32 %v822, %v884
        %v886 = vand.u32 %v273, 4294901760
        %v887 = vsub.f32 %v273, %v886
        %v888 = vand.u32 %v887, 4294901760
        %889 = vmatmul.f32.gmra.mxu0 %v888
        %v890 = vpop.f32.mrf.mxu0
        %v891 = vadd.f32 %v827, %v890
        %v892 = vand.u32 %v276, 4294901760
        %v893 = vsub.f32 %v276, %v892
        %v894 = vand.u32 %v893, 4294901760
        %895 = vmatmul.f32.gmra.mxu0 %v894
        %v896 = vpop.f32.mrf.mxu0
        %v897 = vadd.f32 %v832, %v896
        %v898 = vand.u32 %v279, 4294901760
        %v899 = vsub.f32 %v279, %v898
        %v900 = vand.u32 %v899, 4294901760
        %901 = vmatmul.f32.gmra.mxu0 %v900
        %v902 = vpop.f32.mrf.mxu0
        %v903 = vadd.f32 %v837, %v902
        %904 = vdwg.mxu0
        %905 = vmatpush.msra.mxu0 0.0
        %906 = vmatpush.msra.mxu0 0.0
        %907 = vmatpush.msra.mxu0 0.0
        %908 = vmatpush.msra.mxu0 0.0
        %909 = vmatpush.msra.mxu0 0.0
        %910 = vmatpush.msra.mxu0 0.0
        %911 = vmatpush.msra.mxu0 0.0
        %912 = vmatpush.msra.mxu0 0.0
        %913 = vmatpush.msra.mxu0 0.0
        %914 = vmatpush.msra.mxu0 0.0
        %915 = vmatpush.msra.mxu0 0.0
        %916 = vmatpush.msra.mxu0 0.0
        %917 = vmatpush.msra.mxu0 0.0
        %918 = vmatpush.msra.mxu0 0.0
        %919 = vmatpush.msra.mxu0 0.0
        %v920 = vand.u32 %v255, 4294901760
        %v921 = vsub.f32 %v255, %v920
        %v922 = vand.u32 %v921, 4294901760
        %923 = vmatpush.msra.mxu0 %v922
        %v924 = vand.u32 %v258, 4294901760
        %925 = vmatmul.f32.gmra.mxu0 %v924
        %v926 = vpop.f32.mrf.mxu0
        %v927 = vadd.f32 %v861, %v926
        %v928 = vand.u32 %v261, 4294901760
        %929 = vmatmul.f32.gmra.mxu0 %v928
        %v930 = vpop.f32.mrf.mxu0
        %v931 = vadd.f32 %v867, %v930
        %v932 = vand.u32 %v264, 4294901760
        %933 = vmatmul.f32.gmra.mxu0 %v932
        %v934 = vpop.f32.mrf.mxu0
        %v935 = vadd.f32 %v873, %v934
        %v936 = vand.u32 %v267, 4294901760
        %937 = vmatmul.f32.gmra.mxu0 %v936
        %v938 = vpop.f32.mrf.mxu0
        %v939 = vadd.f32 %v879, %v938
        %v940 = vand.u32 %v270, 4294901760
        %941 = vmatmul.f32.gmra.mxu0 %v940
        %v942 = vpop.f32.mrf.mxu0
        %v943 = vadd.f32 %v885, %v942
        %v944 = vand.u32 %v273, 4294901760
        %945 = vmatmul.f32.gmra.mxu0 %v944
        %v946 = vpop.f32.mrf.mxu0
        %v947 = vadd.f32 %v891, %v946
        %v948 = vand.u32 %v276, 4294901760
        %949 = vmatmul.f32.gmra.mxu0 %v948
        %v950 = vpop.f32.mrf.mxu0
        %v951 = vadd.f32 %v897, %v950
        %v952 = vand.u32 %v279, 4294901760
        %953 = vmatmul.f32.gmra.mxu0 %v952
        %v954 = vpop.f32.mrf.mxu0
        %v955 = vadd.f32 %v903, %v954
        %956 = vdwg.mxu0
        %957 = vmatpush.msra.mxu0 0.0
        %958 = vmatpush.msra.mxu0 0.0
        %959 = vmatpush.msra.mxu0 0.0
        %960 = vmatpush.msra.mxu0 0.0
        %961 = vmatpush.msra.mxu0 0.0
        %962 = vmatpush.msra.mxu0 0.0
        %963 = vmatpush.msra.mxu0 0.0
        %964 = vmatpush.msra.mxu0 0.0
        %965 = vmatpush.msra.mxu0 0.0
        %966 = vmatpush.msra.mxu0 0.0
        %967 = vmatpush.msra.mxu0 0.0
        %968 = vmatpush.msra.mxu0 0.0
        %969 = vmatpush.msra.mxu0 0.0
        %970 = vmatpush.msra.mxu0 0.0
        %971 = vmatpush.msra.mxu0 0.0
        %v972 = vand.u32 %v255, 4294901760
        %973 = vmatpush.msra.mxu0 %v972
        %v974 = vand.u32 %v258, 4294901760
        %975 = vmatmul.f32.gmra.mxu0 %v974
        %v976 = vpop.f32.mrf.mxu0
        %v977 = vadd.f32 %v927, %v976
        %v978 = vand.u32 %v261, 4294901760
        %979 = vmatmul.f32.gmra.mxu0 %v978
        %v980 = vpop.f32.mrf.mxu0
        %v981 = vadd.f32 %v931, %v980
        %v982 = vand.u32 %v264, 4294901760
        %983 = vmatmul.f32.gmra.mxu0 %v982
        %v984 = vpop.f32.mrf.mxu0
        %v985 = vadd.f32 %v935, %v984
        %v986 = vand.u32 %v267, 4294901760
        %987 = vmatmul.f32.gmra.mxu0 %v986
        %v988 = vpop.f32.mrf.mxu0
        %v989 = vadd.f32 %v939, %v988
        %v990 = vand.u32 %v270, 4294901760
        %991 = vmatmul.f32.gmra.mxu0 %v990
        %v992 = vpop.f32.mrf.mxu0
        %v993 = vadd.f32 %v943, %v992
        %v994 = vand.u32 %v273, 4294901760
        %995 = vmatmul.f32.gmra.mxu0 %v994
        %v996 = vpop.f32.mrf.mxu0
        %v997 = vadd.f32 %v947, %v996
        %v998 = vand.u32 %v276, 4294901760
        %999 = vmatmul.f32.gmra.mxu0 %v998
        %v1000 = vpop.f32.mrf.mxu0
        %v1001 = vadd.f32 %v951, %v1000
        %v1002 = vand.u32 %v279, 4294901760
        %1003 = vmatmul.f32.gmra.mxu0 %v1002
        %v1004 = vpop.f32.mrf.mxu0
        %v1005 = vadd.f32 %v955, %v1004
        %1006 = vdwg.mxu0
        %v1007 = vlaneseq
        %v1008 = vand.u32 %v1007, 127
        %v1009 = vadd.s32 %v1008, 128
        %v1010 = vand.u32 %v1008, 31
        %v1011 = vand.u32 %v1009, 31
        %v1012 = vcvt.s32.f32 %v1010
        %v1013 = vcvt.s32.f32 %v1011
        %v1014 = vsub.f32 %v614, %v1012
        %v1015 = vsub.f32 %v977, %v1013
        %v1016 = vsub.f32 %v618, %v1012
        %v1017 = vsub.f32 %v981, %v1013
        %v1018 = vsub.f32 %v622, %v1012
        %v1019 = vsub.f32 %v985, %v1013
        %v1020 = vsub.f32 %v626, %v1012
        %v1021 = vsub.f32 %v989, %v1013
        %v1022 = vsub.f32 %v630, %v1012
        %v1023 = vsub.f32 %v993, %v1013
        %v1024 = vsub.f32 %v634, %v1012
        %v1025 = vsub.f32 %v997, %v1013
        %v1026 = vsub.f32 %v638, %v1012
        %v1027 = vsub.f32 %v1001, %v1013
        %v1028 = vsub.f32 %v642, %v1012
        %v1029 = vsub.f32 %v1005, %v1013
        %v1030 = vand.u32 2147483647, %v1014
        %v1031 = vand.u32 2147483647, %v1015
        %v1032 = vand.u32 2147483647, %v1016
        %v1033 = vand.u32 2147483647, %v1017
        %v1034 = vand.u32 2147483647, %v1018
        %v1035 = vand.u32 2147483647, %v1019
        %v1036 = vand.u32 2147483647, %v1020
        %v1037 = vand.u32 2147483647, %v1021
        %v1038 = vand.u32 2147483647, %v1022
        %v1039 = vand.u32 2147483647, %v1023
        %v1040 = vand.u32 2147483647, %v1024
        %v1041 = vand.u32 2147483647, %v1025
        %v1042 = vand.u32 2147483647, %v1026
        %v1043 = vand.u32 2147483647, %v1027
        %v1044 = vand.u32 2147483647, %v1028
        %v1045 = vand.u32 2147483647, %v1029
        %vm1046 = vcmp.lt.f32.partialorder %v1030, 0.5
        %vm1047 = vcmp.lt.f32.partialorder %v1031, 0.5
        %vm1048 = vcmp.lt.f32.partialorder %v1032, 0.5
        %vm1049 = vcmp.lt.f32.partialorder %v1033, 0.5
        %vm1050 = vcmp.lt.f32.partialorder %v1034, 0.5
        %vm1051 = vcmp.lt.f32.partialorder %v1035, 0.5
        %vm1052 = vcmp.lt.f32.partialorder %v1036, 0.5
        %vm1053 = vcmp.lt.f32.partialorder %v1037, 0.5
        %vm1054 = vcmp.lt.f32.partialorder %v1038, 0.5
        %vm1055 = vcmp.lt.f32.partialorder %v1039, 0.5
        %vm1056 = vcmp.lt.f32.partialorder %v1040, 0.5
        %vm1057 = vcmp.lt.f32.partialorder %v1041, 0.5
        %vm1058 = vcmp.lt.f32.partialorder %v1042, 0.5
        %vm1059 = vcmp.lt.f32.partialorder %v1043, 0.5
        %vm1060 = vcmp.lt.f32.partialorder %v1044, 0.5
        %vm1061 = vcmp.lt.f32.partialorder %v1045, 0.5
        %v1062 = vsel %vm1046, 1, 0
        %v1063 = vsel %vm1047, 1, 0
        %v1064 = vsel %vm1048, 1, 0
        %v1065 = vsel %vm1049, 1, 0
        %v1066 = vsel %vm1050, 1, 0
        %v1067 = vsel %vm1051, 1, 0
        %v1068 = vsel %vm1052, 1, 0
        %v1069 = vsel %vm1053, 1, 0
        %v1070 = vsel %vm1054, 1, 0
        %v1071 = vsel %vm1055, 1, 0
        %v1072 = vsel %vm1056, 1, 0
        %v1073 = vsel %vm1057, 1, 0
        %v1074 = vsel %vm1058, 1, 0
        %v1075 = vsel %vm1059, 1, 0
        %v1076 = vsel %vm1060, 1, 0
        %v1077 = vsel %vm1061, 1, 0
        %v1078 = vcvt.s32.f32 %v1062
        %v1079 = vcvt.s32.f32 %v1063
        %v1080 = vcvt.s32.f32 %v1064
        %v1081 = vcvt.s32.f32 %v1065
        %v1082 = vcvt.s32.f32 %v1066
        %v1083 = vcvt.s32.f32 %v1067
        %v1084 = vcvt.s32.f32 %v1068
        %v1085 = vcvt.s32.f32 %v1069
        %v1086 = vcvt.s32.f32 %v1070
        %v1087 = vcvt.s32.f32 %v1071
        %v1088 = vcvt.s32.f32 %v1072
        %v1089 = vcvt.s32.f32 %v1073
        %v1090 = vcvt.s32.f32 %v1074
        %v1091 = vcvt.s32.f32 %v1075
        %v1092 = vcvt.s32.f32 %v1076
        %v1093 = vcvt.s32.f32 %v1077
        %v1094 = vld [vmem:[%s235] sm:$0xff]
        %v1095 = vld [vmem:[%s235 + $0x8] sm:$0xff]
        %v1096 = vld [vmem:[%s235 + $0x10] sm:$0xff]
        %v1097 = vld [vmem:[%s235 + $0x18] sm:$0xff]
        %v1098 = vld [vmem:[%s235 + $0x20] sm:$0xff]
        %v1099 = vld [vmem:[%s235 + $0x28] sm:$0xff]
        %v1100 = vld [vmem:[%s235 + $0x30] sm:$0xff]
        %v1101 = vld [vmem:[%s235 + $0x38] sm:$0xff]
        %v1102 = vld [vmem:[#allocation2] sm:$0xff]
        %v1103 = vld [vmem:[#allocation2 + $0x8] sm:$0xff]
        %v1104 = vld [vmem:[#allocation2 + $0x10] sm:$0xff]
        %v1105 = vld [vmem:[#allocation2 + $0x18] sm:$0xff]
        %v1106 = vld [vmem:[#allocation2 + $0x20] sm:$0xff]
        %v1107 = vld [vmem:[#allocation2 + $0x28] sm:$0xff]
        %v1108 = vld [vmem:[#allocation2 + $0x30] sm:$0xff]
        %v1109 = vld [vmem:[#allocation2 + $0x38] sm:$0xff]
        %v1110 = vld [vmem:[#allocation2 + $0x40] sm:$0xff]
        %v1111 = vld [vmem:[#allocation2 + $0x48] sm:$0xff]
        %v1112 = vld [vmem:[#allocation2 + $0x50] sm:$0xff]
        %v1113 = vld [vmem:[#allocation2 + $0x58] sm:$0xff]
        %v1114 = vld [vmem:[#allocation2 + $0x60] sm:$0xff]
        %v1115 = vld [vmem:[#allocation2 + $0x68] sm:$0xff]
        %v1116 = vld [vmem:[#allocation2 + $0x70] sm:$0xff]
        %v1117 = vld [vmem:[#allocation2 + $0x78] sm:$0xff]
        %v1118 = vld [vmem:[#allocation2 + $0x80] sm:$0xff]
        %v1119 = vld [vmem:[#allocation2 + $0x88] sm:$0xff]
        %v1120 = vld [vmem:[#allocation2 + $0x90] sm:$0xff]
        %v1121 = vld [vmem:[#allocation2 + $0x98] sm:$0xff]
        %v1122 = vld [vmem:[#allocation2 + $0xa0] sm:$0xff]
        %v1123 = vld [vmem:[#allocation2 + $0xa8] sm:$0xff]
        %v1124 = vld [vmem:[#allocation2 + $0xb0] sm:$0xff]
        %v1125 = vld [vmem:[#allocation2 + $0xb8] sm:$0xff]
        %v1126 = vld [vmem:[#allocation2 + $0xc0] sm:$0xff]
        %v1127 = vld [vmem:[#allocation2 + $0xc8] sm:$0xff]
        %v1128 = vld [vmem:[#allocation2 + $0xd0] sm:$0xff]
        %v1129 = vld [vmem:[#allocation2 + $0xd8] sm:$0xff]
        %v1130 = vld [vmem:[#allocation2 + $0xe0] sm:$0xff]
        %v1131 = vld [vmem:[#allocation2 + $0xe8] sm:$0xff]
        %v1132 = vld [vmem:[#allocation2 + $0xf0] sm:$0xff]
        %v1133 = vld [vmem:[#allocation2 + $0xf8] sm:$0xff]
        %v1134 = vld [vmem:[#allocation2 + $0x100] sm:$0xff]
        %v1135 = vld [vmem:[#allocation2 + $0x108] sm:$0xff]
        %v1136 = vld [vmem:[#allocation2 + $0x110] sm:$0xff]
        %v1137 = vld [vmem:[#allocation2 + $0x118] sm:$0xff]
        %v1138 = vld [vmem:[#allocation2 + $0x120] sm:$0xff]
        %v1139 = vld [vmem:[#allocation2 + $0x128] sm:$0xff]
        %v1140 = vld [vmem:[#allocation2 + $0x130] sm:$0xff]
        %v1141 = vld [vmem:[#allocation2 + $0x138] sm:$0xff]
        %v1142 = vld [vmem:[#allocation2 + $0x140] sm:$0xff]
        %v1143 = vld [vmem:[#allocation2 + $0x148] sm:$0xff]
        %v1144 = vld [vmem:[#allocation2 + $0x150] sm:$0xff]
        %v1145 = vld [vmem:[#allocation2 + $0x158] sm:$0xff]
        %v1146 = vld [vmem:[#allocation2 + $0x160] sm:$0xff]
        %v1147 = vld [vmem:[#allocation2 + $0x168] sm:$0xff]
        %v1148 = vld [vmem:[#allocation2 + $0x170] sm:$0xff]
        %v1149 = vld [vmem:[#allocation2 + $0x178] sm:$0xff]
        %v1150 = vld [vmem:[#allocation2 + $0x180] sm:$0xff]
        %v1151 = vld [vmem:[#allocation2 + $0x188] sm:$0xff]
        %v1152 = vld [vmem:[#allocation2 + $0x190] sm:$0xff]
        %v1153 = vld [vmem:[#allocation2 + $0x198] sm:$0xff]
        %v1154 = vld [vmem:[#allocation2 + $0x1a0] sm:$0xff]
        %v1155 = vld [vmem:[#allocation2 + $0x1a8] sm:$0xff]
        %v1156 = vld [vmem:[#allocation2 + $0x1b0] sm:$0xff]
        %v1157 = vld [vmem:[#allocation2 + $0x1b8] sm:$0xff]
        %v1158 = vld [vmem:[#allocation2 + $0x1c0] sm:$0xff]
        %v1159 = vld [vmem:[#allocation2 + $0x1c8] sm:$0xff]
        %v1160 = vld [vmem:[#allocation2 + $0x1d0] sm:$0xff]
        %v1161 = vld [vmem:[#allocation2 + $0x1d8] sm:$0xff]
        %v1162 = vld [vmem:[#allocation2 + $0x1e0] sm:$0xff]
        %v1163 = vld [vmem:[#allocation2 + $0x1e8] sm:$0xff]
        %v1164 = vld [vmem:[#allocation2 + $0x1f0] sm:$0xff]
        %v1165 = vld [vmem:[#allocation2 + $0x1f8] sm:$0xff]
        %v1166 = vld [vmem:[#allocation2 + $0x200] sm:$0xff]
        %v1167 = vld [vmem:[#allocation2 + $0x208] sm:$0xff]
        %v1168 = vld [vmem:[#allocation2 + $0x210] sm:$0xff]
        %v1169 = vld [vmem:[#allocation2 + $0x218] sm:$0xff]
        %v1170 = vld [vmem:[#allocation2 + $0x220] sm:$0xff]
        %v1171 = vld [vmem:[#allocation2 + $0x228] sm:$0xff]
        %v1172 = vld [vmem:[#allocation2 + $0x230] sm:$0xff]
        %v1173 = vld [vmem:[#allocation2 + $0x238] sm:$0xff]
        %v1174 = vld [vmem:[#allocation2 + $0x240] sm:$0xff]
        %v1175 = vld [vmem:[#allocation2 + $0x248] sm:$0xff]
        %v1176 = vld [vmem:[#allocation2 + $0x250] sm:$0xff]
        %v1177 = vld [vmem:[#allocation2 + $0x258] sm:$0xff]
        %v1178 = vld [vmem:[#allocation2 + $0x260] sm:$0xff]
        %v1179 = vld [vmem:[#allocation2 + $0x268] sm:$0xff]
        %v1180 = vld [vmem:[#allocation2 + $0x270] sm:$0xff]
        %v1181 = vld [vmem:[#allocation2 + $0x278] sm:$0xff]
        %v1182 = vld [vmem:[#allocation2 + $0x280] sm:$0xff]
        %v1183 = vld [vmem:[#allocation2 + $0x288] sm:$0xff]
        %v1184 = vld [vmem:[#allocation2 + $0x290] sm:$0xff]
        %v1185 = vld [vmem:[#allocation2 + $0x298] sm:$0xff]
        %v1186 = vld [vmem:[#allocation2 + $0x2a0] sm:$0xff]
        %v1187 = vld [vmem:[#allocation2 + $0x2a8] sm:$0xff]
        %v1188 = vld [vmem:[#allocation2 + $0x2b0] sm:$0xff]
        %v1189 = vld [vmem:[#allocation2 + $0x2b8] sm:$0xff]
        %v1190 = vld [vmem:[#allocation2 + $0x2c0] sm:$0xff]
        %v1191 = vld [vmem:[#allocation2 + $0x2c8] sm:$0xff]
        %v1192 = vld [vmem:[#allocation2 + $0x2d0] sm:$0xff]
        %v1193 = vld [vmem:[#allocation2 + $0x2d8] sm:$0xff]
        %v1194 = vld [vmem:[#allocation2 + $0x2e0] sm:$0xff]
        %v1195 = vld [vmem:[#allocation2 + $0x2e8] sm:$0xff]
        %v1196 = vld [vmem:[#allocation2 + $0x2f0] sm:$0xff]
        %v1197 = vld [vmem:[#allocation2 + $0x2f8] sm:$0xff]
        %v1198 = vld [vmem:[#allocation2 + $0x300] sm:$0xff]
        %v1199 = vld [vmem:[#allocation2 + $0x308] sm:$0xff]
        %v1200 = vld [vmem:[#allocation2 + $0x310] sm:$0xff]
        %v1201 = vld [vmem:[#allocation2 + $0x318] sm:$0xff]
        %v1202 = vld [vmem:[#allocation2 + $0x320] sm:$0xff]
        %v1203 = vld [vmem:[#allocation2 + $0x328] sm:$0xff]
        %v1204 = vld [vmem:[#allocation2 + $0x330] sm:$0xff]
        %v1205 = vld [vmem:[#allocation2 + $0x338] sm:$0xff]
        %v1206 = vld [vmem:[#allocation2 + $0x340] sm:$0xff]
        %v1207 = vld [vmem:[#allocation2 + $0x348] sm:$0xff]
        %v1208 = vld [vmem:[#allocation2 + $0x350] sm:$0xff]
        %v1209 = vld [vmem:[#allocation2 + $0x358] sm:$0xff]
        %v1210 = vld [vmem:[#allocation2 + $0x360] sm:$0xff]
        %v1211 = vld [vmem:[#allocation2 + $0x368] sm:$0xff]
        %v1212 = vld [vmem:[#allocation2 + $0x370] sm:$0xff]
        %v1213 = vld [vmem:[#allocation2 + $0x378] sm:$0xff]
        %v1214 = vld [vmem:[#allocation2 + $0x380] sm:$0xff]
        %v1215 = vld [vmem:[#allocation2 + $0x388] sm:$0xff]
        %v1216 = vld [vmem:[#allocation2 + $0x390] sm:$0xff]
        %v1217 = vld [vmem:[#allocation2 + $0x398] sm:$0xff]
        %v1218 = vld [vmem:[#allocation2 + $0x3a0] sm:$0xff]
        %v1219 = vld [vmem:[#allocation2 + $0x3a8] sm:$0xff]
        %v1220 = vld [vmem:[#allocation2 + $0x3b0] sm:$0xff]
        %v1221 = vld [vmem:[#allocation2 + $0x3b8] sm:$0xff]
        %v1222 = vld [vmem:[#allocation2 + $0x3c0] sm:$0xff]
        %v1223 = vld [vmem:[#allocation2 + $0x3c8] sm:$0xff]
        %v1224 = vld [vmem:[#allocation2 + $0x3d0] sm:$0xff]
        %v1225 = vld [vmem:[#allocation2 + $0x3d8] sm:$0xff]
        %v1226 = vld [vmem:[#allocation2 + $0x3e0] sm:$0xff]
        %v1227 = vld [vmem:[#allocation2 + $0x3e8] sm:$0xff]
        %v1228 = vld [vmem:[#allocation2 + $0x3f0] sm:$0xff]
        %v1229 = vld [vmem:[#allocation2 + $0x3f8] sm:$0xff]
        %v1230 = vld [vmem:[#allocation2 + $0x400] sm:$0xff]
        %v1231 = vld [vmem:[#allocation2 + $0x408] sm:$0xff]
        %v1232 = vld [vmem:[#allocation2 + $0x410] sm:$0xff]
        %v1233 = vld [vmem:[#allocation2 + $0x418] sm:$0xff]
        %v1234 = vld [vmem:[#allocation2 + $0x420] sm:$0xff]
        %v1235 = vld [vmem:[#allocation2 + $0x428] sm:$0xff]
        %v1236 = vld [vmem:[#allocation2 + $0x430] sm:$0xff]
        %v1237 = vld [vmem:[#allocation2 + $0x438] sm:$0xff]
        %v1238 = vld [vmem:[#allocation2 + $0x440] sm:$0xff]
        %v1239 = vld [vmem:[#allocation2 + $0x448] sm:$0xff]
        %v1240 = vld [vmem:[#allocation2 + $0x450] sm:$0xff]
        %v1241 = vld [vmem:[#allocation2 + $0x458] sm:$0xff]
        %v1242 = vld [vmem:[#allocation2 + $0x460] sm:$0xff]
        %v1243 = vld [vmem:[#allocation2 + $0x468] sm:$0xff]
        %v1244 = vld [vmem:[#allocation2 + $0x470] sm:$0xff]
        %v1245 = vld [vmem:[#allocation2 + $0x478] sm:$0xff]
        %v1246 = vand.u32 %v1147, 4294901760
        %1247 = vmatpush.msra.mxu0 %v1246
        %v1248 = vand.u32 %v1144, 4294901760
        %1249 = vmatpush.msra.mxu0 %v1248
        %v1250 = vand.u32 %v1141, 4294901760
        %1251 = vmatpush.msra.mxu0 %v1250
        %v1252 = vand.u32 %v1138, 4294901760
        %1253 = vmatpush.msra.mxu0 %v1252
        %v1254 = vand.u32 %v1135, 4294901760
        %1255 = vmatpush.msra.mxu0 %v1254
        %v1256 = vand.u32 %v1132, 4294901760
        %1257 = vmatpush.msra.mxu0 %v1256
        %v1258 = vand.u32 %v1129, 4294901760
        %1259 = vmatpush.msra.mxu0 %v1258
        %v1260 = vand.u32 %v1126, 4294901760
        %1261 = vmatpush.msra.mxu0 %v1260
        %v1262 = vand.u32 %v1123, 4294901760
        %1263 = vmatpush.msra.mxu0 %v1262
        %v1264 = vand.u32 %v1120, 4294901760
        %1265 = vmatpush.msra.mxu0 %v1264
        %v1266 = vand.u32 %v1117, 4294901760
        %1267 = vmatpush.msra.mxu0 %v1266
        %v1268 = vand.u32 %v1114, 4294901760
        %1269 = vmatpush.msra.mxu0 %v1268
        %v1270 = vand.u32 %v1111, 4294901760
        %1271 = vmatpush.msra.mxu0 %v1270
        %v1272 = vand.u32 %v1108, 4294901760
        %1273 = vmatpush.msra.mxu0 %v1272
        %v1274 = vand.u32 %v1105, 4294901760
        %1275 = vmatpush.msra.mxu0 %v1274
        %v1276 = vand.u32 %v1102, 4294901760
        %1277 = vmatpush.msra.mxu0 %v1276
        %v1278 = vand.u32 %v1078, 4294901760
        %v1279 = vsub.f32 %v1078, %v1278
        %v1280 = vand.u32 %v1279, 4294901760
        %v1281 = vsub.f32 %v1279, %v1280
        %v1282 = vand.u32 %v1281, 4294901760
        %1283 = vmatmul.f32.gmra.mxu0 %v1282
        %v1284 = vpop.f32.mrf.mxu0
        %v1285 = vadd.f32 0.0, %v1284
        %v1286 = vand.u32 %v1080, 4294901760
        %v1287 = vsub.f32 %v1080, %v1286
        %v1288 = vand.u32 %v1287, 4294901760
        %v1289 = vsub.f32 %v1287, %v1288
        %v1290 = vand.u32 %v1289, 4294901760
        %1291 = vmatmul.f32.gmra.mxu0 %v1290
        %v1292 = vpop.f32.mrf.mxu0
        %v1293 = vadd.f32 0.0, %v1292
        %v1294 = vand.u32 %v1082, 4294901760
        %v1295 = vsub.f32 %v1082, %v1294
        %v1296 = vand.u32 %v1295, 4294901760
        %v1297 = vsub.f32 %v1295, %v1296
        %v1298 = vand.u32 %v1297, 4294901760
        %1299 = vmatmul.f32.gmra.mxu0 %v1298
        %v1300 = vpop.f32.mrf.mxu0
        %v1301 = vadd.f32 0.0, %v1300
        %v1302 = vand.u32 %v1084, 4294901760
        %v1303 = vsub.f32 %v1084, %v1302
        %v1304 = vand.u32 %v1303, 4294901760
        %v1305 = vsub.f32 %v1303, %v1304
        %v1306 = vand.u32 %v1305, 4294901760
        %1307 = vmatmul.f32.gmra.mxu0 %v1306
        %v1308 = vpop.f32.mrf.mxu0
        %v1309 = vadd.f32 0.0, %v1308
        %v1310 = vand.u32 %v1086, 4294901760
        %v1311 = vsub.f32 %v1086, %v1310
        %v1312 = vand.u32 %v1311, 4294901760
        %v1313 = vsub.f32 %v1311, %v1312
        %v1314 = vand.u32 %v1313, 4294901760
        %1315 = vmatmul.f32.gmra.mxu0 %v1314
        %v1316 = vpop.f32.mrf.mxu0
        %v1317 = vadd.f32 0.0, %v1316
        %v1318 = vand.u32 %v1088, 4294901760
        %v1319 = vsub.f32 %v1088, %v1318
        %v1320 = vand.u32 %v1319, 4294901760
        %v1321 = vsub.f32 %v1319, %v1320
        %v1322 = vand.u32 %v1321, 4294901760
        %1323 = vmatmul.f32.gmra.mxu0 %v1322
        %v1324 = vpop.f32.mrf.mxu0
        %v1325 = vadd.f32 0.0, %v1324
        %v1326 = vand.u32 %v1090, 4294901760
        %v1327 = vsub.f32 %v1090, %v1326
        %v1328 = vand.u32 %v1327, 4294901760
        %v1329 = vsub.f32 %v1327, %v1328
        %v1330 = vand.u32 %v1329, 4294901760
        %1331 = vmatmul.f32.gmra.mxu0 %v1330
        %v1332 = vpop.f32.mrf.mxu0
        %v1333 = vadd.f32 0.0, %v1332
        %v1334 = vand.u32 %v1092, 4294901760
        %v1335 = vsub.f32 %v1092, %v1334
        %v1336 = vand.u32 %v1335, 4294901760
        %v1337 = vsub.f32 %v1335, %v1336
        %v1338 = vand.u32 %v1337, 4294901760
        %1339 = vmatmul.f32.gmra.mxu0 %v1338
        %v1340 = vpop.f32.mrf.mxu0
        %v1341 = vadd.f32 0.0, %v1340
        %1342 = vdwg.mxu0
        %v1343 = vand.u32 %v1147, 4294901760
        %v1344 = vsub.f32 %v1147, %v1343
        %v1345 = vand.u32 %v1344, 4294901760
        %v1346 = vsub.f32 %v1344, %v1345
        %v1347 = vand.u32 %v1346, 4294901760
        %1348 = vmatpush.msra.mxu0 %v1347
        %v1349 = vand.u32 %v1144, 4294901760
        %v1350 = vsub.f32 %v1144, %v1349
        %v1351 = vand.u32 %v1350, 4294901760
        %v1352 = vsub.f32 %v1350, %v1351
        %v1353 = vand.u32 %v1352, 4294901760
        %1354 = vmatpush.msra.mxu0 %v1353
        %v1355 = vand.u32 %v1141, 4294901760
        %v1356 = vsub.f32 %v1141, %v1355
        %v1357 = vand.u32 %v1356, 4294901760
        %v1358 = vsub.f32 %v1356, %v1357
        %v1359 = vand.u32 %v1358, 4294901760
        %1360 = vmatpush.msra.mxu0 %v1359
        %v1361 = vand.u32 %v1138, 4294901760
        %v1362 = vsub.f32 %v1138, %v1361
        %v1363 = vand.u32 %v1362, 4294901760
        %v1364 = vsub.f32 %v1362, %v1363
        %v1365 = vand.u32 %v1364, 4294901760
        %1366 = vmatpush.msra.mxu0 %v1365
        %v1367 = vand.u32 %v1135, 4294901760
        %v1368 = vsub.f32 %v1135, %v1367
        %v1369 = vand.u32 %v1368, 4294901760
        %v1370 = vsub.f32 %v1368, %v1369
        %v1371 = vand.u32 %v1370, 4294901760
        %1372 = vmatpush.msra.mxu0 %v1371
        %v1373 = vand.u32 %v1132, 4294901760
        %v1374 = vsub.f32 %v1132, %v1373
        %v1375 = vand.u32 %v1374, 4294901760
        %v1376 = vsub.f32 %v1374, %v1375
        %v1377 = vand.u32 %v1376, 4294901760
        %1378 = vmatpush.msra.mxu0 %v1377
        %v1379 = vand.u32 %v1129, 4294901760
        %v1380 = vsub.f32 %v1129, %v1379
        %v1381 = vand.u32 %v1380, 4294901760
        %v1382 = vsub.f32 %v1380, %v1381
        %v1383 = vand.u32 %v1382, 4294901760
        %1384 = vmatpush.msra.mxu0 %v1383
        %v1385 = vand.u32 %v1126, 4294901760
        %v1386 = vsub.f32 %v1126, %v1385
        %v1387 = vand.u32 %v1386, 4294901760
        %v1388 = vsub.f32 %v1386, %v1387
        %v1389 = vand.u32 %v1388, 4294901760
        %1390 = vmatpush.msra.mxu0 %v1389
        %v1391 = vand.u32 %v1123, 4294901760
        %v1392 = vsub.f32 %v1123, %v1391
        %v1393 = vand.u32 %v1392, 4294901760
        %v1394 = vsub.f32 %v1392, %v1393
        %v1395 = vand.u32 %v1394, 4294901760
        %1396 = vmatpush.msra.mxu0 %v1395
        %v1397 = vand.u32 %v1120, 4294901760
        %v1398 = vsub.f32 %v1120, %v1397
        %v1399 = vand.u32 %v1398, 4294901760
        %v1400 = vsub.f32 %v1398, %v1399
        %v1401 = vand.u32 %v1400, 4294901760
        %1402 = vmatpush.msra.mxu0 %v1401
        %v1403 = vand.u32 %v1117, 4294901760
        %v1404 = vsub.f32 %v1117, %v1403
        %v1405 = vand.u32 %v1404, 4294901760
        %v1406 = vsub.f32 %v1404, %v1405
        %v1407 = vand.u32 %v1406, 4294901760
        %1408 = vmatpush.msra.mxu0 %v1407
        %v1409 = vand.u32 %v1114, 4294901760
        %v1410 = vsub.f32 %v1114, %v1409
        %v1411 = vand.u32 %v1410, 4294901760
        %v1412 = vsub.f32 %v1410, %v1411
        %v1413 = vand.u32 %v1412, 4294901760
        %1414 = vmatpush.msra.mxu0 %v1413
        %v1415 = vand.u32 %v1111, 4294901760
        %v1416 = vsub.f32 %v1111, %v1415
        %v1417 = vand.u32 %v1416, 4294901760
        %v1418 = vsub.f32 %v1416, %v1417
        %v1419 = vand.u32 %v1418, 4294901760
        %1420 = vmatpush.msra.mxu0 %v1419
        %v1421 = vand.u32 %v1108, 4294901760
        %v1422 = vsub.f32 %v1108, %v1421
        %v1423 = vand.u32 %v1422, 4294901760
        %v1424 = vsub.f32 %v1422, %v1423
        %v1425 = vand.u32 %v1424, 4294901760
        %1426 = vmatpush.msra.mxu0 %v1425
        %v1427 = vand.u32 %v1105, 4294901760
        %v1428 = vsub.f32 %v1105, %v1427
        %v1429 = vand.u32 %v1428, 4294901760
        %v1430 = vsub.f32 %v1428, %v1429
        %v1431 = vand.u32 %v1430, 4294901760
        %1432 = vmatpush.msra.mxu0 %v1431
        %v1433 = vand.u32 %v1102, 4294901760
        %v1434 = vsub.f32 %v1102, %v1433
        %v1435 = vand.u32 %v1434, 4294901760
        %v1436 = vsub.f32 %v1434, %v1435
        %v1437 = vand.u32 %v1436, 4294901760
        %1438 = vmatpush.msra.mxu0 %v1437
        %v1439 = vand.u32 %v1078, 4294901760
        %1440 = vmatmul.f32.gmra.mxu0 %v1439
        %v1441 = vpop.f32.mrf.mxu0
        %v1442 = vadd.f32 %v1285, %v1441
        %v1443 = vand.u32 %v1080, 4294901760
        %1444 = vmatmul.f32.gmra.mxu0 %v1443
        %v1445 = vpop.f32.mrf.mxu0
        %v1446 = vadd.f32 %v1293, %v1445
        %v1447 = vand.u32 %v1082, 4294901760
        %1448 = vmatmul.f32.gmra.mxu0 %v1447
        %v1449 = vpop.f32.mrf.mxu0
        %v1450 = vadd.f32 %v1301, %v1449
        %v1451 = vand.u32 %v1084, 4294901760
        %1452 = vmatmul.f32.gmra.mxu0 %v1451
        %v1453 = vpop.f32.mrf.mxu0
        %v1454 = vadd.f32 %v1309, %v1453
        %v1455 = vand.u32 %v1086, 4294901760
        %1456 = vmatmul.f32.gmra.mxu0 %v1455
        %v1457 = vpop.f32.mrf.mxu0
        %v1458 = vadd.f32 %v1317, %v1457
        %v1459 = vand.u32 %v1088, 4294901760
        %1460 = vmatmul.f32.gmra.mxu0 %v1459
        %v1461 = vpop.f32.mrf.mxu0
        %v1462 = vadd.f32 %v1325, %v1461
        %v1463 = vand.u32 %v1090, 4294901760
        %1464 = vmatmul.f32.gmra.mxu0 %v1463
        %v1465 = vpop.f32.mrf.mxu0
        %v1466 = vadd.f32 %v1333, %v1465
        %v1467 = vand.u32 %v1092, 4294901760
        %1468 = vmatmul.f32.gmra.mxu0 %v1467
        %v1469 = vpop.f32.mrf.mxu0
        %v1470 = vadd.f32 %v1341, %v1469
        %1471 = vdwg.mxu0
        %v1472 = vand.u32 %v1147, 4294901760
        %v1473 = vsub.f32 %v1147, %v1472
        %1474 = vmatpush.msra.mxu0 %v1473
        %v1475 = vand.u32 %v1144, 4294901760
        %v1476 = vsub.f32 %v1144, %v1475
        %1477 = vmatpush.msra.mxu0 %v1476
        %v1478 = vand.u32 %v1141, 4294901760
        %v1479 = vsub.f32 %v1141, %v1478
        %1480 = vmatpush.msra.mxu0 %v1479
        %v1481 = vand.u32 %v1138, 4294901760
        %v1482 = vsub.f32 %v1138, %v1481
        %1483 = vmatpush.msra.mxu0 %v1482
        %v1484 = vand.u32 %v1135, 4294901760
        %v1485 = vsub.f32 %v1135, %v1484
        %1486 = vmatpush.msra.mxu0 %v1485
        %v1487 = vand.u32 %v1132, 4294901760
        %v1488 = vsub.f32 %v1132, %v1487
        %1489 = vmatpush.msra.mxu0 %v1488
        %v1490 = vand.u32 %v1129, 4294901760
        %v1491 = vsub.f32 %v1129, %v1490
        %1492 = vmatpush.msra.mxu0 %v1491
        %v1493 = vand.u32 %v1126, 4294901760
        %v1494 = vsub.f32 %v1126, %v1493
        %1495 = vmatpush.msra.mxu0 %v1494
        %v1496 = vand.u32 %v1123, 4294901760
        %v1497 = vsub.f32 %v1123, %v1496
        %1498 = vmatpush.msra.mxu0 %v1497
        %v1499 = vand.u32 %v1120, 4294901760
        %v1500 = vsub.f32 %v1120, %v1499
        %1501 = vmatpush.msra.mxu0 %v1500
        %v1502 = vand.u32 %v1117, 4294901760
        %v1503 = vsub.f32 %v1117, %v1502
        %1504 = vmatpush.msra.mxu0 %v1503
        %v1505 = vand.u32 %v1114, 4294901760
        %v1506 = vsub.f32 %v1114, %v1505
        %1507 = vmatpush.msra.mxu0 %v1506
        %v1508 = vand.u32 %v1111, 4294901760
        %v1509 = vsub.f32 %v1111, %v1508
        %1510 = vmatpush.msra.mxu0 %v1509
        %v1511 = vand.u32 %v1108, 4294901760
        %v1512 = vsub.f32 %v1108, %v1511
        %1513 = vmatpush.msra.mxu0 %v1512
        %v1514 = vand.u32 %v1105, 4294901760
        %v1515 = vsub.f32 %v1105, %v1514
        %1516 = vmatpush.msra.mxu0 %v1515
        %v1517 = vand.u32 %v1102, 4294901760
        %v1518 = vsub.f32 %v1102, %v1517
        %1519 = vmatpush.msra.mxu0 %v1518
        %v1520 = vand.u32 %v1078, 4294901760
        %v1521 = vsub.f32 %v1078, %v1520
        %1522 = vmatmul.f32.gmra.mxu0 %v1521
        %v1523 = vpop.f32.mrf.mxu0
        %v1524 = vadd.f32 %v1442, %v1523
        %v1525 = vand.u32 %v1080, 4294901760
        %v1526 = vsub.f32 %v1080, %v1525
        %1527 = vmatmul.f32.gmra.mxu0 %v1526
        %v1528 = vpop.f32.mrf.mxu0
        %v1529 = vadd.f32 %v1446, %v1528
        %v1530 = vand.u32 %v1082, 4294901760
        %v1531 = vsub.f32 %v1082, %v1530
        %1532 = vmatmul.f32.gmra.mxu0 %v1531
        %v1533 = vpop.f32.mrf.mxu0
        %v1534 = vadd.f32 %v1450, %v1533
        %v1535 = vand.u32 %v1084, 4294901760
        %v1536 = vsub.f32 %v1084, %v1535
        %1537 = vmatmul.f32.gmra.mxu0 %v1536
        %v1538 = vpop.f32.mrf.mxu0
        %v1539 = vadd.f32 %v1454, %v1538
        %v1540 = vand.u32 %v1086, 4294901760
        %v1541 = vsub.f32 %v1086, %v1540
        %1542 = vmatmul.f32.gmra.mxu0 %v1541
        %v1543 = vpop.f32.mrf.mxu0
        %v1544 = vadd.f32 %v1458, %v1543
        %v1545 = vand.u32 %v1088, 4294901760
        %v1546 = vsub.f32 %v1088, %v1545
        %1547 = vmatmul.f32.gmra.mxu0 %v1546
        %v1548 = vpop.f32.mrf.mxu0
        %v1549 = vadd.f32 %v1462, %v1548
        %v1550 = vand.u32 %v1090, 4294901760
        %v1551 = vsub.f32 %v1090, %v1550
        %1552 = vmatmul.f32.gmra.mxu0 %v1551
        %v1553 = vpop.f32.mrf.mxu0
        %v1554 = vadd.f32 %v1466, %v1553
        %v1555 = vand.u32 %v1092, 4294901760
        %v1556 = vsub.f32 %v1092, %v1555
        %1557 = vmatmul.f32.gmra.mxu0 %v1556
        %v1558 = vpop.f32.mrf.mxu0
        %v1559 = vadd.f32 %v1470, %v1558
        %1560 = vdwg.mxu0
        %v1561 = vand.u32 %v1147, 4294901760
        %1562 = vmatpush.msra.mxu0 %v1561
        %v1563 = vand.u32 %v1144, 4294901760
        %1564 = vmatpush.msra.mxu0 %v1563
        %v1565 = vand.u32 %v1141, 4294901760
        %1566 = vmatpush.msra.mxu0 %v1565
        %v1567 = vand.u32 %v1138, 4294901760
        %1568 = vmatpush.msra.mxu0 %v1567
        %v1569 = vand.u32 %v1135, 4294901760
        %1570 = vmatpush.msra.mxu0 %v1569
        %v1571 = vand.u32 %v1132, 4294901760
        %1572 = vmatpush.msra.mxu0 %v1571
        %v1573 = vand.u32 %v1129, 4294901760
        %1574 = vmatpush.msra.mxu0 %v1573
        %v1575 = vand.u32 %v1126, 4294901760
        %1576 = vmatpush.msra.mxu0 %v1575
        %v1577 = vand.u32 %v1123, 4294901760
        %1578 = vmatpush.msra.mxu0 %v1577
        %v1579 = vand.u32 %v1120, 4294901760
        %1580 = vmatpush.msra.mxu0 %v1579
        %v1581 = vand.u32 %v1117, 4294901760
        %1582 = vmatpush.msra.mxu0 %v1581
        %v1583 = vand.u32 %v1114, 4294901760
        %1584 = vmatpush.msra.mxu0 %v1583
        %v1585 = vand.u32 %v1111, 4294901760
        %1586 = vmatpush.msra.mxu0 %v1585
        %v1587 = vand.u32 %v1108, 4294901760
        %1588 = vmatpush.msra.mxu0 %v1587
        %v1589 = vand.u32 %v1105, 4294901760
        %1590 = vmatpush.msra.mxu0 %v1589
        %v1591 = vand.u32 %v1102, 4294901760
        %1592 = vmatpush.msra.mxu0 %v1591
        %v1593 = vand.u32 %v1078, 4294901760
        %v1594 = vsub.f32 %v1078, %v1593
        %v1595 = vand.u32 %v1594, 4294901760
        %1596 = vmatmul.f32.gmra.mxu0 %v1595
        %v1597 = vpop.f32.mrf.mxu0
        %v1598 = vadd.f32 %v1524, %v1597
        %v1599 = vand.u32 %v1080, 4294901760
        %v1600 = vsub.f32 %v1080, %v1599
        %v1601 = vand.u32 %v1600, 4294901760
        %1602 = vmatmul.f32.gmra.mxu0 %v1601
        %v1603 = vpop.f32.mrf.mxu0
        %v1604 = vadd.f32 %v1529, %v1603
        %v1605 = vand.u32 %v1082, 4294901760
        %v1606 = vsub.f32 %v1082, %v1605
        %v1607 = vand.u32 %v1606, 4294901760
        %1608 = vmatmul.f32.gmra.mxu0 %v1607
        %v1609 = vpop.f32.mrf.mxu0
        %v1610 = vadd.f32 %v1534, %v1609
        %v1611 = vand.u32 %v1084, 4294901760
        %v1612 = vsub.f32 %v1084, %v1611
        %v1613 = vand.u32 %v1612, 4294901760
        %1614 = vmatmul.f32.gmra.mxu0 %v1613
        %v1615 = vpop.f32.mrf.mxu0
        %v1616 = vadd.f32 %v1539, %v1615
        %v1617 = vand.u32 %v1086, 4294901760
        %v1618 = vsub.f32 %v1086, %v1617
        %v1619 = vand.u32 %v1618, 4294901760
        %1620 = vmatmul.f32.gmra.mxu0 %v1619
        %v1621 = vpop.f32.mrf.mxu0
        %v1622 = vadd.f32 %v1544, %v1621
        %v1623 = vand.u32 %v1088, 4294901760
        %v1624 = vsub.f32 %v1088, %v1623
        %v1625 = vand.u32 %v1624, 4294901760
        %1626 = vmatmul.f32.gmra.mxu0 %v1625
        %v1627 = vpop.f32.mrf.mxu0
        %v1628 = vadd.f32 %v1549, %v1627
        %v1629 = vand.u32 %v1090, 4294901760
        %v1630 = vsub.f32 %v1090, %v1629
        %v1631 = vand.u32 %v1630, 4294901760
        %1632 = vmatmul.f32.gmra.mxu0 %v1631
        %v1633 = vpop.f32.mrf.mxu0
        %v1634 = vadd.f32 %v1554, %v1633
        %v1635 = vand.u32 %v1092, 4294901760
        %v1636 = vsub.f32 %v1092, %v1635
        %v1637 = vand.u32 %v1636, 4294901760
        %1638 = vmatmul.f32.gmra.mxu0 %v1637
        %v1639 = vpop.f32.mrf.mxu0
        %v1640 = vadd.f32 %v1559, %v1639
        %1641 = vdwg.mxu0
        %v1642 = vand.u32 %v1147, 4294901760
        %v1643 = vsub.f32 %v1147, %v1642
        %v1644 = vand.u32 %v1643, 4294901760
        %1645 = vmatpush.msra.mxu0 %v1644
        %v1646 = vand.u32 %v1144, 4294901760
        %v1647 = vsub.f32 %v1144, %v1646
        %v1648 = vand.u32 %v1647, 4294901760
        %1649 = vmatpush.msra.mxu0 %v1648
        %v1650 = vand.u32 %v1141, 4294901760
        %v1651 = vsub.f32 %v1141, %v1650
        %v1652 = vand.u32 %v1651, 4294901760
        %1653 = vmatpush.msra.mxu0 %v1652
        %v1654 = vand.u32 %v1138, 4294901760
        %v1655 = vsub.f32 %v1138, %v1654
        %v1656 = vand.u32 %v1655, 4294901760
        %1657 = vmatpush.msra.mxu0 %v1656
        %v1658 = vand.u32 %v1135, 4294901760
        %v1659 = vsub.f32 %v1135, %v1658
        %v1660 = vand.u32 %v1659, 4294901760
        %1661 = vmatpush.msra.mxu0 %v1660
        %v1662 = vand.u32 %v1132, 4294901760
        %v1663 = vsub.f32 %v1132, %v1662
        %v1664 = vand.u32 %v1663, 4294901760
        %1665 = vmatpush.msra.mxu0 %v1664
        %v1666 = vand.u32 %v1129, 4294901760
        %v1667 = vsub.f32 %v1129, %v1666
        %v1668 = vand.u32 %v1667, 4294901760
        %1669 = vmatpush.msra.mxu0 %v1668
        %v1670 = vand.u32 %v1126, 4294901760
        %v1671 = vsub.f32 %v1126, %v1670
        %v1672 = vand.u32 %v1671, 4294901760
        %1673 = vmatpush.msra.mxu0 %v1672
        %v1674 = vand.u32 %v1123, 4294901760
        %v1675 = vsub.f32 %v1123, %v1674
        %v1676 = vand.u32 %v1675, 4294901760
        %1677 = vmatpush.msra.mxu0 %v1676
        %v1678 = vand.u32 %v1120, 4294901760
        %v1679 = vsub.f32 %v1120, %v1678
        %v1680 = vand.u32 %v1679, 4294901760
        %1681 = vmatpush.msra.mxu0 %v1680
        %v1682 = vand.u32 %v1117, 4294901760
        %v1683 = vsub.f32 %v1117, %v1682
        %v1684 = vand.u32 %v1683, 4294901760
        %1685 = vmatpush.msra.mxu0 %v1684
        %v1686 = vand.u32 %v1114, 4294901760
        %v1687 = vsub.f32 %v1114, %v1686
        %v1688 = vand.u32 %v1687, 4294901760
        %1689 = vmatpush.msra.mxu0 %v1688
        %v1690 = vand.u32 %v1111, 4294901760
        %v1691 = vsub.f32 %v1111, %v1690
        %v1692 = vand.u32 %v1691, 4294901760
        %1693 = vmatpush.msra.mxu0 %v1692
        %v1694 = vand.u32 %v1108, 4294901760
        %v1695 = vsub.f32 %v1108, %v1694
        %v1696 = vand.u32 %v1695, 4294901760
        %1697 = vmatpush.msra.mxu0 %v1696
        %v1698 = vand.u32 %v1105, 4294901760
        %v1699 = vsub.f32 %v1105, %v1698
        %v1700 = vand.u32 %v1699, 4294901760
        %1701 = vmatpush.msra.mxu0 %v1700
        %v1702 = vand.u32 %v1102, 4294901760
        %v1703 = vsub.f32 %v1102, %v1702
        %v1704 = vand.u32 %v1703, 4294901760
        %1705 = vmatpush.msra.mxu0 %v1704
        %v1706 = vand.u32 %v1078, 4294901760
        %1707 = vmatmul.f32.gmra.mxu0 %v1706
        %v1708 = vpop.f32.mrf.mxu0
        %v1709 = vadd.f32 %v1598, %v1708
        %v1710 = vand.u32 %v1080, 4294901760
        %1711 = vmatmul.f32.gmra.mxu0 %v1710
        %v1712 = vpop.f32.mrf.mxu0
        %v1713 = vadd.f32 %v1604, %v1712
        %v1714 = vand.u32 %v1082, 4294901760
        %1715 = vmatmul.f32.gmra.mxu0 %v1714
        %v1716 = vpop.f32.mrf.mxu0
        %v1717 = vadd.f32 %v1610, %v1716
        %v1718 = vand.u32 %v1084, 4294901760
        %1719 = vmatmul.f32.gmra.mxu0 %v1718
        %v1720 = vpop.f32.mrf.mxu0
        %v1721 = vadd.f32 %v1616, %v1720
        %v1722 = vand.u32 %v1086, 4294901760
        %1723 = vmatmul.f32.gmra.mxu0 %v1722
        %v1724 = vpop.f32.mrf.mxu0
        %v1725 = vadd.f32 %v1622, %v1724
        %v1726 = vand.u32 %v1088, 4294901760
        %1727 = vmatmul.f32.gmra.mxu0 %v1726
        %v1728 = vpop.f32.mrf.mxu0
        %v1729 = vadd.f32 %v1628, %v1728
        %v1730 = vand.u32 %v1090, 4294901760
        %1731 = vmatmul.f32.gmra.mxu0 %v1730
        %v1732 = vpop.f32.mrf.mxu0
        %v1733 = vadd.f32 %v1634, %v1732
        %v1734 = vand.u32 %v1092, 4294901760
        %1735 = vmatmul.f32.gmra.mxu0 %v1734
        %v1736 = vpop.f32.mrf.mxu0
        %v1737 = vadd.f32 %v1640, %v1736
        %1738 = vdwg.mxu0
        %v1739 = vand.u32 %v1147, 4294901760
        %1740 = vmatpush.msra.mxu0 %v1739
        %v1741 = vand.u32 %v1144, 4294901760
        %1742 = vmatpush.msra.mxu0 %v1741
        %v1743 = vand.u32 %v1141, 4294901760
        %1744 = vmatpush.msra.mxu0 %v1743
        %v1745 = vand.u32 %v1138, 4294901760
        %1746 = vmatpush.msra.mxu0 %v1745
        %v1747 = vand.u32 %v1135, 4294901760
        %1748 = vmatpush.msra.mxu0 %v1747
        %v1749 = vand.u32 %v1132, 4294901760
        %1750 = vmatpush.msra.mxu0 %v1749
        %v1751 = vand.u32 %v1129, 4294901760
        %1752 = vmatpush.msra.mxu0 %v1751
        %v1753 = vand.u32 %v1126, 4294901760
        %1754 = vmatpush.msra.mxu0 %v1753
        %v1755 = vand.u32 %v1123, 4294901760
        %1756 = vmatpush.msra.mxu0 %v1755
        %v1757 = vand.u32 %v1120, 4294901760
        %1758 = vmatpush.msra.mxu0 %v1757
        %v1759 = vand.u32 %v1117, 4294901760
        %1760 = vmatpush.msra.mxu0 %v1759
        %v1761 = vand.u32 %v1114, 4294901760
        %1762 = vmatpush.msra.mxu0 %v1761
        %v1763 = vand.u32 %v1111, 4294901760
        %1764 = vmatpush.msra.mxu0 %v1763
        %v1765 = vand.u32 %v1108, 4294901760
        %1766 = vmatpush.msra.mxu0 %v1765
        %v1767 = vand.u32 %v1105, 4294901760
        %1768 = vmatpush.msra.mxu0 %v1767
        %v1769 = vand.u32 %v1102, 4294901760
        %1770 = vmatpush.msra.mxu0 %v1769
        %v1771 = vand.u32 %v1078, 4294901760
        %1772 = vmatmul.f32.gmra.mxu0 %v1771
        %v1773 = vpop.f32.mrf.mxu0
        %v1774 = vadd.f32 %v1709, %v1773
        %v1775 = vand.u32 %v1080, 4294901760
        %1776 = vmatmul.f32.gmra.mxu0 %v1775
        %v1777 = vpop.f32.mrf.mxu0
        %v1778 = vadd.f32 %v1713, %v1777
        %v1779 = vand.u32 %v1082, 4294901760
        %1780 = vmatmul.f32.gmra.mxu0 %v1779
        %v1781 = vpop.f32.mrf.mxu0
        %v1782 = vadd.f32 %v1717, %v1781
        %v1783 = vand.u32 %v1084, 4294901760
        %1784 = vmatmul.f32.gmra.mxu0 %v1783
        %v1785 = vpop.f32.mrf.mxu0
        %v1786 = vadd.f32 %v1721, %v1785
        %v1787 = vand.u32 %v1086, 4294901760
        %1788 = vmatmul.f32.gmra.mxu0 %v1787
        %v1789 = vpop.f32.mrf.mxu0
        %v1790 = vadd.f32 %v1725, %v1789
        %v1791 = vand.u32 %v1088, 4294901760
        %1792 = vmatmul.f32.gmra.mxu0 %v1791
        %v1793 = vpop.f32.mrf.mxu0
        %v1794 = vadd.f32 %v1729, %v1793
        %v1795 = vand.u32 %v1090, 4294901760
        %1796 = vmatmul.f32.gmra.mxu0 %v1795
        %v1797 = vpop.f32.mrf.mxu0
        %v1798 = vadd.f32 %v1733, %v1797
        %v1799 = vand.u32 %v1092, 4294901760
        %1800 = vmatmul.f32.gmra.mxu0 %v1799
        %v1801 = vpop.f32.mrf.mxu0
        %v1802 = vadd.f32 %v1737, %v1801
        %1803 = vdwg.mxu0
        %v1804 = vand.u32 %v1195, 4294901760
        %1805 = vmatpush.msra.mxu0 %v1804
        %v1806 = vand.u32 %v1192, 4294901760
        %1807 = vmatpush.msra.mxu0 %v1806
        %v1808 = vand.u32 %v1189, 4294901760
        %1809 = vmatpush.msra.mxu0 %v1808
        %v1810 = vand.u32 %v1186, 4294901760
        %1811 = vmatpush.msra.mxu0 %v1810
        %v1812 = vand.u32 %v1183, 4294901760
        %1813 = vmatpush.msra.mxu0 %v1812
        %v1814 = vand.u32 %v1180, 4294901760
        %1815 = vmatpush.msra.mxu0 %v1814
        %v1816 = vand.u32 %v1177, 4294901760
        %1817 = vmatpush.msra.mxu0 %v1816
        %v1818 = vand.u32 %v1174, 4294901760
        %1819 = vmatpush.msra.mxu0 %v1818
        %v1820 = vand.u32 %v1171, 4294901760
        %1821 = vmatpush.msra.mxu0 %v1820
        %v1822 = vand.u32 %v1168, 4294901760
        %1823 = vmatpush.msra.mxu0 %v1822
        %v1824 = vand.u32 %v1165, 4294901760
        %1825 = vmatpush.msra.mxu0 %v1824
        %v1826 = vand.u32 %v1162, 4294901760
        %1827 = vmatpush.msra.mxu0 %v1826
        %v1828 = vand.u32 %v1159, 4294901760
        %1829 = vmatpush.msra.mxu0 %v1828
        %v1830 = vand.u32 %v1156, 4294901760
        %1831 = vmatpush.msra.mxu0 %v1830
        %v1832 = vand.u32 %v1153, 4294901760
        %1833 = vmatpush.msra.mxu0 %v1832
        %v1834 = vand.u32 %v1150, 4294901760
        %1835 = vmatpush.msra.mxu0 %v1834
        %v1836 = vand.u32 %v1079, 4294901760
        %v1837 = vsub.f32 %v1079, %v1836
        %v1838 = vand.u32 %v1837, 4294901760
        %v1839 = vsub.f32 %v1837, %v1838
        %v1840 = vand.u32 %v1839, 4294901760
        %1841 = vmatmul.f32.gmra.mxu0 %v1840
        %v1842 = vpop.f32.mrf.mxu0
        %v1843 = vadd.f32 %v1774, %v1842
        %v1844 = vand.u32 %v1081, 4294901760
        %v1845 = vsub.f32 %v1081, %v1844
        %v1846 = vand.u32 %v1845, 4294901760
        %v1847 = vsub.f32 %v1845, %v1846
        %v1848 = vand.u32 %v1847, 4294901760
        %1849 = vmatmul.f32.gmra.mxu0 %v1848
        %v1850 = vpop.f32.mrf.mxu0
        %v1851 = vadd.f32 %v1778, %v1850
        %v1852 = vand.u32 %v1083, 4294901760
        %v1853 = vsub.f32 %v1083, %v1852
        %v1854 = vand.u32 %v1853, 4294901760
        %v1855 = vsub.f32 %v1853, %v1854
        %v1856 = vand.u32 %v1855, 4294901760
        %1857 = vmatmul.f32.gmra.mxu0 %v1856
        %v1858 = vpop.f32.mrf.mxu0
        %v1859 = vadd.f32 %v1782, %v1858
        %v1860 = vand.u32 %v1085, 4294901760
        %v1861 = vsub.f32 %v1085, %v1860
        %v1862 = vand.u32 %v1861, 4294901760
        %v1863 = vsub.f32 %v1861, %v1862
        %v1864 = vand.u32 %v1863, 4294901760
        %1865 = vmatmul.f32.gmra.mxu0 %v1864
        %v1866 = vpop.f32.mrf.mxu0
        %v1867 = vadd.f32 %v1786, %v1866
        %v1868 = vand.u32 %v1087, 4294901760
        %v1869 = vsub.f32 %v1087, %v1868
        %v1870 = vand.u32 %v1869, 4294901760
        %v1871 = vsub.f32 %v1869, %v1870
        %v1872 = vand.u32 %v1871, 4294901760
        %1873 = vmatmul.f32.gmra.mxu0 %v1872
        %v1874 = vpop.f32.mrf.mxu0
        %v1875 = vadd.f32 %v1790, %v1874
        %v1876 = vand.u32 %v1089, 4294901760
        %v1877 = vsub.f32 %v1089, %v1876
        %v1878 = vand.u32 %v1877, 4294901760
        %v1879 = vsub.f32 %v1877, %v1878
        %v1880 = vand.u32 %v1879, 4294901760
        %1881 = vmatmul.f32.gmra.mxu0 %v1880
        %v1882 = vpop.f32.mrf.mxu0
        %v1883 = vadd.f32 %v1794, %v1882
        %v1884 = vand.u32 %v1091, 4294901760
        %v1885 = vsub.f32 %v1091, %v1884
        %v1886 = vand.u32 %v1885, 4294901760
        %v1887 = vsub.f32 %v1885, %v1886
        %v1888 = vand.u32 %v1887, 4294901760
        %1889 = vmatmul.f32.gmra.mxu0 %v1888
        %v1890 = vpop.f32.mrf.mxu0
        %v1891 = vadd.f32 %v1798, %v1890
        %v1892 = vand.u32 %v1093, 4294901760
        %v1893 = vsub.f32 %v1093, %v1892
        %v1894 = vand.u32 %v1893, 4294901760
        %v1895 = vsub.f32 %v1893, %v1894
        %v1896 = vand.u32 %v1895, 4294901760
        %1897 = vmatmul.f32.gmra.mxu0 %v1896
        %v1898 = vpop.f32.mrf.mxu0
        %v1899 = vadd.f32 %v1802, %v1898
        %1900 = vdwg.mxu0
        %v1901 = vand.u32 %v1195, 4294901760
        %v1902 = vsub.f32 %v1195, %v1901
        %v1903 = vand.u32 %v1902, 4294901760
        %v1904 = vsub.f32 %v1902, %v1903
        %v1905 = vand.u32 %v1904, 4294901760
        %1906 = vmatpush.msra.mxu0 %v1905
        %v1907 = vand.u32 %v1192, 4294901760
        %v1908 = vsub.f32 %v1192, %v1907
        %v1909 = vand.u32 %v1908, 4294901760
        %v1910 = vsub.f32 %v1908, %v1909
        %v1911 = vand.u32 %v1910, 4294901760
        %1912 = vmatpush.msra.mxu0 %v1911
        %v1913 = vand.u32 %v1189, 4294901760
        %v1914 = vsub.f32 %v1189, %v1913
        %v1915 = vand.u32 %v1914, 4294901760
        %v1916 = vsub.f32 %v1914, %v1915
        %v1917 = vand.u32 %v1916, 4294901760
        %1918 = vmatpush.msra.mxu0 %v1917
        %v1919 = vand.u32 %v1186, 4294901760
        %v1920 = vsub.f32 %v1186, %v1919
        %v1921 = vand.u32 %v1920, 4294901760
        %v1922 = vsub.f32 %v1920, %v1921
        %v1923 = vand.u32 %v1922, 4294901760
        %1924 = vmatpush.msra.mxu0 %v1923
        %v1925 = vand.u32 %v1183, 4294901760
        %v1926 = vsub.f32 %v1183, %v1925
        %v1927 = vand.u32 %v1926, 4294901760
        %v1928 = vsub.f32 %v1926, %v1927
        %v1929 = vand.u32 %v1928, 4294901760
        %1930 = vmatpush.msra.mxu0 %v1929
        %v1931 = vand.u32 %v1180, 4294901760
        %v1932 = vsub.f32 %v1180, %v1931
        %v1933 = vand.u32 %v1932, 4294901760
        %v1934 = vsub.f32 %v1932, %v1933
        %v1935 = vand.u32 %v1934, 4294901760
        %1936 = vmatpush.msra.mxu0 %v1935
        %v1937 = vand.u32 %v1177, 4294901760
        %v1938 = vsub.f32 %v1177, %v1937
        %v1939 = vand.u32 %v1938, 4294901760
        %v1940 = vsub.f32 %v1938, %v1939
        %v1941 = vand.u32 %v1940, 4294901760
        %1942 = vmatpush.msra.mxu0 %v1941
        %v1943 = vand.u32 %v1174, 4294901760
        %v1944 = vsub.f32 %v1174, %v1943
        %v1945 = vand.u32 %v1944, 4294901760
        %v1946 = vsub.f32 %v1944, %v1945
        %v1947 = vand.u32 %v1946, 4294901760
        %1948 = vmatpush.msra.mxu0 %v1947
        %v1949 = vand.u32 %v1171, 4294901760
        %v1950 = vsub.f32 %v1171, %v1949
        %v1951 = vand.u32 %v1950, 4294901760
        %v1952 = vsub.f32 %v1950, %v1951
        %v1953 = vand.u32 %v1952, 4294901760
        %1954 = vmatpush.msra.mxu0 %v1953
        %v1955 = vand.u32 %v1168, 4294901760
        %v1956 = vsub.f32 %v1168, %v1955
        %v1957 = vand.u32 %v1956, 4294901760
        %v1958 = vsub.f32 %v1956, %v1957
        %v1959 = vand.u32 %v1958, 4294901760
        %1960 = vmatpush.msra.mxu0 %v1959
        %v1961 = vand.u32 %v1165, 4294901760
        %v1962 = vsub.f32 %v1165, %v1961
        %v1963 = vand.u32 %v1962, 4294901760
        %v1964 = vsub.f32 %v1962, %v1963
        %v1965 = vand.u32 %v1964, 4294901760
        %1966 = vmatpush.msra.mxu0 %v1965
        %v1967 = vand.u32 %v1162, 4294901760
        %v1968 = vsub.f32 %v1162, %v1967
        %v1969 = vand.u32 %v1968, 4294901760
        %v1970 = vsub.f32 %v1968, %v1969
        %v1971 = vand.u32 %v1970, 4294901760
        %1972 = vmatpush.msra.mxu0 %v1971
        %v1973 = vand.u32 %v1159, 4294901760
        %v1974 = vsub.f32 %v1159, %v1973
        %v1975 = vand.u32 %v1974, 4294901760
        %v1976 = vsub.f32 %v1974, %v1975
        %v1977 = vand.u32 %v1976, 4294901760
        %1978 = vmatpush.msra.mxu0 %v1977
        %v1979 = vand.u32 %v1156, 4294901760
        %v1980 = vsub.f32 %v1156, %v1979
        %v1981 = vand.u32 %v1980, 4294901760
        %v1982 = vsub.f32 %v1980, %v1981
        %v1983 = vand.u32 %v1982, 4294901760
        %1984 = vmatpush.msra.mxu0 %v1983
        %v1985 = vand.u32 %v1153, 4294901760
        %v1986 = vsub.f32 %v1153, %v1985
        %v1987 = vand.u32 %v1986, 4294901760
        %v1988 = vsub.f32 %v1986, %v1987
        %v1989 = vand.u32 %v1988, 4294901760
        %1990 = vmatpush.msra.mxu0 %v1989
        %v1991 = vand.u32 %v1150, 4294901760
        %v1992 = vsub.f32 %v1150, %v1991
        %v1993 = vand.u32 %v1992, 4294901760
        %v1994 = vsub.f32 %v1992, %v1993
        %v1995 = vand.u32 %v1994, 4294901760
        %1996 = vmatpush.msra.mxu0 %v1995
        %v1997 = vand.u32 %v1079, 4294901760
        %1998 = vmatmul.f32.gmra.mxu0 %v1997
        %v1999 = vpop.f32.mrf.mxu0
        %v2000 = vadd.f32 %v1843, %v1999
        %v2001 = vand.u32 %v1081, 4294901760
        %2002 = vmatmul.f32.gmra.mxu0 %v2001
        %v2003 = vpop.f32.mrf.mxu0
        %v2004 = vadd.f32 %v1851, %v2003
        %v2005 = vand.u32 %v1083, 4294901760
        %2006 = vmatmul.f32.gmra.mxu0 %v2005
        %v2007 = vpop.f32.mrf.mxu0
        %v2008 = vadd.f32 %v1859, %v2007
        %v2009 = vand.u32 %v1085, 4294901760
        %2010 = vmatmul.f32.gmra.mxu0 %v2009
        %v2011 = vpop.f32.mrf.mxu0
        %v2012 = vadd.f32 %v1867, %v2011
        %v2013 = vand.u32 %v1087, 4294901760
        %2014 = vmatmul.f32.gmra.mxu0 %v2013
        %v2015 = vpop.f32.mrf.mxu0
        %v2016 = vadd.f32 %v1875, %v2015
        %v2017 = vand.u32 %v1089, 4294901760
        %2018 = vmatmul.f32.gmra.mxu0 %v2017
        %v2019 = vpop.f32.mrf.mxu0
        %v2020 = vadd.f32 %v1883, %v2019
        %v2021 = vand.u32 %v1091, 4294901760
        %2022 = vmatmul.f32.gmra.mxu0 %v2021
        %v2023 = vpop.f32.mrf.mxu0
        %v2024 = vadd.f32 %v1891, %v2023
        %v2025 = vand.u32 %v1093, 4294901760
        %2026 = vmatmul.f32.gmra.mxu0 %v2025
        %v2027 = vpop.f32.mrf.mxu0
        %v2028 = vadd.f32 %v1899, %v2027
        %2029 = vdwg.mxu0
        %v2030 = vand.u32 %v1195, 4294901760
        %v2031 = vsub.f32 %v1195, %v2030
        %2032 = vmatpush.msra.mxu0 %v2031
        %v2033 = vand.u32 %v1192, 4294901760
        %v2034 = vsub.f32 %v1192, %v2033
        %2035 = vmatpush.msra.mxu0 %v2034
        %v2036 = vand.u32 %v1189, 4294901760
        %v2037 = vsub.f32 %v1189, %v2036
        %2038 = vmatpush.msra.mxu0 %v2037
        %v2039 = vand.u32 %v1186, 4294901760
        %v2040 = vsub.f32 %v1186, %v2039
        %2041 = vmatpush.msra.mxu0 %v2040
        %v2042 = vand.u32 %v1183, 4294901760
        %v2043 = vsub.f32 %v1183, %v2042
        %2044 = vmatpush.msra.mxu0 %v2043
        %v2045 = vand.u32 %v1180, 4294901760
        %v2046 = vsub.f32 %v1180, %v2045
        %2047 = vmatpush.msra.mxu0 %v2046
        %v2048 = vand.u32 %v1177, 4294901760
        %v2049 = vsub.f32 %v1177, %v2048
        %2050 = vmatpush.msra.mxu0 %v2049
        %v2051 = vand.u32 %v1174, 4294901760
        %v2052 = vsub.f32 %v1174, %v2051
        %2053 = vmatpush.msra.mxu0 %v2052
        %v2054 = vand.u32 %v1171, 4294901760
        %v2055 = vsub.f32 %v1171, %v2054
        %2056 = vmatpush.msra.mxu0 %v2055
        %v2057 = vand.u32 %v1168, 4294901760
        %v2058 = vsub.f32 %v1168, %v2057
        %2059 = vmatpush.msra.mxu0 %v2058
        %v2060 = vand.u32 %v1165, 4294901760
        %v2061 = vsub.f32 %v1165, %v2060
        %2062 = vmatpush.msra.mxu0 %v2061
        %v2063 = vand.u32 %v1162, 4294901760
        %v2064 = vsub.f32 %v1162, %v2063
        %2065 = vmatpush.msra.mxu0 %v2064
        %v2066 = vand.u32 %v1159, 4294901760
        %v2067 = vsub.f32 %v1159, %v2066
        %2068 = vmatpush.msra.mxu0 %v2067
        %v2069 = vand.u32 %v1156, 4294901760
        %v2070 = vsub.f32 %v1156, %v2069
        %2071 = vmatpush.msra.mxu0 %v2070
        %v2072 = vand.u32 %v1153, 4294901760
        %v2073 = vsub.f32 %v1153, %v2072
        %2074 = vmatpush.msra.mxu0 %v2073
        %v2075 = vand.u32 %v1150, 4294901760
        %v2076 = vsub.f32 %v1150, %v2075
        %2077 = vmatpush.msra.mxu0 %v2076
        %v2078 = vand.u32 %v1079, 4294901760
        %v2079 = vsub.f32 %v1079, %v2078
        %2080 = vmatmul.f32.gmra.mxu0 %v2079
        %v2081 = vpop.f32.mrf.mxu0
        %v2082 = vadd.f32 %v2000, %v2081
        %v2083 = vand.u32 %v1081, 4294901760
        %v2084 = vsub.f32 %v1081, %v2083
        %2085 = vmatmul.f32.gmra.mxu0 %v2084
        %v2086 = vpop.f32.mrf.mxu0
        %v2087 = vadd.f32 %v2004, %v2086
        %v2088 = vand.u32 %v1083, 4294901760
        %v2089 = vsub.f32 %v1083, %v2088
        %2090 = vmatmul.f32.gmra.mxu0 %v2089
        %v2091 = vpop.f32.mrf.mxu0
        %v2092 = vadd.f32 %v2008, %v2091
        %v2093 = vand.u32 %v1085, 4294901760
        %v2094 = vsub.f32 %v1085, %v2093
        %2095 = vmatmul.f32.gmra.mxu0 %v2094
        %v2096 = vpop.f32.mrf.mxu0
        %v2097 = vadd.f32 %v2012, %v2096
        %v2098 = vand.u32 %v1087, 4294901760
        %v2099 = vsub.f32 %v1087, %v2098
        %2100 = vmatmul.f32.gmra.mxu0 %v2099
        %v2101 = vpop.f32.mrf.mxu0
        %v2102 = vadd.f32 %v2016, %v2101
        %v2103 = vand.u32 %v1089, 4294901760
        %v2104 = vsub.f32 %v1089, %v2103
        %2105 = vmatmul.f32.gmra.mxu0 %v2104
        %v2106 = vpop.f32.mrf.mxu0
        %v2107 = vadd.f32 %v2020, %v2106
        %v2108 = vand.u32 %v1091, 4294901760
        %v2109 = vsub.f32 %v1091, %v2108
        %2110 = vmatmul.f32.gmra.mxu0 %v2109
        %v2111 = vpop.f32.mrf.mxu0
        %v2112 = vadd.f32 %v2024, %v2111
        %v2113 = vand.u32 %v1093, 4294901760
        %v2114 = vsub.f32 %v1093, %v2113
        %2115 = vmatmul.f32.gmra.mxu0 %v2114
        %v2116 = vpop.f32.mrf.mxu0
        %v2117 = vadd.f32 %v2028, %v2116
        %2118 = vdwg.mxu0
        %v2119 = vand.u32 %v1195, 4294901760
        %2120 = vmatpush.msra.mxu0 %v2119
        %v2121 = vand.u32 %v1192, 4294901760
        %2122 = vmatpush.msra.mxu0 %v2121
        %v2123 = vand.u32 %v1189, 4294901760
        %2124 = vmatpush.msra.mxu0 %v2123
        %v2125 = vand.u32 %v1186, 4294901760
        %2126 = vmatpush.msra.mxu0 %v2125
        %v2127 = vand.u32 %v1183, 4294901760
        %2128 = vmatpush.msra.mxu0 %v2127
        %v2129 = vand.u32 %v1180, 4294901760
        %2130 = vmatpush.msra.mxu0 %v2129
        %v2131 = vand.u32 %v1177, 4294901760
        %2132 = vmatpush.msra.mxu0 %v2131
        %v2133 = vand.u32 %v1174, 4294901760
        %2134 = vmatpush.msra.mxu0 %v2133
        %v2135 = vand.u32 %v1171, 4294901760
        %2136 = vmatpush.msra.mxu0 %v2135
        %v2137 = vand.u32 %v1168, 4294901760
        %2138 = vmatpush.msra.mxu0 %v2137
        %v2139 = vand.u32 %v1165, 4294901760
        %2140 = vmatpush.msra.mxu0 %v2139
        %v2141 = vand.u32 %v1162, 4294901760
        %2142 = vmatpush.msra.mxu0 %v2141
        %v2143 = vand.u32 %v1159, 4294901760
        %2144 = vmatpush.msra.mxu0 %v2143
        %v2145 = vand.u32 %v1156, 4294901760
        %2146 = vmatpush.msra.mxu0 %v2145
        %v2147 = vand.u32 %v1153, 4294901760
        %2148 = vmatpush.msra.mxu0 %v2147
        %v2149 = vand.u32 %v1150, 4294901760
        %2150 = vmatpush.msra.mxu0 %v2149
        %v2151 = vand.u32 %v1079, 4294901760
        %v2152 = vsub.f32 %v1079, %v2151
        %v2153 = vand.u32 %v2152, 4294901760
        %2154 = vmatmul.f32.gmra.mxu0 %v2153
        %v2155 = vpop.f32.mrf.mxu0
        %v2156 = vadd.f32 %v2082, %v2155
        %v2157 = vand.u32 %v1081, 4294901760
        %v2158 = vsub.f32 %v1081, %v2157
        %v2159 = vand.u32 %v2158, 4294901760
        %2160 = vmatmul.f32.gmra.mxu0 %v2159
        %v2161 = vpop.f32.mrf.mxu0
        %v2162 = vadd.f32 %v2087, %v2161
        %v2163 = vand.u32 %v1083, 4294901760
        %v2164 = vsub.f32 %v1083, %v2163
        %v2165 = vand.u32 %v2164, 4294901760
        %2166 = vmatmul.f32.gmra.mxu0 %v2165
        %v2167 = vpop.f32.mrf.mxu0
        %v2168 = vadd.f32 %v2092, %v2167
        %v2169 = vand.u32 %v1085, 4294901760
        %v2170 = vsub.f32 %v1085, %v2169
        %v2171 = vand.u32 %v2170, 4294901760
        %2172 = vmatmul.f32.gmra.mxu0 %v2171
        %v2173 = vpop.f32.mrf.mxu0
        %v2174 = vadd.f32 %v2097, %v2173
        %v2175 = vand.u32 %v1087, 4294901760
        %v2176 = vsub.f32 %v1087, %v2175
        %v2177 = vand.u32 %v2176, 4294901760
        %2178 = vmatmul.f32.gmra.mxu0 %v2177
        %v2179 = vpop.f32.mrf.mxu0
        %v2180 = vadd.f32 %v2102, %v2179
        %v2181 = vand.u32 %v1089, 4294901760
        %v2182 = vsub.f32 %v1089, %v2181
        %v2183 = vand.u32 %v2182, 4294901760
        %2184 = vmatmul.f32.gmra.mxu0 %v2183
        %v2185 = vpop.f32.mrf.mxu0
        %v2186 = vadd.f32 %v2107, %v2185
        %v2187 = vand.u32 %v1091, 4294901760
        %v2188 = vsub.f32 %v1091, %v2187
        %v2189 = vand.u32 %v2188, 4294901760
        %2190 = vmatmul.f32.gmra.mxu0 %v2189
        %v2191 = vpop.f32.mrf.mxu0
        %v2192 = vadd.f32 %v2112, %v2191
        %v2193 = vand.u32 %v1093, 4294901760
        %v2194 = vsub.f32 %v1093, %v2193
        %v2195 = vand.u32 %v2194, 4294901760
        %2196 = vmatmul.f32.gmra.mxu0 %v2195
        %v2197 = vpop.f32.mrf.mxu0
        %v2198 = vadd.f32 %v2117, %v2197
        %2199 = vdwg.mxu0
        %v2200 = vand.u32 %v1195, 4294901760
        %v2201 = vsub.f32 %v1195, %v2200
        %v2202 = vand.u32 %v2201, 4294901760
        %2203 = vmatpush.msra.mxu0 %v2202
        %v2204 = vand.u32 %v1192, 4294901760
        %v2205 = vsub.f32 %v1192, %v2204
        %v2206 = vand.u32 %v2205, 4294901760
        %2207 = vmatpush.msra.mxu0 %v2206
        %v2208 = vand.u32 %v1189, 4294901760
        %v2209 = vsub.f32 %v1189, %v2208
        %v2210 = vand.u32 %v2209, 4294901760
        %2211 = vmatpush.msra.mxu0 %v2210
        %v2212 = vand.u32 %v1186, 4294901760
        %v2213 = vsub.f32 %v1186, %v2212
        %v2214 = vand.u32 %v2213, 4294901760
        %2215 = vmatpush.msra.mxu0 %v2214
        %v2216 = vand.u32 %v1183, 4294901760
        %v2217 = vsub.f32 %v1183, %v2216
        %v2218 = vand.u32 %v2217, 4294901760
        %2219 = vmatpush.msra.mxu0 %v2218
        %v2220 = vand.u32 %v1180, 4294901760
        %v2221 = vsub.f32 %v1180, %v2220
        %v2222 = vand.u32 %v2221, 4294901760
        %2223 = vmatpush.msra.mxu0 %v2222
        %v2224 = vand.u32 %v1177, 4294901760
        %v2225 = vsub.f32 %v1177, %v2224
        %v2226 = vand.u32 %v2225, 4294901760
        %2227 = vmatpush.msra.mxu0 %v2226
        %v2228 = vand.u32 %v1174, 4294901760
        %v2229 = vsub.f32 %v1174, %v2228
        %v2230 = vand.u32 %v2229, 4294901760
        %2231 = vmatpush.msra.mxu0 %v2230
        %v2232 = vand.u32 %v1171, 4294901760
        %v2233 = vsub.f32 %v1171, %v2232
        %v2234 = vand.u32 %v2233, 4294901760
        %2235 = vmatpush.msra.mxu0 %v2234
        %v2236 = vand.u32 %v1168, 4294901760
        %v2237 = vsub.f32 %v1168, %v2236
        %v2238 = vand.u32 %v2237, 4294901760
        %2239 = vmatpush.msra.mxu0 %v2238
        %v2240 = vand.u32 %v1165, 4294901760
        %v2241 = vsub.f32 %v1165, %v2240
        %v2242 = vand.u32 %v2241, 4294901760
        %2243 = vmatpush.msra.mxu0 %v2242
        %v2244 = vand.u32 %v1162, 4294901760
        %v2245 = vsub.f32 %v1162, %v2244
        %v2246 = vand.u32 %v2245, 4294901760
        %2247 = vmatpush.msra.mxu0 %v2246
        %v2248 = vand.u32 %v1159, 4294901760
        %v2249 = vsub.f32 %v1159, %v2248
        %v2250 = vand.u32 %v2249, 4294901760
        %2251 = vmatpush.msra.mxu0 %v2250
        %v2252 = vand.u32 %v1156, 4294901760
        %v2253 = vsub.f32 %v1156, %v2252
        %v2254 = vand.u32 %v2253, 4294901760
        %2255 = vmatpush.msra.mxu0 %v2254
        %v2256 = vand.u32 %v1153, 4294901760
        %v2257 = vsub.f32 %v1153, %v2256
        %v2258 = vand.u32 %v2257, 4294901760
        %2259 = vmatpush.msra.mxu0 %v2258
        %v2260 = vand.u32 %v1150, 4294901760
        %v2261 = vsub.f32 %v1150, %v2260
        %v2262 = vand.u32 %v2261, 4294901760
        %2263 = vmatpush.msra.mxu0 %v2262
        %v2264 = vand.u32 %v1079, 4294901760
        %2265 = vmatmul.f32.gmra.mxu0 %v2264
        %v2266 = vpop.f32.mrf.mxu0
        %v2267 = vadd.f32 %v2156, %v2266
        %v2268 = vand.u32 %v1081, 4294901760
        %2269 = vmatmul.f32.gmra.mxu0 %v2268
        %v2270 = vpop.f32.mrf.mxu0
        %v2271 = vadd.f32 %v2162, %v2270
        %v2272 = vand.u32 %v1083, 4294901760
        %2273 = vmatmul.f32.gmra.mxu0 %v2272
        %v2274 = vpop.f32.mrf.mxu0
        %v2275 = vadd.f32 %v2168, %v2274
        %v2276 = vand.u32 %v1085, 4294901760
        %2277 = vmatmul.f32.gmra.mxu0 %v2276
        %v2278 = vpop.f32.mrf.mxu0
        %v2279 = vadd.f32 %v2174, %v2278
        %v2280 = vand.u32 %v1087, 4294901760
        %2281 = vmatmul.f32.gmra.mxu0 %v2280
        %v2282 = vpop.f32.mrf.mxu0
        %v2283 = vadd.f32 %v2180, %v2282
        %v2284 = vand.u32 %v1089, 4294901760
        %2285 = vmatmul.f32.gmra.mxu0 %v2284
        %v2286 = vpop.f32.mrf.mxu0
        %v2287 = vadd.f32 %v2186, %v2286
        %v2288 = vand.u32 %v1091, 4294901760
        %2289 = vmatmul.f32.gmra.mxu0 %v2288
        %v2290 = vpop.f32.mrf.mxu0
        %v2291 = vadd.f32 %v2192, %v2290
        %v2292 = vand.u32 %v1093, 4294901760
        %2293 = vmatmul.f32.gmra.mxu0 %v2292
        %v2294 = vpop.f32.mrf.mxu0
        %v2295 = vadd.f32 %v2198, %v2294
        %2296 = vdwg.mxu0
        %v2297 = vand.u32 %v1195, 4294901760
        %2298 = vmatpush.msra.mxu0 %v2297
        %v2299 = vand.u32 %v1192, 4294901760
        %2300 = vmatpush.msra.mxu0 %v2299
        %v2301 = vand.u32 %v1189, 4294901760
        %2302 = vmatpush.msra.mxu0 %v2301
        %v2303 = vand.u32 %v1186, 4294901760
        %2304 = vmatpush.msra.mxu0 %v2303
        %v2305 = vand.u32 %v1183, 4294901760
        %2306 = vmatpush.msra.mxu0 %v2305
        %v2307 = vand.u32 %v1180, 4294901760
        %2308 = vmatpush.msra.mxu0 %v2307
        %v2309 = vand.u32 %v1177, 4294901760
        %2310 = vmatpush.msra.mxu0 %v2309
        %v2311 = vand.u32 %v1174, 4294901760
        %2312 = vmatpush.msra.mxu0 %v2311
        %v2313 = vand.u32 %v1171, 4294901760
        %2314 = vmatpush.msra.mxu0 %v2313
        %v2315 = vand.u32 %v1168, 4294901760
        %2316 = vmatpush.msra.mxu0 %v2315
        %v2317 = vand.u32 %v1165, 4294901760
        %2318 = vmatpush.msra.mxu0 %v2317
        %v2319 = vand.u32 %v1162, 4294901760
        %2320 = vmatpush.msra.mxu0 %v2319
        %v2321 = vand.u32 %v1159, 4294901760
        %2322 = vmatpush.msra.mxu0 %v2321
        %v2323 = vand.u32 %v1156, 4294901760
        %2324 = vmatpush.msra.mxu0 %v2323
        %v2325 = vand.u32 %v1153, 4294901760
        %2326 = vmatpush.msra.mxu0 %v2325
        %v2327 = vand.u32 %v1150, 4294901760
        %2328 = vmatpush.msra.mxu0 %v2327
        %v2329 = vand.u32 %v1079, 4294901760
        %2330 = vmatmul.f32.gmra.mxu0 %v2329
        %v2331 = vpop.f32.mrf.mxu0
        %v2332 = vadd.f32 %v2267, %v2331
        %v2333 = vand.u32 %v1081, 4294901760
        %2334 = vmatmul.f32.gmra.mxu0 %v2333
        %v2335 = vpop.f32.mrf.mxu0
        %v2336 = vadd.f32 %v2271, %v2335
        %v2337 = vand.u32 %v1083, 4294901760
        %2338 = vmatmul.f32.gmra.mxu0 %v2337
        %v2339 = vpop.f32.mrf.mxu0
        %v2340 = vadd.f32 %v2275, %v2339
        %v2341 = vand.u32 %v1085, 4294901760
        %2342 = vmatmul.f32.gmra.mxu0 %v2341
        %v2343 = vpop.f32.mrf.mxu0
        %v2344 = vadd.f32 %v2279, %v2343
        %v2345 = vand.u32 %v1087, 4294901760
        %2346 = vmatmul.f32.gmra.mxu0 %v2345
        %v2347 = vpop.f32.mrf.mxu0
        %v2348 = vadd.f32 %v2283, %v2347
        %v2349 = vand.u32 %v1089, 4294901760
        %2350 = vmatmul.f32.gmra.mxu0 %v2349
        %v2351 = vpop.f32.mrf.mxu0
        %v2352 = vadd.f32 %v2287, %v2351
        %v2353 = vand.u32 %v1091, 4294901760
        %2354 = vmatmul.f32.gmra.mxu0 %v2353
        %v2355 = vpop.f32.mrf.mxu0
        %v2356 = vadd.f32 %v2291, %v2355
        %v2357 = vand.u32 %v1093, 4294901760
        %2358 = vmatmul.f32.gmra.mxu0 %v2357
        %v2359 = vpop.f32.mrf.mxu0
        %v2360 = vadd.f32 %v2295, %v2359
        %2361 = vdwg.mxu0
        %v2362 = vand.u32 %v1243, 4294901760
        %2363 = vmatpush.msra.mxu0 %v2362
        %v2364 = vand.u32 %v1240, 4294901760
        %2365 = vmatpush.msra.mxu0 %v2364
        %v2366 = vand.u32 %v1237, 4294901760
        %2367 = vmatpush.msra.mxu0 %v2366
        %v2368 = vand.u32 %v1234, 4294901760
        %2369 = vmatpush.msra.mxu0 %v2368
        %v2370 = vand.u32 %v1231, 4294901760
        %2371 = vmatpush.msra.mxu0 %v2370
        %v2372 = vand.u32 %v1228, 4294901760
        %2373 = vmatpush.msra.mxu0 %v2372
        %v2374 = vand.u32 %v1225, 4294901760
        %2375 = vmatpush.msra.mxu0 %v2374
        %v2376 = vand.u32 %v1222, 4294901760
        %2377 = vmatpush.msra.mxu0 %v2376
        %v2378 = vand.u32 %v1219, 4294901760
        %2379 = vmatpush.msra.mxu0 %v2378
        %v2380 = vand.u32 %v1216, 4294901760
        %2381 = vmatpush.msra.mxu0 %v2380
        %v2382 = vand.u32 %v1213, 4294901760
        %2383 = vmatpush.msra.mxu0 %v2382
        %v2384 = vand.u32 %v1210, 4294901760
        %2385 = vmatpush.msra.mxu0 %v2384
        %v2386 = vand.u32 %v1207, 4294901760
        %2387 = vmatpush.msra.mxu0 %v2386
        %v2388 = vand.u32 %v1204, 4294901760
        %2389 = vmatpush.msra.mxu0 %v2388
        %v2390 = vand.u32 %v1201, 4294901760
        %2391 = vmatpush.msra.mxu0 %v2390
        %v2392 = vand.u32 %v1198, 4294901760
        %2393 = vmatpush.msra.mxu0 %v2392
        %v2394 = vand.u32 %v1094, 4294901760
        %v2395 = vsub.f32 %v1094, %v2394
        %v2396 = vand.u32 %v2395, 4294901760
        %v2397 = vsub.f32 %v2395, %v2396
        %v2398 = vand.u32 %v2397, 4294901760
        %2399 = vmatmul.f32.gmra.mxu0 %v2398
        %v2400 = vpop.f32.mrf.mxu0
        %v2401 = vadd.f32 %v2332, %v2400
        %v2402 = vand.u32 %v1095, 4294901760
        %v2403 = vsub.f32 %v1095, %v2402
        %v2404 = vand.u32 %v2403, 4294901760
        %v2405 = vsub.f32 %v2403, %v2404
        %v2406 = vand.u32 %v2405, 4294901760
        %2407 = vmatmul.f32.gmra.mxu0 %v2406
        %v2408 = vpop.f32.mrf.mxu0
        %v2409 = vadd.f32 %v2336, %v2408
        %v2410 = vand.u32 %v1096, 4294901760
        %v2411 = vsub.f32 %v1096, %v2410
        %v2412 = vand.u32 %v2411, 4294901760
        %v2413 = vsub.f32 %v2411, %v2412
        %v2414 = vand.u32 %v2413, 4294901760
        %2415 = vmatmul.f32.gmra.mxu0 %v2414
        %v2416 = vpop.f32.mrf.mxu0
        %v2417 = vadd.f32 %v2340, %v2416
        %v2418 = vand.u32 %v1097, 4294901760
        %v2419 = vsub.f32 %v1097, %v2418
        %v2420 = vand.u32 %v2419, 4294901760
        %v2421 = vsub.f32 %v2419, %v2420
        %v2422 = vand.u32 %v2421, 4294901760
        %2423 = vmatmul.f32.gmra.mxu0 %v2422
        %v2424 = vpop.f32.mrf.mxu0
        %v2425 = vadd.f32 %v2344, %v2424
        %v2426 = vand.u32 %v1098, 4294901760
        %v2427 = vsub.f32 %v1098, %v2426
        %v2428 = vand.u32 %v2427, 4294901760
        %v2429 = vsub.f32 %v2427, %v2428
        %v2430 = vand.u32 %v2429, 4294901760
        %2431 = vmatmul.f32.gmra.mxu0 %v2430
        %v2432 = vpop.f32.mrf.mxu0
        %v2433 = vadd.f32 %v2348, %v2432
        %v2434 = vand.u32 %v1099, 4294901760
        %v2435 = vsub.f32 %v1099, %v2434
        %v2436 = vand.u32 %v2435, 4294901760
        %v2437 = vsub.f32 %v2435, %v2436
        %v2438 = vand.u32 %v2437, 4294901760
        %2439 = vmatmul.f32.gmra.mxu0 %v2438
        %v2440 = vpop.f32.mrf.mxu0
        %v2441 = vadd.f32 %v2352, %v2440
        %v2442 = vand.u32 %v1100, 4294901760
        %v2443 = vsub.f32 %v1100, %v2442
        %v2444 = vand.u32 %v2443, 4294901760
        %v2445 = vsub.f32 %v2443, %v2444
        %v2446 = vand.u32 %v2445, 4294901760
        %2447 = vmatmul.f32.gmra.mxu0 %v2446
        %v2448 = vpop.f32.mrf.mxu0
        %v2449 = vadd.f32 %v2356, %v2448
        %v2450 = vand.u32 %v1101, 4294901760
        %v2451 = vsub.f32 %v1101, %v2450
        %v2452 = vand.u32 %v2451, 4294901760
        %v2453 = vsub.f32 %v2451, %v2452
        %v2454 = vand.u32 %v2453, 4294901760
        %2455 = vmatmul.f32.gmra.mxu0 %v2454
        %v2456 = vpop.f32.mrf.mxu0
        %v2457 = vadd.f32 %v2360, %v2456
        %2458 = vdwg.mxu0
        %v2459 = vand.u32 %v1243, 4294901760
        %v2460 = vsub.f32 %v1243, %v2459
        %v2461 = vand.u32 %v2460, 4294901760
        %v2462 = vsub.f32 %v2460, %v2461
        %v2463 = vand.u32 %v2462, 4294901760
        %2464 = vmatpush.msra.mxu0 %v2463
        %v2465 = vand.u32 %v1240, 4294901760
        %v2466 = vsub.f32 %v1240, %v2465
        %v2467 = vand.u32 %v2466, 4294901760
        %v2468 = vsub.f32 %v2466, %v2467
        %v2469 = vand.u32 %v2468, 4294901760
        %2470 = vmatpush.msra.mxu0 %v2469
        %v2471 = vand.u32 %v1237, 4294901760
        %v2472 = vsub.f32 %v1237, %v2471
        %v2473 = vand.u32 %v2472, 4294901760
        %v2474 = vsub.f32 %v2472, %v2473
        %v2475 = vand.u32 %v2474, 4294901760
        %2476 = vmatpush.msra.mxu0 %v2475
        %v2477 = vand.u32 %v1234, 4294901760
        %v2478 = vsub.f32 %v1234, %v2477
        %v2479 = vand.u32 %v2478, 4294901760
        %v2480 = vsub.f32 %v2478, %v2479
        %v2481 = vand.u32 %v2480, 4294901760
        %2482 = vmatpush.msra.mxu0 %v2481
        %v2483 = vand.u32 %v1231, 4294901760
        %v2484 = vsub.f32 %v1231, %v2483
        %v2485 = vand.u32 %v2484, 4294901760
        %v2486 = vsub.f32 %v2484, %v2485
        %v2487 = vand.u32 %v2486, 4294901760
        %2488 = vmatpush.msra.mxu0 %v2487
        %v2489 = vand.u32 %v1228, 4294901760
        %v2490 = vsub.f32 %v1228, %v2489
        %v2491 = vand.u32 %v2490, 4294901760
        %v2492 = vsub.f32 %v2490, %v2491
        %v2493 = vand.u32 %v2492, 4294901760
        %2494 = vmatpush.msra.mxu0 %v2493
        %v2495 = vand.u32 %v1225, 4294901760
        %v2496 = vsub.f32 %v1225, %v2495
        %v2497 = vand.u32 %v2496, 4294901760
        %v2498 = vsub.f32 %v2496, %v2497
        %v2499 = vand.u32 %v2498, 4294901760
        %2500 = vmatpush.msra.mxu0 %v2499
        %v2501 = vand.u32 %v1222, 4294901760
        %v2502 = vsub.f32 %v1222, %v2501
        %v2503 = vand.u32 %v2502, 4294901760
        %v2504 = vsub.f32 %v2502, %v2503
        %v2505 = vand.u32 %v2504, 4294901760
        %2506 = vmatpush.msra.mxu0 %v2505
        %v2507 = vand.u32 %v1219, 4294901760
        %v2508 = vsub.f32 %v1219, %v2507
        %v2509 = vand.u32 %v2508, 4294901760
        %v2510 = vsub.f32 %v2508, %v2509
        %v2511 = vand.u32 %v2510, 4294901760
        %2512 = vmatpush.msra.mxu0 %v2511
        %v2513 = vand.u32 %v1216, 4294901760
        %v2514 = vsub.f32 %v1216, %v2513
        %v2515 = vand.u32 %v2514, 4294901760
        %v2516 = vsub.f32 %v2514, %v2515
        %v2517 = vand.u32 %v2516, 4294901760
        %2518 = vmatpush.msra.mxu0 %v2517
        %v2519 = vand.u32 %v1213, 4294901760
        %v2520 = vsub.f32 %v1213, %v2519
        %v2521 = vand.u32 %v2520, 4294901760
        %v2522 = vsub.f32 %v2520, %v2521
        %v2523 = vand.u32 %v2522, 4294901760
        %2524 = vmatpush.msra.mxu0 %v2523
        %v2525 = vand.u32 %v1210, 4294901760
        %v2526 = vsub.f32 %v1210, %v2525
        %v2527 = vand.u32 %v2526, 4294901760
        %v2528 = vsub.f32 %v2526, %v2527
        %v2529 = vand.u32 %v2528, 4294901760
        %2530 = vmatpush.msra.mxu0 %v2529
        %v2531 = vand.u32 %v1207, 4294901760
        %v2532 = vsub.f32 %v1207, %v2531
        %v2533 = vand.u32 %v2532, 4294901760
        %v2534 = vsub.f32 %v2532, %v2533
        %v2535 = vand.u32 %v2534, 4294901760
        %2536 = vmatpush.msra.mxu0 %v2535
        %v2537 = vand.u32 %v1204, 4294901760
        %v2538 = vsub.f32 %v1204, %v2537
        %v2539 = vand.u32 %v2538, 4294901760
        %v2540 = vsub.f32 %v2538, %v2539
        %v2541 = vand.u32 %v2540, 4294901760
        %2542 = vmatpush.msra.mxu0 %v2541
        %v2543 = vand.u32 %v1201, 4294901760
        %v2544 = vsub.f32 %v1201, %v2543
        %v2545 = vand.u32 %v2544, 4294901760
        %v2546 = vsub.f32 %v2544, %v2545
        %v2547 = vand.u32 %v2546, 4294901760
        %2548 = vmatpush.msra.mxu0 %v2547
        %v2549 = vand.u32 %v1198, 4294901760
        %v2550 = vsub.f32 %v1198, %v2549
        %v2551 = vand.u32 %v2550, 4294901760
        %v2552 = vsub.f32 %v2550, %v2551
        %v2553 = vand.u32 %v2552, 4294901760
        %2554 = vmatpush.msra.mxu0 %v2553
        %v2555 = vand.u32 %v1094, 4294901760
        %2556 = vmatmul.f32.gmra.mxu0 %v2555
        %v2557 = vpop.f32.mrf.mxu0
        %v2558 = vadd.f32 %v2401, %v2557
        %v2559 = vand.u32 %v1095, 4294901760
        %2560 = vmatmul.f32.gmra.mxu0 %v2559
        %v2561 = vpop.f32.mrf.mxu0
        %v2562 = vadd.f32 %v2409, %v2561
        %v2563 = vand.u32 %v1096, 4294901760
        %2564 = vmatmul.f32.gmra.mxu0 %v2563
        %v2565 = vpop.f32.mrf.mxu0
        %v2566 = vadd.f32 %v2417, %v2565
        %v2567 = vand.u32 %v1097, 4294901760
        %2568 = vmatmul.f32.gmra.mxu0 %v2567
        %v2569 = vpop.f32.mrf.mxu0
        %v2570 = vadd.f32 %v2425, %v2569
        %v2571 = vand.u32 %v1098, 4294901760
        %2572 = vmatmul.f32.gmra.mxu0 %v2571
        %v2573 = vpop.f32.mrf.mxu0
        %v2574 = vadd.f32 %v2433, %v2573
        %v2575 = vand.u32 %v1099, 4294901760
        %2576 = vmatmul.f32.gmra.mxu0 %v2575
        %v2577 = vpop.f32.mrf.mxu0
        %v2578 = vadd.f32 %v2441, %v2577
        %v2579 = vand.u32 %v1100, 4294901760
        %2580 = vmatmul.f32.gmra.mxu0 %v2579
        %v2581 = vpop.f32.mrf.mxu0
        %v2582 = vadd.f32 %v2449, %v2581
        %v2583 = vand.u32 %v1101, 4294901760
        %2584 = vmatmul.f32.gmra.mxu0 %v2583
        %v2585 = vpop.f32.mrf.mxu0
        %v2586 = vadd.f32 %v2457, %v2585
        %2587 = vdwg.mxu0
        %v2588 = vand.u32 %v1243, 4294901760
        %v2589 = vsub.f32 %v1243, %v2588
        %2590 = vmatpush.msra.mxu0 %v2589
        %v2591 = vand.u32 %v1240, 4294901760
        %v2592 = vsub.f32 %v1240, %v2591
        %2593 = vmatpush.msra.mxu0 %v2592
        %v2594 = vand.u32 %v1237, 4294901760
        %v2595 = vsub.f32 %v1237, %v2594
        %2596 = vmatpush.msra.mxu0 %v2595
        %v2597 = vand.u32 %v1234, 4294901760
        %v2598 = vsub.f32 %v1234, %v2597
        %2599 = vmatpush.msra.mxu0 %v2598
        %v2600 = vand.u32 %v1231, 4294901760
        %v2601 = vsub.f32 %v1231, %v2600
        %2602 = vmatpush.msra.mxu0 %v2601
        %v2603 = vand.u32 %v1228, 4294901760
        %v2604 = vsub.f32 %v1228, %v2603
        %2605 = vmatpush.msra.mxu0 %v2604
        %v2606 = vand.u32 %v1225, 4294901760
        %v2607 = vsub.f32 %v1225, %v2606
        %2608 = vmatpush.msra.mxu0 %v2607
        %v2609 = vand.u32 %v1222, 4294901760
        %v2610 = vsub.f32 %v1222, %v2609
        %2611 = vmatpush.msra.mxu0 %v2610
        %v2612 = vand.u32 %v1219, 4294901760
        %v2613 = vsub.f32 %v1219, %v2612
        %2614 = vmatpush.msra.mxu0 %v2613
        %v2615 = vand.u32 %v1216, 4294901760
        %v2616 = vsub.f32 %v1216, %v2615
        %2617 = vmatpush.msra.mxu0 %v2616
        %v2618 = vand.u32 %v1213, 4294901760
        %v2619 = vsub.f32 %v1213, %v2618
        %2620 = vmatpush.msra.mxu0 %v2619
        %v2621 = vand.u32 %v1210, 4294901760
        %v2622 = vsub.f32 %v1210, %v2621
        %2623 = vmatpush.msra.mxu0 %v2622
        %v2624 = vand.u32 %v1207, 4294901760
        %v2625 = vsub.f32 %v1207, %v2624
        %2626 = vmatpush.msra.mxu0 %v2625
        %v2627 = vand.u32 %v1204, 4294901760
        %v2628 = vsub.f32 %v1204, %v2627
        %2629 = vmatpush.msra.mxu0 %v2628
        %v2630 = vand.u32 %v1201, 4294901760
        %v2631 = vsub.f32 %v1201, %v2630
        %2632 = vmatpush.msra.mxu0 %v2631
        %v2633 = vand.u32 %v1198, 4294901760
        %v2634 = vsub.f32 %v1198, %v2633
        %2635 = vmatpush.msra.mxu0 %v2634
        %v2636 = vand.u32 %v1094, 4294901760
        %v2637 = vsub.f32 %v1094, %v2636
        %2638 = vmatmul.f32.gmra.mxu0 %v2637
        %v2639 = vpop.f32.mrf.mxu0
        %v2640 = vadd.f32 %v2558, %v2639
        %v2641 = vand.u32 %v1095, 4294901760
        %v2642 = vsub.f32 %v1095, %v2641
        %2643 = vmatmul.f32.gmra.mxu0 %v2642
        %v2644 = vpop.f32.mrf.mxu0
        %v2645 = vadd.f32 %v2562, %v2644
        %v2646 = vand.u32 %v1096, 4294901760
        %v2647 = vsub.f32 %v1096, %v2646
        %2648 = vmatmul.f32.gmra.mxu0 %v2647
        %v2649 = vpop.f32.mrf.mxu0
        %v2650 = vadd.f32 %v2566, %v2649
        %v2651 = vand.u32 %v1097, 4294901760
        %v2652 = vsub.f32 %v1097, %v2651
        %2653 = vmatmul.f32.gmra.mxu0 %v2652
        %v2654 = vpop.f32.mrf.mxu0
        %v2655 = vadd.f32 %v2570, %v2654
        %v2656 = vand.u32 %v1098, 4294901760
        %v2657 = vsub.f32 %v1098, %v2656
        %2658 = vmatmul.f32.gmra.mxu0 %v2657
        %v2659 = vpop.f32.mrf.mxu0
        %v2660 = vadd.f32 %v2574, %v2659
        %v2661 = vand.u32 %v1099, 4294901760
        %v2662 = vsub.f32 %v1099, %v2661
        %2663 = vmatmul.f32.gmra.mxu0 %v2662
        %v2664 = vpop.f32.mrf.mxu0
        %v2665 = vadd.f32 %v2578, %v2664
        %v2666 = vand.u32 %v1100, 4294901760
        %v2667 = vsub.f32 %v1100, %v2666
        %2668 = vmatmul.f32.gmra.mxu0 %v2667
        %v2669 = vpop.f32.mrf.mxu0
        %v2670 = vadd.f32 %v2582, %v2669
        %v2671 = vand.u32 %v1101, 4294901760
        %v2672 = vsub.f32 %v1101, %v2671
        %2673 = vmatmul.f32.gmra.mxu0 %v2672
        %v2674 = vpop.f32.mrf.mxu0
        %v2675 = vadd.f32 %v2586, %v2674
        %2676 = vdwg.mxu0
        %v2677 = vand.u32 %v1243, 4294901760
        %2678 = vmatpush.msra.mxu0 %v2677
        %v2679 = vand.u32 %v1240, 4294901760
        %2680 = vmatpush.msra.mxu0 %v2679
        %v2681 = vand.u32 %v1237, 4294901760
        %2682 = vmatpush.msra.mxu0 %v2681
        %v2683 = vand.u32 %v1234, 4294901760
        %2684 = vmatpush.msra.mxu0 %v2683
        %v2685 = vand.u32 %v1231, 4294901760
        %2686 = vmatpush.msra.mxu0 %v2685
        %v2687 = vand.u32 %v1228, 4294901760
        %2688 = vmatpush.msra.mxu0 %v2687
        %v2689 = vand.u32 %v1225, 4294901760
        %2690 = vmatpush.msra.mxu0 %v2689
        %v2691 = vand.u32 %v1222, 4294901760
        %2692 = vmatpush.msra.mxu0 %v2691
        %v2693 = vand.u32 %v1219, 4294901760
        %2694 = vmatpush.msra.mxu0 %v2693
        %v2695 = vand.u32 %v1216, 4294901760
        %2696 = vmatpush.msra.mxu0 %v2695
        %v2697 = vand.u32 %v1213, 4294901760
        %2698 = vmatpush.msra.mxu0 %v2697
        %v2699 = vand.u32 %v1210, 4294901760
        %2700 = vmatpush.msra.mxu0 %v2699
        %v2701 = vand.u32 %v1207, 4294901760
        %2702 = vmatpush.msra.mxu0 %v2701
        %v2703 = vand.u32 %v1204, 4294901760
        %2704 = vmatpush.msra.mxu0 %v2703
        %v2705 = vand.u32 %v1201, 4294901760
        %2706 = vmatpush.msra.mxu0 %v2705
        %v2707 = vand.u32 %v1198, 4294901760
        %2708 = vmatpush.msra.mxu0 %v2707
        %v2709 = vand.u32 %v1094, 4294901760
        %v2710 = vsub.f32 %v1094, %v2709
        %v2711 = vand.u32 %v2710, 4294901760
        %2712 = vmatmul.f32.gmra.mxu0 %v2711
        %v2713 = vpop.f32.mrf.mxu0
        %v2714 = vadd.f32 %v2640, %v2713
        %v2715 = vand.u32 %v1095, 4294901760
        %v2716 = vsub.f32 %v1095, %v2715
        %v2717 = vand.u32 %v2716, 4294901760
        %2718 = vmatmul.f32.gmra.mxu0 %v2717
        %v2719 = vpop.f32.mrf.mxu0
        %v2720 = vadd.f32 %v2645, %v2719
        %v2721 = vand.u32 %v1096, 4294901760
        %v2722 = vsub.f32 %v1096, %v2721
        %v2723 = vand.u32 %v2722, 4294901760
        %2724 = vmatmul.f32.gmra.mxu0 %v2723
        %v2725 = vpop.f32.mrf.mxu0
        %v2726 = vadd.f32 %v2650, %v2725
        %v2727 = vand.u32 %v1097, 4294901760
        %v2728 = vsub.f32 %v1097, %v2727
        %v2729 = vand.u32 %v2728, 4294901760
        %2730 = vmatmul.f32.gmra.mxu0 %v2729
        %v2731 = vpop.f32.mrf.mxu0
        %v2732 = vadd.f32 %v2655, %v2731
        %v2733 = vand.u32 %v1098, 4294901760
        %v2734 = vsub.f32 %v1098, %v2733
        %v2735 = vand.u32 %v2734, 4294901760
        %2736 = vmatmul.f32.gmra.mxu0 %v2735
        %v2737 = vpop.f32.mrf.mxu0
        %v2738 = vadd.f32 %v2660, %v2737
        %v2739 = vand.u32 %v1099, 4294901760
        %v2740 = vsub.f32 %v1099, %v2739
        %v2741 = vand.u32 %v2740, 4294901760
        %2742 = vmatmul.f32.gmra.mxu0 %v2741
        %v2743 = vpop.f32.mrf.mxu0
        %v2744 = vadd.f32 %v2665, %v2743
        %v2745 = vand.u32 %v1100, 4294901760
        %v2746 = vsub.f32 %v1100, %v2745
        %v2747 = vand.u32 %v2746, 4294901760
        %2748 = vmatmul.f32.gmra.mxu0 %v2747
        %v2749 = vpop.f32.mrf.mxu0
        %v2750 = vadd.f32 %v2670, %v2749
        %v2751 = vand.u32 %v1101, 4294901760
        %v2752 = vsub.f32 %v1101, %v2751
        %v2753 = vand.u32 %v2752, 4294901760
        %2754 = vmatmul.f32.gmra.mxu0 %v2753
        %v2755 = vpop.f32.mrf.mxu0
        %v2756 = vadd.f32 %v2675, %v2755
        %2757 = vdwg.mxu0
        %v2758 = vand.u32 %v1243, 4294901760
        %v2759 = vsub.f32 %v1243, %v2758
        %v2760 = vand.u32 %v2759, 4294901760
        %2761 = vmatpush.msra.mxu0 %v2760
        %v2762 = vand.u32 %v1240, 4294901760
        %v2763 = vsub.f32 %v1240, %v2762
        %v2764 = vand.u32 %v2763, 4294901760
        %2765 = vmatpush.msra.mxu0 %v2764
        %v2766 = vand.u32 %v1237, 4294901760
        %v2767 = vsub.f32 %v1237, %v2766
        %v2768 = vand.u32 %v2767, 4294901760
        %2769 = vmatpush.msra.mxu0 %v2768
        %v2770 = vand.u32 %v1234, 4294901760
        %v2771 = vsub.f32 %v1234, %v2770
        %v2772 = vand.u32 %v2771, 4294901760
        %2773 = vmatpush.msra.mxu0 %v2772
        %v2774 = vand.u32 %v1231, 4294901760
        %v2775 = vsub.f32 %v1231, %v2774
        %v2776 = vand.u32 %v2775, 4294901760
        %2777 = vmatpush.msra.mxu0 %v2776
        %v2778 = vand.u32 %v1228, 4294901760
        %v2779 = vsub.f32 %v1228, %v2778
        %v2780 = vand.u32 %v2779, 4294901760
        %2781 = vmatpush.msra.mxu0 %v2780
        %v2782 = vand.u32 %v1225, 4294901760
        %v2783 = vsub.f32 %v1225, %v2782
        %v2784 = vand.u32 %v2783, 4294901760
        %2785 = vmatpush.msra.mxu0 %v2784
        %v2786 = vand.u32 %v1222, 4294901760
        %v2787 = vsub.f32 %v1222, %v2786
        %v2788 = vand.u32 %v2787, 4294901760
        %2789 = vmatpush.msra.mxu0 %v2788
        %v2790 = vand.u32 %v1219, 4294901760
        %v2791 = vsub.f32 %v1219, %v2790
        %v2792 = vand.u32 %v2791, 4294901760
        %2793 = vmatpush.msra.mxu0 %v2792
        %v2794 = vand.u32 %v1216, 4294901760
        %v2795 = vsub.f32 %v1216, %v2794
        %v2796 = vand.u32 %v2795, 4294901760
        %2797 = vmatpush.msra.mxu0 %v2796
        %v2798 = vand.u32 %v1213, 4294901760
        %v2799 = vsub.f32 %v1213, %v2798
        %v2800 = vand.u32 %v2799, 4294901760
        %2801 = vmatpush.msra.mxu0 %v2800
        %v2802 = vand.u32 %v1210, 4294901760
        %v2803 = vsub.f32 %v1210, %v2802
        %v2804 = vand.u32 %v2803, 4294901760
        %2805 = vmatpush.msra.mxu0 %v2804
        %v2806 = vand.u32 %v1207, 4294901760
        %v2807 = vsub.f32 %v1207, %v2806
        %v2808 = vand.u32 %v2807, 4294901760
        %2809 = vmatpush.msra.mxu0 %v2808
        %v2810 = vand.u32 %v1204, 4294901760
        %v2811 = vsub.f32 %v1204, %v2810
        %v2812 = vand.u32 %v2811, 4294901760
        %2813 = vmatpush.msra.mxu0 %v2812
        %v2814 = vand.u32 %v1201, 4294901760
        %v2815 = vsub.f32 %v1201, %v2814
        %v2816 = vand.u32 %v2815, 4294901760
        %2817 = vmatpush.msra.mxu0 %v2816
        %v2818 = vand.u32 %v1198, 4294901760
        %v2819 = vsub.f32 %v1198, %v2818
        %v2820 = vand.u32 %v2819, 4294901760
        %2821 = vmatpush.msra.mxu0 %v2820
        %v2822 = vand.u32 %v1094, 4294901760
        %2823 = vmatmul.f32.gmra.mxu0 %v2822
        %v2824 = vpop.f32.mrf.mxu0
        %v2825 = vadd.f32 %v2714, %v2824
        %v2826 = vand.u32 %v1095, 4294901760
        %2827 = vmatmul.f32.gmra.mxu0 %v2826
        %v2828 = vpop.f32.mrf.mxu0
        %v2829 = vadd.f32 %v2720, %v2828
        %v2830 = vand.u32 %v1096, 4294901760
        %2831 = vmatmul.f32.gmra.mxu0 %v2830
        %v2832 = vpop.f32.mrf.mxu0
        %v2833 = vadd.f32 %v2726, %v2832
        %v2834 = vand.u32 %v1097, 4294901760
        %2835 = vmatmul.f32.gmra.mxu0 %v2834
        %v2836 = vpop.f32.mrf.mxu0
        %v2837 = vadd.f32 %v2732, %v2836
        %v2838 = vand.u32 %v1098, 4294901760
        %2839 = vmatmul.f32.gmra.mxu0 %v2838
        %v2840 = vpop.f32.mrf.mxu0
        %v2841 = vadd.f32 %v2738, %v2840
        %v2842 = vand.u32 %v1099, 4294901760
        %2843 = vmatmul.f32.gmra.mxu0 %v2842
        %v2844 = vpop.f32.mrf.mxu0
        %v2845 = vadd.f32 %v2744, %v2844
        %v2846 = vand.u32 %v1100, 4294901760
        %2847 = vmatmul.f32.gmra.mxu0 %v2846
        %v2848 = vpop.f32.mrf.mxu0
        %v2849 = vadd.f32 %v2750, %v2848
        %v2850 = vand.u32 %v1101, 4294901760
        %2851 = vmatmul.f32.gmra.mxu0 %v2850
        %v2852 = vpop.f32.mrf.mxu0
        %v2853 = vadd.f32 %v2756, %v2852
        %2854 = vdwg.mxu0
        %v2855 = vand.u32 %v1243, 4294901760
        %2856 = vmatpush.msra.mxu0 %v2855
        %v2857 = vand.u32 %v1240, 4294901760
        %2858 = vmatpush.msra.mxu0 %v2857
        %v2859 = vand.u32 %v1237, 4294901760
        %2860 = vmatpush.msra.mxu0 %v2859
        %v2861 = vand.u32 %v1234, 4294901760
        %2862 = vmatpush.msra.mxu0 %v2861
        %v2863 = vand.u32 %v1231, 4294901760
        %2864 = vmatpush.msra.mxu0 %v2863
        %v2865 = vand.u32 %v1228, 4294901760
        %2866 = vmatpush.msra.mxu0 %v2865
        %v2867 = vand.u32 %v1225, 4294901760
        %2868 = vmatpush.msra.mxu0 %v2867
        %v2869 = vand.u32 %v1222, 4294901760
        %2870 = vmatpush.msra.mxu0 %v2869
        %v2871 = vand.u32 %v1219, 4294901760
        %2872 = vmatpush.msra.mxu0 %v2871
        %v2873 = vand.u32 %v1216, 4294901760
        %2874 = vmatpush.msra.mxu0 %v2873
        %v2875 = vand.u32 %v1213, 4294901760
        %2876 = vmatpush.msra.mxu0 %v2875
        %v2877 = vand.u32 %v1210, 4294901760
        %2878 = vmatpush.msra.mxu0 %v2877
        %v2879 = vand.u32 %v1207, 4294901760
        %2880 = vmatpush.msra.mxu0 %v2879
        %v2881 = vand.u32 %v1204, 4294901760
        %2882 = vmatpush.msra.mxu0 %v2881
        %v2883 = vand.u32 %v1201, 4294901760
        %2884 = vmatpush.msra.mxu0 %v2883
        %v2885 = vand.u32 %v1198, 4294901760
        %2886 = vmatpush.msra.mxu0 %v2885
        %v2887 = vand.u32 %v1094, 4294901760
        %2888 = vmatmul.f32.gmra.mxu0 %v2887
        %v2889 = vpop.f32.mrf.mxu0
        %v2890 = vadd.f32 %v2825, %v2889
        %v2891 = vand.u32 %v1095, 4294901760
        %2892 = vmatmul.f32.gmra.mxu0 %v2891
        %v2893 = vpop.f32.mrf.mxu0
        %v2894 = vadd.f32 %v2829, %v2893
        %v2895 = vand.u32 %v1096, 4294901760
        %2896 = vmatmul.f32.gmra.mxu0 %v2895
        %v2897 = vpop.f32.mrf.mxu0
        %v2898 = vadd.f32 %v2833, %v2897
        %v2899 = vand.u32 %v1097, 4294901760
        %2900 = vmatmul.f32.gmra.mxu0 %v2899
        %v2901 = vpop.f32.mrf.mxu0
        %v2902 = vadd.f32 %v2837, %v2901
        %v2903 = vand.u32 %v1098, 4294901760
        %2904 = vmatmul.f32.gmra.mxu0 %v2903
        %v2905 = vpop.f32.mrf.mxu0
        %v2906 = vadd.f32 %v2841, %v2905
        %v2907 = vand.u32 %v1099, 4294901760
        %2908 = vmatmul.f32.gmra.mxu0 %v2907
        %v2909 = vpop.f32.mrf.mxu0
        %v2910 = vadd.f32 %v2845, %v2909
        %v2911 = vand.u32 %v1100, 4294901760
        %2912 = vmatmul.f32.gmra.mxu0 %v2911
        %v2913 = vpop.f32.mrf.mxu0
        %v2914 = vadd.f32 %v2849, %v2913
        %v2915 = vand.u32 %v1101, 4294901760
        %2916 = vmatmul.f32.gmra.mxu0 %v2915
        %v2917 = vpop.f32.mrf.mxu0
        %v2918 = vadd.f32 %v2853, %v2917
        %2919 = vdwg.mxu0
        %v2920 = vand.u32 %v1148, 4294901760
        %2921 = vmatpush.msra.mxu0 %v2920
        %v2922 = vand.u32 %v1145, 4294901760
        %2923 = vmatpush.msra.mxu0 %v2922
        %v2924 = vand.u32 %v1142, 4294901760
        %2925 = vmatpush.msra.mxu0 %v2924
        %v2926 = vand.u32 %v1139, 4294901760
        %2927 = vmatpush.msra.mxu0 %v2926
        %v2928 = vand.u32 %v1136, 4294901760
        %2929 = vmatpush.msra.mxu0 %v2928
        %v2930 = vand.u32 %v1133, 4294901760
        %2931 = vmatpush.msra.mxu0 %v2930
        %v2932 = vand.u32 %v1130, 4294901760
        %2933 = vmatpush.msra.mxu0 %v2932
        %v2934 = vand.u32 %v1127, 4294901760
        %2935 = vmatpush.msra.mxu0 %v2934
        %v2936 = vand.u32 %v1124, 4294901760
        %2937 = vmatpush.msra.mxu0 %v2936
        %v2938 = vand.u32 %v1121, 4294901760
        %2939 = vmatpush.msra.mxu0 %v2938
        %v2940 = vand.u32 %v1118, 4294901760
        %2941 = vmatpush.msra.mxu0 %v2940
        %v2942 = vand.u32 %v1115, 4294901760
        %2943 = vmatpush.msra.mxu0 %v2942
        %v2944 = vand.u32 %v1112, 4294901760
        %2945 = vmatpush.msra.mxu0 %v2944
        %v2946 = vand.u32 %v1109, 4294901760
        %2947 = vmatpush.msra.mxu0 %v2946
        %v2948 = vand.u32 %v1106, 4294901760
        %2949 = vmatpush.msra.mxu0 %v2948
        %v2950 = vand.u32 %v1103, 4294901760
        %2951 = vmatpush.msra.mxu0 %v2950
        %v2952 = vand.u32 %v1078, 4294901760
        %v2953 = vsub.f32 %v1078, %v2952
        %v2954 = vand.u32 %v2953, 4294901760
        %v2955 = vsub.f32 %v2953, %v2954
        %v2956 = vand.u32 %v2955, 4294901760
        %2957 = vmatmul.f32.gmra.mxu0 %v2956
        %v2958 = vpop.f32.mrf.mxu0
        %v2959 = vadd.f32 0.0, %v2958
        %v2960 = vand.u32 %v1080, 4294901760
        %v2961 = vsub.f32 %v1080, %v2960
        %v2962 = vand.u32 %v2961, 4294901760
        %v2963 = vsub.f32 %v2961, %v2962
        %v2964 = vand.u32 %v2963, 4294901760
        %2965 = vmatmul.f32.gmra.mxu0 %v2964
        %v2966 = vpop.f32.mrf.mxu0
        %v2967 = vadd.f32 0.0, %v2966
        %v2968 = vand.u32 %v1082, 4294901760
        %v2969 = vsub.f32 %v1082, %v2968
        %v2970 = vand.u32 %v2969, 4294901760
        %v2971 = vsub.f32 %v2969, %v2970
        %v2972 = vand.u32 %v2971, 4294901760
        %2973 = vmatmul.f32.gmra.mxu0 %v2972
        %v2974 = vpop.f32.mrf.mxu0
        %v2975 = vadd.f32 0.0, %v2974
        %v2976 = vand.u32 %v1084, 4294901760
        %v2977 = vsub.f32 %v1084, %v2976
        %v2978 = vand.u32 %v2977, 4294901760
        %v2979 = vsub.f32 %v2977, %v2978
        %v2980 = vand.u32 %v2979, 4294901760
        %2981 = vmatmul.f32.gmra.mxu0 %v2980
        %v2982 = vpop.f32.mrf.mxu0
        %v2983 = vadd.f32 0.0, %v2982
        %v2984 = vand.u32 %v1086, 4294901760
        %v2985 = vsub.f32 %v1086, %v2984
        %v2986 = vand.u32 %v2985, 4294901760
        %v2987 = vsub.f32 %v2985, %v2986
        %v2988 = vand.u32 %v2987, 4294901760
        %2989 = vmatmul.f32.gmra.mxu0 %v2988
        %v2990 = vpop.f32.mrf.mxu0
        %v2991 = vadd.f32 0.0, %v2990
        %v2992 = vand.u32 %v1088, 4294901760
        %v2993 = vsub.f32 %v1088, %v2992
        %v2994 = vand.u32 %v2993, 4294901760
        %v2995 = vsub.f32 %v2993, %v2994
        %v2996 = vand.u32 %v2995, 4294901760
        %2997 = vmatmul.f32.gmra.mxu0 %v2996
        %v2998 = vpop.f32.mrf.mxu0
        %v2999 = vadd.f32 0.0, %v2998
        %v3000 = vand.u32 %v1090, 4294901760
        %v3001 = vsub.f32 %v1090, %v3000
        %v3002 = vand.u32 %v3001, 4294901760
        %v3003 = vsub.f32 %v3001, %v3002
        %v3004 = vand.u32 %v3003, 4294901760
        %3005 = vmatmul.f32.gmra.mxu0 %v3004
        %v3006 = vpop.f32.mrf.mxu0
        %v3007 = vadd.f32 0.0, %v3006
        %v3008 = vand.u32 %v1092, 4294901760
        %v3009 = vsub.f32 %v1092, %v3008
        %v3010 = vand.u32 %v3009, 4294901760
        %v3011 = vsub.f32 %v3009, %v3010
        %v3012 = vand.u32 %v3011, 4294901760
        %3013 = vmatmul.f32.gmra.mxu0 %v3012
        %v3014 = vpop.f32.mrf.mxu0
        %v3015 = vadd.f32 0.0, %v3014
        %3016 = vdwg.mxu0
        %v3017 = vand.u32 %v1148, 4294901760
        %v3018 = vsub.f32 %v1148, %v3017
        %v3019 = vand.u32 %v3018, 4294901760
        %v3020 = vsub.f32 %v3018, %v3019
        %v3021 = vand.u32 %v3020, 4294901760
        %3022 = vmatpush.msra.mxu0 %v3021
        %v3023 = vand.u32 %v1145, 4294901760
        %v3024 = vsub.f32 %v1145, %v3023
        %v3025 = vand.u32 %v3024, 4294901760
        %v3026 = vsub.f32 %v3024, %v3025
        %v3027 = vand.u32 %v3026, 4294901760
        %3028 = vmatpush.msra.mxu0 %v3027
        %v3029 = vand.u32 %v1142, 4294901760
        %v3030 = vsub.f32 %v1142, %v3029
        %v3031 = vand.u32 %v3030, 4294901760
        %v3032 = vsub.f32 %v3030, %v3031
        %v3033 = vand.u32 %v3032, 4294901760
        %3034 = vmatpush.msra.mxu0 %v3033
        %v3035 = vand.u32 %v1139, 4294901760
        %v3036 = vsub.f32 %v1139, %v3035
        %v3037 = vand.u32 %v3036, 4294901760
        %v3038 = vsub.f32 %v3036, %v3037
        %v3039 = vand.u32 %v3038, 4294901760
        %3040 = vmatpush.msra.mxu0 %v3039
        %v3041 = vand.u32 %v1136, 4294901760
        %v3042 = vsub.f32 %v1136, %v3041
        %v3043 = vand.u32 %v3042, 4294901760
        %v3044 = vsub.f32 %v3042, %v3043
        %v3045 = vand.u32 %v3044, 4294901760
        %3046 = vmatpush.msra.mxu0 %v3045
        %v3047 = vand.u32 %v1133, 4294901760
        %v3048 = vsub.f32 %v1133, %v3047
        %v3049 = vand.u32 %v3048, 4294901760
        %v3050 = vsub.f32 %v3048, %v3049
        %v3051 = vand.u32 %v3050, 4294901760
        %3052 = vmatpush.msra.mxu0 %v3051
        %v3053 = vand.u32 %v1130, 4294901760
        %v3054 = vsub.f32 %v1130, %v3053
        %v3055 = vand.u32 %v3054, 4294901760
        %v3056 = vsub.f32 %v3054, %v3055
        %v3057 = vand.u32 %v3056, 4294901760
        %3058 = vmatpush.msra.mxu0 %v3057
        %v3059 = vand.u32 %v1127, 4294901760
        %v3060 = vsub.f32 %v1127, %v3059
        %v3061 = vand.u32 %v3060, 4294901760
        %v3062 = vsub.f32 %v3060, %v3061
        %v3063 = vand.u32 %v3062, 4294901760
        %3064 = vmatpush.msra.mxu0 %v3063
        %v3065 = vand.u32 %v1124, 4294901760
        %v3066 = vsub.f32 %v1124, %v3065
        %v3067 = vand.u32 %v3066, 4294901760
        %v3068 = vsub.f32 %v3066, %v3067
        %v3069 = vand.u32 %v3068, 4294901760
        %3070 = vmatpush.msra.mxu0 %v3069
        %v3071 = vand.u32 %v1121, 4294901760
        %v3072 = vsub.f32 %v1121, %v3071
        %v3073 = vand.u32 %v3072, 4294901760
        %v3074 = vsub.f32 %v3072, %v3073
        %v3075 = vand.u32 %v3074, 4294901760
        %3076 = vmatpush.msra.mxu0 %v3075
        %v3077 = vand.u32 %v1118, 4294901760
        %v3078 = vsub.f32 %v1118, %v3077
        %v3079 = vand.u32 %v3078, 4294901760
        %v3080 = vsub.f32 %v3078, %v3079
        %v3081 = vand.u32 %v3080, 4294901760
        %3082 = vmatpush.msra.mxu0 %v3081
        %v3083 = vand.u32 %v1115, 4294901760
        %v3084 = vsub.f32 %v1115, %v3083
        %v3085 = vand.u32 %v3084, 4294901760
        %v3086 = vsub.f32 %v3084, %v3085
        %v3087 = vand.u32 %v3086, 4294901760
        %3088 = vmatpush.msra.mxu0 %v3087
        %v3089 = vand.u32 %v1112, 4294901760
        %v3090 = vsub.f32 %v1112, %v3089
        %v3091 = vand.u32 %v3090, 4294901760
        %v3092 = vsub.f32 %v3090, %v3091
        %v3093 = vand.u32 %v3092, 4294901760
        %3094 = vmatpush.msra.mxu0 %v3093
        %v3095 = vand.u32 %v1109, 4294901760
        %v3096 = vsub.f32 %v1109, %v3095
        %v3097 = vand.u32 %v3096, 4294901760
        %v3098 = vsub.f32 %v3096, %v3097
        %v3099 = vand.u32 %v3098, 4294901760
        %3100 = vmatpush.msra.mxu0 %v3099
        %v3101 = vand.u32 %v1106, 4294901760
        %v3102 = vsub.f32 %v1106, %v3101
        %v3103 = vand.u32 %v3102, 4294901760
        %v3104 = vsub.f32 %v3102, %v3103
        %v3105 = vand.u32 %v3104, 4294901760
        %3106 = vmatpush.msra.mxu0 %v3105
        %v3107 = vand.u32 %v1103, 4294901760
        %v3108 = vsub.f32 %v1103, %v3107
        %v3109 = vand.u32 %v3108, 4294901760
        %v3110 = vsub.f32 %v3108, %v3109
        %v3111 = vand.u32 %v3110, 4294901760
        %3112 = vmatpush.msra.mxu0 %v3111
        %v3113 = vand.u32 %v1078, 4294901760
        %3114 = vmatmul.f32.gmra.mxu0 %v3113
        %v3115 = vpop.f32.mrf.mxu0
        %v3116 = vadd.f32 %v2959, %v3115
        %v3117 = vand.u32 %v1080, 4294901760
        %3118 = vmatmul.f32.gmra.mxu0 %v3117
        %v3119 = vpop.f32.mrf.mxu0
        %v3120 = vadd.f32 %v2967, %v3119
        %v3121 = vand.u32 %v1082, 4294901760
        %3122 = vmatmul.f32.gmra.mxu0 %v3121
        %v3123 = vpop.f32.mrf.mxu0
        %v3124 = vadd.f32 %v2975, %v3123
        %v3125 = vand.u32 %v1084, 4294901760
        %3126 = vmatmul.f32.gmra.mxu0 %v3125
        %v3127 = vpop.f32.mrf.mxu0
        %v3128 = vadd.f32 %v2983, %v3127
        %v3129 = vand.u32 %v1086, 4294901760
        %3130 = vmatmul.f32.gmra.mxu0 %v3129
        %v3131 = vpop.f32.mrf.mxu0
        %v3132 = vadd.f32 %v2991, %v3131
        %v3133 = vand.u32 %v1088, 4294901760
        %3134 = vmatmul.f32.gmra.mxu0 %v3133
        %v3135 = vpop.f32.mrf.mxu0
        %v3136 = vadd.f32 %v2999, %v3135
        %v3137 = vand.u32 %v1090, 4294901760
        %3138 = vmatmul.f32.gmra.mxu0 %v3137
        %v3139 = vpop.f32.mrf.mxu0
        %v3140 = vadd.f32 %v3007, %v3139
        %v3141 = vand.u32 %v1092, 4294901760
        %3142 = vmatmul.f32.gmra.mxu0 %v3141
        %v3143 = vpop.f32.mrf.mxu0
        %v3144 = vadd.f32 %v3015, %v3143
        %3145 = vdwg.mxu0
        %v3146 = vand.u32 %v1148, 4294901760
        %v3147 = vsub.f32 %v1148, %v3146
        %3148 = vmatpush.msra.mxu0 %v3147
        %v3149 = vand.u32 %v1145, 4294901760
        %v3150 = vsub.f32 %v1145, %v3149
        %3151 = vmatpush.msra.mxu0 %v3150
        %v3152 = vand.u32 %v1142, 4294901760
        %v3153 = vsub.f32 %v1142, %v3152
        %3154 = vmatpush.msra.mxu0 %v3153
        %v3155 = vand.u32 %v1139, 4294901760
        %v3156 = vsub.f32 %v1139, %v3155
        %3157 = vmatpush.msra.mxu0 %v3156
        %v3158 = vand.u32 %v1136, 4294901760
        %v3159 = vsub.f32 %v1136, %v3158
        %3160 = vmatpush.msra.mxu0 %v3159
        %v3161 = vand.u32 %v1133, 4294901760
        %v3162 = vsub.f32 %v1133, %v3161
        %3163 = vmatpush.msra.mxu0 %v3162
        %v3164 = vand.u32 %v1130, 4294901760
        %v3165 = vsub.f32 %v1130, %v3164
        %3166 = vmatpush.msra.mxu0 %v3165
        %v3167 = vand.u32 %v1127, 4294901760
        %v3168 = vsub.f32 %v1127, %v3167
        %3169 = vmatpush.msra.mxu0 %v3168
        %v3170 = vand.u32 %v1124, 4294901760
        %v3171 = vsub.f32 %v1124, %v3170
        %3172 = vmatpush.msra.mxu0 %v3171
        %v3173 = vand.u32 %v1121, 4294901760
        %v3174 = vsub.f32 %v1121, %v3173
        %3175 = vmatpush.msra.mxu0 %v3174
        %v3176 = vand.u32 %v1118, 4294901760
        %v3177 = vsub.f32 %v1118, %v3176
        %3178 = vmatpush.msra.mxu0 %v3177
        %v3179 = vand.u32 %v1115, 4294901760
        %v3180 = vsub.f32 %v1115, %v3179
        %3181 = vmatpush.msra.mxu0 %v3180
        %v3182 = vand.u32 %v1112, 4294901760
        %v3183 = vsub.f32 %v1112, %v3182
        %3184 = vmatpush.msra.mxu0 %v3183
        %v3185 = vand.u32 %v1109, 4294901760
        %v3186 = vsub.f32 %v1109, %v3185
        %3187 = vmatpush.msra.mxu0 %v3186
        %v3188 = vand.u32 %v1106, 4294901760
        %v3189 = vsub.f32 %v1106, %v3188
        %3190 = vmatpush.msra.mxu0 %v3189
        %v3191 = vand.u32 %v1103, 4294901760
        %v3192 = vsub.f32 %v1103, %v3191
        %3193 = vmatpush.msra.mxu0 %v3192
        %v3194 = vand.u32 %v1078, 4294901760
        %v3195 = vsub.f32 %v1078, %v3194
        %3196 = vmatmul.f32.gmra.mxu0 %v3195
        %v3197 = vpop.f32.mrf.mxu0
        %v3198 = vadd.f32 %v3116, %v3197
        %v3199 = vand.u32 %v1080, 4294901760
        %v3200 = vsub.f32 %v1080, %v3199
        %3201 = vmatmul.f32.gmra.mxu0 %v3200
        %v3202 = vpop.f32.mrf.mxu0
        %v3203 = vadd.f32 %v3120, %v3202
        %v3204 = vand.u32 %v1082, 4294901760
        %v3205 = vsub.f32 %v1082, %v3204
        %3206 = vmatmul.f32.gmra.mxu0 %v3205
        %v3207 = vpop.f32.mrf.mxu0
        %v3208 = vadd.f32 %v3124, %v3207
        %v3209 = vand.u32 %v1084, 4294901760
        %v3210 = vsub.f32 %v1084, %v3209
        %3211 = vmatmul.f32.gmra.mxu0 %v3210
        %v3212 = vpop.f32.mrf.mxu0
        %v3213 = vadd.f32 %v3128, %v3212
        %v3214 = vand.u32 %v1086, 4294901760
        %v3215 = vsub.f32 %v1086, %v3214
        %3216 = vmatmul.f32.gmra.mxu0 %v3215
        %v3217 = vpop.f32.mrf.mxu0
        %v3218 = vadd.f32 %v3132, %v3217
        %v3219 = vand.u32 %v1088, 4294901760
        %v3220 = vsub.f32 %v1088, %v3219
        %3221 = vmatmul.f32.gmra.mxu0 %v3220
        %v3222 = vpop.f32.mrf.mxu0
        %v3223 = vadd.f32 %v3136, %v3222
        %v3224 = vand.u32 %v1090, 4294901760
        %v3225 = vsub.f32 %v1090, %v3224
        %3226 = vmatmul.f32.gmra.mxu0 %v3225
        %v3227 = vpop.f32.mrf.mxu0
        %v3228 = vadd.f32 %v3140, %v3227
        %v3229 = vand.u32 %v1092, 4294901760
        %v3230 = vsub.f32 %v1092, %v3229
        %3231 = vmatmul.f32.gmra.mxu0 %v3230
        %v3232 = vpop.f32.mrf.mxu0
        %v3233 = vadd.f32 %v3144, %v3232
        %3234 = vdwg.mxu0
        %v3235 = vand.u32 %v1148, 4294901760
        %3236 = vmatpush.msra.mxu0 %v3235
        %v3237 = vand.u32 %v1145, 4294901760
        %3238 = vmatpush.msra.mxu0 %v3237
        %v3239 = vand.u32 %v1142, 4294901760
        %3240 = vmatpush.msra.mxu0 %v3239
        %v3241 = vand.u32 %v1139, 4294901760
        %3242 = vmatpush.msra.mxu0 %v3241
        %v3243 = vand.u32 %v1136, 4294901760
        %3244 = vmatpush.msra.mxu0 %v3243
        %v3245 = vand.u32 %v1133, 4294901760
        %3246 = vmatpush.msra.mxu0 %v3245
        %v3247 = vand.u32 %v1130, 4294901760
        %3248 = vmatpush.msra.mxu0 %v3247
        %v3249 = vand.u32 %v1127, 4294901760
        %3250 = vmatpush.msra.mxu0 %v3249
        %v3251 = vand.u32 %v1124, 4294901760
        %3252 = vmatpush.msra.mxu0 %v3251
        %v3253 = vand.u32 %v1121, 4294901760
        %3254 = vmatpush.msra.mxu0 %v3253
        %v3255 = vand.u32 %v1118, 4294901760
        %3256 = vmatpush.msra.mxu0 %v3255
        %v3257 = vand.u32 %v1115, 4294901760
        %3258 = vmatpush.msra.mxu0 %v3257
        %v3259 = vand.u32 %v1112, 4294901760
        %3260 = vmatpush.msra.mxu0 %v3259
        %v3261 = vand.u32 %v1109, 4294901760
        %3262 = vmatpush.msra.mxu0 %v3261
        %v3263 = vand.u32 %v1106, 4294901760
        %3264 = vmatpush.msra.mxu0 %v3263
        %v3265 = vand.u32 %v1103, 4294901760
        %3266 = vmatpush.msra.mxu0 %v3265
        %v3267 = vand.u32 %v1078, 4294901760
        %v3268 = vsub.f32 %v1078, %v3267
        %v3269 = vand.u32 %v3268, 4294901760
        %3270 = vmatmul.f32.gmra.mxu0 %v3269
        %v3271 = vpop.f32.mrf.mxu0
        %v3272 = vadd.f32 %v3198, %v3271
        %v3273 = vand.u32 %v1080, 4294901760
        %v3274 = vsub.f32 %v1080, %v3273
        %v3275 = vand.u32 %v3274, 4294901760
        %3276 = vmatmul.f32.gmra.mxu0 %v3275
        %v3277 = vpop.f32.mrf.mxu0
        %v3278 = vadd.f32 %v3203, %v3277
        %v3279 = vand.u32 %v1082, 4294901760
        %v3280 = vsub.f32 %v1082, %v3279
        %v3281 = vand.u32 %v3280, 4294901760
        %3282 = vmatmul.f32.gmra.mxu0 %v3281
        %v3283 = vpop.f32.mrf.mxu0
        %v3284 = vadd.f32 %v3208, %v3283
        %v3285 = vand.u32 %v1084, 4294901760
        %v3286 = vsub.f32 %v1084, %v3285
        %v3287 = vand.u32 %v3286, 4294901760
        %3288 = vmatmul.f32.gmra.mxu0 %v3287
        %v3289 = vpop.f32.mrf.mxu0
        %v3290 = vadd.f32 %v3213, %v3289
        %v3291 = vand.u32 %v1086, 4294901760
        %v3292 = vsub.f32 %v1086, %v3291
        %v3293 = vand.u32 %v3292, 4294901760
        %3294 = vmatmul.f32.gmra.mxu0 %v3293
        %v3295 = vpop.f32.mrf.mxu0
        %v3296 = vadd.f32 %v3218, %v3295
        %v3297 = vand.u32 %v1088, 4294901760
        %v3298 = vsub.f32 %v1088, %v3297
        %v3299 = vand.u32 %v3298, 4294901760
        %3300 = vmatmul.f32.gmra.mxu0 %v3299
        %v3301 = vpop.f32.mrf.mxu0
        %v3302 = vadd.f32 %v3223, %v3301
        %v3303 = vand.u32 %v1090, 4294901760
        %v3304 = vsub.f32 %v1090, %v3303
        %v3305 = vand.u32 %v3304, 4294901760
        %3306 = vmatmul.f32.gmra.mxu0 %v3305
        %v3307 = vpop.f32.mrf.mxu0
        %v3308 = vadd.f32 %v3228, %v3307
        %v3309 = vand.u32 %v1092, 4294901760
        %v3310 = vsub.f32 %v1092, %v3309
        %v3311 = vand.u32 %v3310, 4294901760
        %3312 = vmatmul.f32.gmra.mxu0 %v3311
        %v3313 = vpop.f32.mrf.mxu0
        %v3314 = vadd.f32 %v3233, %v3313
        %3315 = vdwg.mxu0
        %v3316 = vand.u32 %v1148, 4294901760
        %v3317 = vsub.f32 %v1148, %v3316
        %v3318 = vand.u32 %v3317, 4294901760
        %3319 = vmatpush.msra.mxu0 %v3318
        %v3320 = vand.u32 %v1145, 4294901760
        %v3321 = vsub.f32 %v1145, %v3320
        %v3322 = vand.u32 %v3321, 4294901760
        %3323 = vmatpush.msra.mxu0 %v3322
        %v3324 = vand.u32 %v1142, 4294901760
        %v3325 = vsub.f32 %v1142, %v3324
        %v3326 = vand.u32 %v3325, 4294901760
        %3327 = vmatpush.msra.mxu0 %v3326
        %v3328 = vand.u32 %v1139, 4294901760
        %v3329 = vsub.f32 %v1139, %v3328
        %v3330 = vand.u32 %v3329, 4294901760
        %3331 = vmatpush.msra.mxu0 %v3330
        %v3332 = vand.u32 %v1136, 4294901760
        %v3333 = vsub.f32 %v1136, %v3332
        %v3334 = vand.u32 %v3333, 4294901760
        %3335 = vmatpush.msra.mxu0 %v3334
        %v3336 = vand.u32 %v1133, 4294901760
        %v3337 = vsub.f32 %v1133, %v3336
        %v3338 = vand.u32 %v3337, 4294901760
        %3339 = vmatpush.msra.mxu0 %v3338
        %v3340 = vand.u32 %v1130, 4294901760
        %v3341 = vsub.f32 %v1130, %v3340
        %v3342 = vand.u32 %v3341, 4294901760
        %3343 = vmatpush.msra.mxu0 %v3342
        %v3344 = vand.u32 %v1127, 4294901760
        %v3345 = vsub.f32 %v1127, %v3344
        %v3346 = vand.u32 %v3345, 4294901760
        %3347 = vmatpush.msra.mxu0 %v3346
        %v3348 = vand.u32 %v1124, 4294901760
        %v3349 = vsub.f32 %v1124, %v3348
        %v3350 = vand.u32 %v3349, 4294901760
        %3351 = vmatpush.msra.mxu0 %v3350
        %v3352 = vand.u32 %v1121, 4294901760
        %v3353 = vsub.f32 %v1121, %v3352
        %v3354 = vand.u32 %v3353, 4294901760
        %3355 = vmatpush.msra.mxu0 %v3354
        %v3356 = vand.u32 %v1118, 4294901760
        %v3357 = vsub.f32 %v1118, %v3356
        %v3358 = vand.u32 %v3357, 4294901760
        %3359 = vmatpush.msra.mxu0 %v3358
        %v3360 = vand.u32 %v1115, 4294901760
        %v3361 = vsub.f32 %v1115, %v3360
        %v3362 = vand.u32 %v3361, 4294901760
        %3363 = vmatpush.msra.mxu0 %v3362
        %v3364 = vand.u32 %v1112, 4294901760
        %v3365 = vsub.f32 %v1112, %v3364
        %v3366 = vand.u32 %v3365, 4294901760
        %3367 = vmatpush.msra.mxu0 %v3366
        %v3368 = vand.u32 %v1109, 4294901760
        %v3369 = vsub.f32 %v1109, %v3368
        %v3370 = vand.u32 %v3369, 4294901760
        %3371 = vmatpush.msra.mxu0 %v3370
        %v3372 = vand.u32 %v1106, 4294901760
        %v3373 = vsub.f32 %v1106, %v3372
        %v3374 = vand.u32 %v3373, 4294901760
        %3375 = vmatpush.msra.mxu0 %v3374
        %v3376 = vand.u32 %v1103, 4294901760
        %v3377 = vsub.f32 %v1103, %v3376
        %v3378 = vand.u32 %v3377, 4294901760
        %3379 = vmatpush.msra.mxu0 %v3378
        %v3380 = vand.u32 %v1078, 4294901760
        %3381 = vmatmul.f32.gmra.mxu0 %v3380
        %v3382 = vpop.f32.mrf.mxu0
        %v3383 = vadd.f32 %v3272, %v3382
        %v3384 = vand.u32 %v1080, 4294901760
        %3385 = vmatmul.f32.gmra.mxu0 %v3384
        %v3386 = vpop.f32.mrf.mxu0
        %v3387 = vadd.f32 %v3278, %v3386
        %v3388 = vand.u32 %v1082, 4294901760
        %3389 = vmatmul.f32.gmra.mxu0 %v3388
        %v3390 = vpop.f32.mrf.mxu0
        %v3391 = vadd.f32 %v3284, %v3390
        %v3392 = vand.u32 %v1084, 4294901760
        %3393 = vmatmul.f32.gmra.mxu0 %v3392
        %v3394 = vpop.f32.mrf.mxu0
        %v3395 = vadd.f32 %v3290, %v3394
        %v3396 = vand.u32 %v1086, 4294901760
        %3397 = vmatmul.f32.gmra.mxu0 %v3396
        %v3398 = vpop.f32.mrf.mxu0
        %v3399 = vadd.f32 %v3296, %v3398
        %v3400 = vand.u32 %v1088, 4294901760
        %3401 = vmatmul.f32.gmra.mxu0 %v3400
        %v3402 = vpop.f32.mrf.mxu0
        %v3403 = vadd.f32 %v3302, %v3402
        %v3404 = vand.u32 %v1090, 4294901760
        %3405 = vmatmul.f32.gmra.mxu0 %v3404
        %v3406 = vpop.f32.mrf.mxu0
        %v3407 = vadd.f32 %v3308, %v3406
        %v3408 = vand.u32 %v1092, 4294901760
        %3409 = vmatmul.f32.gmra.mxu0 %v3408
        %v3410 = vpop.f32.mrf.mxu0
        %v3411 = vadd.f32 %v3314, %v3410
        %3412 = vdwg.mxu0
        %v3413 = vand.u32 %v1148, 4294901760
        %3414 = vmatpush.msra.mxu0 %v3413
        %v3415 = vand.u32 %v1145, 4294901760
        %3416 = vmatpush.msra.mxu0 %v3415
        %v3417 = vand.u32 %v1142, 4294901760
        %3418 = vmatpush.msra.mxu0 %v3417
        %v3419 = vand.u32 %v1139, 4294901760
        %3420 = vmatpush.msra.mxu0 %v3419
        %v3421 = vand.u32 %v1136, 4294901760
        %3422 = vmatpush.msra.mxu0 %v3421
        %v3423 = vand.u32 %v1133, 4294901760
        %3424 = vmatpush.msra.mxu0 %v3423
        %v3425 = vand.u32 %v1130, 4294901760
        %3426 = vmatpush.msra.mxu0 %v3425
        %v3427 = vand.u32 %v1127, 4294901760
        %3428 = vmatpush.msra.mxu0 %v3427
        %v3429 = vand.u32 %v1124, 4294901760
        %3430 = vmatpush.msra.mxu0 %v3429
        %v3431 = vand.u32 %v1121, 4294901760
        %3432 = vmatpush.msra.mxu0 %v3431
        %v3433 = vand.u32 %v1118, 4294901760
        %3434 = vmatpush.msra.mxu0 %v3433
        %v3435 = vand.u32 %v1115, 4294901760
        %3436 = vmatpush.msra.mxu0 %v3435
        %v3437 = vand.u32 %v1112, 4294901760
        %3438 = vmatpush.msra.mxu0 %v3437
        %v3439 = vand.u32 %v1109, 4294901760
        %3440 = vmatpush.msra.mxu0 %v3439
        %v3441 = vand.u32 %v1106, 4294901760
        %3442 = vmatpush.msra.mxu0 %v3441
        %v3443 = vand.u32 %v1103, 4294901760
        %3444 = vmatpush.msra.mxu0 %v3443
        %v3445 = vand.u32 %v1078, 4294901760
        %3446 = vmatmul.f32.gmra.mxu0 %v3445
        %v3447 = vpop.f32.mrf.mxu0
        %v3448 = vadd.f32 %v3383, %v3447
        %v3449 = vand.u32 %v1080, 4294901760
        %3450 = vmatmul.f32.gmra.mxu0 %v3449
        %v3451 = vpop.f32.mrf.mxu0
        %v3452 = vadd.f32 %v3387, %v3451
        %v3453 = vand.u32 %v1082, 4294901760
        %3454 = vmatmul.f32.gmra.mxu0 %v3453
        %v3455 = vpop.f32.mrf.mxu0
        %v3456 = vadd.f32 %v3391, %v3455
        %v3457 = vand.u32 %v1084, 4294901760
        %3458 = vmatmul.f32.gmra.mxu0 %v3457
        %v3459 = vpop.f32.mrf.mxu0
        %v3460 = vadd.f32 %v3395, %v3459
        %v3461 = vand.u32 %v1086, 4294901760
        %3462 = vmatmul.f32.gmra.mxu0 %v3461
        %v3463 = vpop.f32.mrf.mxu0
        %v3464 = vadd.f32 %v3399, %v3463
        %v3465 = vand.u32 %v1088, 4294901760
        %3466 = vmatmul.f32.gmra.mxu0 %v3465
        %v3467 = vpop.f32.mrf.mxu0
        %v3468 = vadd.f32 %v3403, %v3467
        %v3469 = vand.u32 %v1090, 4294901760
        %3470 = vmatmul.f32.gmra.mxu0 %v3469
        %v3471 = vpop.f32.mrf.mxu0
        %v3472 = vadd.f32 %v3407, %v3471
        %v3473 = vand.u32 %v1092, 4294901760
        %3474 = vmatmul.f32.gmra.mxu0 %v3473
        %v3475 = vpop.f32.mrf.mxu0
        %v3476 = vadd.f32 %v3411, %v3475
        %3477 = vdwg.mxu0
        %v3478 = vand.u32 %v1196, 4294901760
        %3479 = vmatpush.msra.mxu0 %v3478
        %v3480 = vand.u32 %v1193, 4294901760
        %3481 = vmatpush.msra.mxu0 %v3480
        %v3482 = vand.u32 %v1190, 4294901760
        %3483 = vmatpush.msra.mxu0 %v3482
        %v3484 = vand.u32 %v1187, 4294901760
        %3485 = vmatpush.msra.mxu0 %v3484
        %v3486 = vand.u32 %v1184, 4294901760
        %3487 = vmatpush.msra.mxu0 %v3486
        %v3488 = vand.u32 %v1181, 4294901760
        %3489 = vmatpush.msra.mxu0 %v3488
        %v3490 = vand.u32 %v1178, 4294901760
        %3491 = vmatpush.msra.mxu0 %v3490
        %v3492 = vand.u32 %v1175, 4294901760
        %3493 = vmatpush.msra.mxu0 %v3492
        %v3494 = vand.u32 %v1172, 4294901760
        %3495 = vmatpush.msra.mxu0 %v3494
        %v3496 = vand.u32 %v1169, 4294901760
        %3497 = vmatpush.msra.mxu0 %v3496
        %v3498 = vand.u32 %v1166, 4294901760
        %3499 = vmatpush.msra.mxu0 %v3498
        %v3500 = vand.u32 %v1163, 4294901760
        %3501 = vmatpush.msra.mxu0 %v3500
        %v3502 = vand.u32 %v1160, 4294901760
        %3503 = vmatpush.msra.mxu0 %v3502
        %v3504 = vand.u32 %v1157, 4294901760
        %3505 = vmatpush.msra.mxu0 %v3504
        %v3506 = vand.u32 %v1154, 4294901760
        %3507 = vmatpush.msra.mxu0 %v3506
        %v3508 = vand.u32 %v1151, 4294901760
        %3509 = vmatpush.msra.mxu0 %v3508
        %v3510 = vand.u32 %v1079, 4294901760
        %v3511 = vsub.f32 %v1079, %v3510
        %v3512 = vand.u32 %v3511, 4294901760
        %v3513 = vsub.f32 %v3511, %v3512
        %v3514 = vand.u32 %v3513, 4294901760
        %3515 = vmatmul.f32.gmra.mxu0 %v3514
        %v3516 = vpop.f32.mrf.mxu0
        %v3517 = vadd.f32 %v3448, %v3516
        %v3518 = vand.u32 %v1081, 4294901760
        %v3519 = vsub.f32 %v1081, %v3518
        %v3520 = vand.u32 %v3519, 4294901760
        %v3521 = vsub.f32 %v3519, %v3520
        %v3522 = vand.u32 %v3521, 4294901760
        %3523 = vmatmul.f32.gmra.mxu0 %v3522
        %v3524 = vpop.f32.mrf.mxu0
        %v3525 = vadd.f32 %v3452, %v3524
        %v3526 = vand.u32 %v1083, 4294901760
        %v3527 = vsub.f32 %v1083, %v3526
        %v3528 = vand.u32 %v3527, 4294901760
        %v3529 = vsub.f32 %v3527, %v3528
        %v3530 = vand.u32 %v3529, 4294901760
        %3531 = vmatmul.f32.gmra.mxu0 %v3530
        %v3532 = vpop.f32.mrf.mxu0
        %v3533 = vadd.f32 %v3456, %v3532
        %v3534 = vand.u32 %v1085, 4294901760
        %v3535 = vsub.f32 %v1085, %v3534
        %v3536 = vand.u32 %v3535, 4294901760
        %v3537 = vsub.f32 %v3535, %v3536
        %v3538 = vand.u32 %v3537, 4294901760
        %3539 = vmatmul.f32.gmra.mxu0 %v3538
        %v3540 = vpop.f32.mrf.mxu0
        %v3541 = vadd.f32 %v3460, %v3540
        %v3542 = vand.u32 %v1087, 4294901760
        %v3543 = vsub.f32 %v1087, %v3542
        %v3544 = vand.u32 %v3543, 4294901760
        %v3545 = vsub.f32 %v3543, %v3544
        %v3546 = vand.u32 %v3545, 4294901760
        %3547 = vmatmul.f32.gmra.mxu0 %v3546
        %v3548 = vpop.f32.mrf.mxu0
        %v3549 = vadd.f32 %v3464, %v3548
        %v3550 = vand.u32 %v1089, 4294901760
        %v3551 = vsub.f32 %v1089, %v3550
        %v3552 = vand.u32 %v3551, 4294901760
        %v3553 = vsub.f32 %v3551, %v3552
        %v3554 = vand.u32 %v3553, 4294901760
        %3555 = vmatmul.f32.gmra.mxu0 %v3554
        %v3556 = vpop.f32.mrf.mxu0
        %v3557 = vadd.f32 %v3468, %v3556
        %v3558 = vand.u32 %v1091, 4294901760
        %v3559 = vsub.f32 %v1091, %v3558
        %v3560 = vand.u32 %v3559, 4294901760
        %v3561 = vsub.f32 %v3559, %v3560
        %v3562 = vand.u32 %v3561, 4294901760
        %3563 = vmatmul.f32.gmra.mxu0 %v3562
        %v3564 = vpop.f32.mrf.mxu0
        %v3565 = vadd.f32 %v3472, %v3564
        %v3566 = vand.u32 %v1093, 4294901760
        %v3567 = vsub.f32 %v1093, %v3566
        %v3568 = vand.u32 %v3567, 4294901760
        %v3569 = vsub.f32 %v3567, %v3568
        %v3570 = vand.u32 %v3569, 4294901760
        %3571 = vmatmul.f32.gmra.mxu0 %v3570
        %v3572 = vpop.f32.mrf.mxu0
        %v3573 = vadd.f32 %v3476, %v3572
        %3574 = vdwg.mxu0
        %v3575 = vand.u32 %v1196, 4294901760
        %v3576 = vsub.f32 %v1196, %v3575
        %v3577 = vand.u32 %v3576, 4294901760
        %v3578 = vsub.f32 %v3576, %v3577
        %v3579 = vand.u32 %v3578, 4294901760
        %3580 = vmatpush.msra.mxu0 %v3579
        %v3581 = vand.u32 %v1193, 4294901760
        %v3582 = vsub.f32 %v1193, %v3581
        %v3583 = vand.u32 %v3582, 4294901760
        %v3584 = vsub.f32 %v3582, %v3583
        %v3585 = vand.u32 %v3584, 4294901760
        %3586 = vmatpush.msra.mxu0 %v3585
        %v3587 = vand.u32 %v1190, 4294901760
        %v3588 = vsub.f32 %v1190, %v3587
        %v3589 = vand.u32 %v3588, 4294901760
        %v3590 = vsub.f32 %v3588, %v3589
        %v3591 = vand.u32 %v3590, 4294901760
        %3592 = vmatpush.msra.mxu0 %v3591
        %v3593 = vand.u32 %v1187, 4294901760
        %v3594 = vsub.f32 %v1187, %v3593
        %v3595 = vand.u32 %v3594, 4294901760
        %v3596 = vsub.f32 %v3594, %v3595
        %v3597 = vand.u32 %v3596, 4294901760
        %3598 = vmatpush.msra.mxu0 %v3597
        %v3599 = vand.u32 %v1184, 4294901760
        %v3600 = vsub.f32 %v1184, %v3599
        %v3601 = vand.u32 %v3600, 4294901760
        %v3602 = vsub.f32 %v3600, %v3601
        %v3603 = vand.u32 %v3602, 4294901760
        %3604 = vmatpush.msra.mxu0 %v3603
        %v3605 = vand.u32 %v1181, 4294901760
        %v3606 = vsub.f32 %v1181, %v3605
        %v3607 = vand.u32 %v3606, 4294901760
        %v3608 = vsub.f32 %v3606, %v3607
        %v3609 = vand.u32 %v3608, 4294901760
        %3610 = vmatpush.msra.mxu0 %v3609
        %v3611 = vand.u32 %v1178, 4294901760
        %v3612 = vsub.f32 %v1178, %v3611
        %v3613 = vand.u32 %v3612, 4294901760
        %v3614 = vsub.f32 %v3612, %v3613
        %v3615 = vand.u32 %v3614, 4294901760
        %3616 = vmatpush.msra.mxu0 %v3615
        %v3617 = vand.u32 %v1175, 4294901760
        %v3618 = vsub.f32 %v1175, %v3617
        %v3619 = vand.u32 %v3618, 4294901760
        %v3620 = vsub.f32 %v3618, %v3619
        %v3621 = vand.u32 %v3620, 4294901760
        %3622 = vmatpush.msra.mxu0 %v3621
        %v3623 = vand.u32 %v1172, 4294901760
        %v3624 = vsub.f32 %v1172, %v3623
        %v3625 = vand.u32 %v3624, 4294901760
        %v3626 = vsub.f32 %v3624, %v3625
        %v3627 = vand.u32 %v3626, 4294901760
        %3628 = vmatpush.msra.mxu0 %v3627
        %v3629 = vand.u32 %v1169, 4294901760
        %v3630 = vsub.f32 %v1169, %v3629
        %v3631 = vand.u32 %v3630, 4294901760
        %v3632 = vsub.f32 %v3630, %v3631
        %v3633 = vand.u32 %v3632, 4294901760
        %3634 = vmatpush.msra.mxu0 %v3633
        %v3635 = vand.u32 %v1166, 4294901760
        %v3636 = vsub.f32 %v1166, %v3635
        %v3637 = vand.u32 %v3636, 4294901760
        %v3638 = vsub.f32 %v3636, %v3637
        %v3639 = vand.u32 %v3638, 4294901760
        %3640 = vmatpush.msra.mxu0 %v3639
        %v3641 = vand.u32 %v1163, 4294901760
        %v3642 = vsub.f32 %v1163, %v3641
        %v3643 = vand.u32 %v3642, 4294901760
        %v3644 = vsub.f32 %v3642, %v3643
        %v3645 = vand.u32 %v3644, 4294901760
        %3646 = vmatpush.msra.mxu0 %v3645
        %v3647 = vand.u32 %v1160, 4294901760
        %v3648 = vsub.f32 %v1160, %v3647
        %v3649 = vand.u32 %v3648, 4294901760
        %v3650 = vsub.f32 %v3648, %v3649
        %v3651 = vand.u32 %v3650, 4294901760
        %3652 = vmatpush.msra.mxu0 %v3651
        %v3653 = vand.u32 %v1157, 4294901760
        %v3654 = vsub.f32 %v1157, %v3653
        %v3655 = vand.u32 %v3654, 4294901760
        %v3656 = vsub.f32 %v3654, %v3655
        %v3657 = vand.u32 %v3656, 4294901760
        %3658 = vmatpush.msra.mxu0 %v3657
        %v3659 = vand.u32 %v1154, 4294901760
        %v3660 = vsub.f32 %v1154, %v3659
        %v3661 = vand.u32 %v3660, 4294901760
        %v3662 = vsub.f32 %v3660, %v3661
        %v3663 = vand.u32 %v3662, 4294901760
        %3664 = vmatpush.msra.mxu0 %v3663
        %v3665 = vand.u32 %v1151, 4294901760
        %v3666 = vsub.f32 %v1151, %v3665
        %v3667 = vand.u32 %v3666, 4294901760
        %v3668 = vsub.f32 %v3666, %v3667
        %v3669 = vand.u32 %v3668, 4294901760
        %3670 = vmatpush.msra.mxu0 %v3669
        %v3671 = vand.u32 %v1079, 4294901760
        %3672 = vmatmul.f32.gmra.mxu0 %v3671
        %v3673 = vpop.f32.mrf.mxu0
        %v3674 = vadd.f32 %v3517, %v3673
        %v3675 = vand.u32 %v1081, 4294901760
        %3676 = vmatmul.f32.gmra.mxu0 %v3675
        %v3677 = vpop.f32.mrf.mxu0
        %v3678 = vadd.f32 %v3525, %v3677
        %v3679 = vand.u32 %v1083, 4294901760
        %3680 = vmatmul.f32.gmra.mxu0 %v3679
        %v3681 = vpop.f32.mrf.mxu0
        %v3682 = vadd.f32 %v3533, %v3681
        %v3683 = vand.u32 %v1085, 4294901760
        %3684 = vmatmul.f32.gmra.mxu0 %v3683
        %v3685 = vpop.f32.mrf.mxu0
        %v3686 = vadd.f32 %v3541, %v3685
        %v3687 = vand.u32 %v1087, 4294901760
        %3688 = vmatmul.f32.gmra.mxu0 %v3687
        %v3689 = vpop.f32.mrf.mxu0
        %v3690 = vadd.f32 %v3549, %v3689
        %v3691 = vand.u32 %v1089, 4294901760
        %3692 = vmatmul.f32.gmra.mxu0 %v3691
        %v3693 = vpop.f32.mrf.mxu0
        %v3694 = vadd.f32 %v3557, %v3693
        %v3695 = vand.u32 %v1091, 4294901760
        %3696 = vmatmul.f32.gmra.mxu0 %v3695
        %v3697 = vpop.f32.mrf.mxu0
        %v3698 = vadd.f32 %v3565, %v3697
        %v3699 = vand.u32 %v1093, 4294901760
        %3700 = vmatmul.f32.gmra.mxu0 %v3699
        %v3701 = vpop.f32.mrf.mxu0
        %v3702 = vadd.f32 %v3573, %v3701
        %3703 = vdwg.mxu0
        %v3704 = vand.u32 %v1196, 4294901760
        %v3705 = vsub.f32 %v1196, %v3704
        %3706 = vmatpush.msra.mxu0 %v3705
        %v3707 = vand.u32 %v1193, 4294901760
        %v3708 = vsub.f32 %v1193, %v3707
        %3709 = vmatpush.msra.mxu0 %v3708
        %v3710 = vand.u32 %v1190, 4294901760
        %v3711 = vsub.f32 %v1190, %v3710
        %3712 = vmatpush.msra.mxu0 %v3711
        %v3713 = vand.u32 %v1187, 4294901760
        %v3714 = vsub.f32 %v1187, %v3713
        %3715 = vmatpush.msra.mxu0 %v3714
        %v3716 = vand.u32 %v1184, 4294901760
        %v3717 = vsub.f32 %v1184, %v3716
        %3718 = vmatpush.msra.mxu0 %v3717
        %v3719 = vand.u32 %v1181, 4294901760
        %v3720 = vsub.f32 %v1181, %v3719
        %3721 = vmatpush.msra.mxu0 %v3720
        %v3722 = vand.u32 %v1178, 4294901760
        %v3723 = vsub.f32 %v1178, %v3722
        %3724 = vmatpush.msra.mxu0 %v3723
        %v3725 = vand.u32 %v1175, 4294901760
        %v3726 = vsub.f32 %v1175, %v3725
        %3727 = vmatpush.msra.mxu0 %v3726
        %v3728 = vand.u32 %v1172, 4294901760
        %v3729 = vsub.f32 %v1172, %v3728
        %3730 = vmatpush.msra.mxu0 %v3729
        %v3731 = vand.u32 %v1169, 4294901760
        %v3732 = vsub.f32 %v1169, %v3731
        %3733 = vmatpush.msra.mxu0 %v3732
        %v3734 = vand.u32 %v1166, 4294901760
        %v3735 = vsub.f32 %v1166, %v3734
        %3736 = vmatpush.msra.mxu0 %v3735
        %v3737 = vand.u32 %v1163, 4294901760
        %v3738 = vsub.f32 %v1163, %v3737
        %3739 = vmatpush.msra.mxu0 %v3738
        %v3740 = vand.u32 %v1160, 4294901760
        %v3741 = vsub.f32 %v1160, %v3740
        %3742 = vmatpush.msra.mxu0 %v3741
        %v3743 = vand.u32 %v1157, 4294901760
        %v3744 = vsub.f32 %v1157, %v3743
        %3745 = vmatpush.msra.mxu0 %v3744
        %v3746 = vand.u32 %v1154, 4294901760
        %v3747 = vsub.f32 %v1154, %v3746
        %3748 = vmatpush.msra.mxu0 %v3747
        %v3749 = vand.u32 %v1151, 4294901760
        %v3750 = vsub.f32 %v1151, %v3749
        %3751 = vmatpush.msra.mxu0 %v3750
        %v3752 = vand.u32 %v1079, 4294901760
        %v3753 = vsub.f32 %v1079, %v3752
        %3754 = vmatmul.f32.gmra.mxu0 %v3753
        %v3755 = vpop.f32.mrf.mxu0
        %v3756 = vadd.f32 %v3674, %v3755
        %v3757 = vand.u32 %v1081, 4294901760
        %v3758 = vsub.f32 %v1081, %v3757
        %3759 = vmatmul.f32.gmra.mxu0 %v3758
        %v3760 = vpop.f32.mrf.mxu0
        %v3761 = vadd.f32 %v3678, %v3760
        %v3762 = vand.u32 %v1083, 4294901760
        %v3763 = vsub.f32 %v1083, %v3762
        %3764 = vmatmul.f32.gmra.mxu0 %v3763
        %v3765 = vpop.f32.mrf.mxu0
        %v3766 = vadd.f32 %v3682, %v3765
        %v3767 = vand.u32 %v1085, 4294901760
        %v3768 = vsub.f32 %v1085, %v3767
        %3769 = vmatmul.f32.gmra.mxu0 %v3768
        %v3770 = vpop.f32.mrf.mxu0
        %v3771 = vadd.f32 %v3686, %v3770
        %v3772 = vand.u32 %v1087, 4294901760
        %v3773 = vsub.f32 %v1087, %v3772
        %3774 = vmatmul.f32.gmra.mxu0 %v3773
        %v3775 = vpop.f32.mrf.mxu0
        %v3776 = vadd.f32 %v3690, %v3775
        %v3777 = vand.u32 %v1089, 4294901760
        %v3778 = vsub.f32 %v1089, %v3777
        %3779 = vmatmul.f32.gmra.mxu0 %v3778
        %v3780 = vpop.f32.mrf.mxu0
        %v3781 = vadd.f32 %v3694, %v3780
        %v3782 = vand.u32 %v1091, 4294901760
        %v3783 = vsub.f32 %v1091, %v3782
        %3784 = vmatmul.f32.gmra.mxu0 %v3783
        %v3785 = vpop.f32.mrf.mxu0
        %v3786 = vadd.f32 %v3698, %v3785
        %v3787 = vand.u32 %v1093, 4294901760
        %v3788 = vsub.f32 %v1093, %v3787
        %3789 = vmatmul.f32.gmra.mxu0 %v3788
        %v3790 = vpop.f32.mrf.mxu0
        %v3791 = vadd.f32 %v3702, %v3790
        %3792 = vdwg.mxu0
        %v3793 = vand.u32 %v1196, 4294901760
        %3794 = vmatpush.msra.mxu0 %v3793
        %v3795 = vand.u32 %v1193, 4294901760
        %3796 = vmatpush.msra.mxu0 %v3795
        %v3797 = vand.u32 %v1190, 4294901760
        %3798 = vmatpush.msra.mxu0 %v3797
        %v3799 = vand.u32 %v1187, 4294901760
        %3800 = vmatpush.msra.mxu0 %v3799
        %v3801 = vand.u32 %v1184, 4294901760
        %3802 = vmatpush.msra.mxu0 %v3801
        %v3803 = vand.u32 %v1181, 4294901760
        %3804 = vmatpush.msra.mxu0 %v3803
        %v3805 = vand.u32 %v1178, 4294901760
        %3806 = vmatpush.msra.mxu0 %v3805
        %v3807 = vand.u32 %v1175, 4294901760
        %3808 = vmatpush.msra.mxu0 %v3807
        %v3809 = vand.u32 %v1172, 4294901760
        %3810 = vmatpush.msra.mxu0 %v3809
        %v3811 = vand.u32 %v1169, 4294901760
        %3812 = vmatpush.msra.mxu0 %v3811
        %v3813 = vand.u32 %v1166, 4294901760
        %3814 = vmatpush.msra.mxu0 %v3813
        %v3815 = vand.u32 %v1163, 4294901760
        %3816 = vmatpush.msra.mxu0 %v3815
        %v3817 = vand.u32 %v1160, 4294901760
        %3818 = vmatpush.msra.mxu0 %v3817
        %v3819 = vand.u32 %v1157, 4294901760
        %3820 = vmatpush.msra.mxu0 %v3819
        %v3821 = vand.u32 %v1154, 4294901760
        %3822 = vmatpush.msra.mxu0 %v3821
        %v3823 = vand.u32 %v1151, 4294901760
        %3824 = vmatpush.msra.mxu0 %v3823
        %v3825 = vand.u32 %v1079, 4294901760
        %v3826 = vsub.f32 %v1079, %v3825
        %v3827 = vand.u32 %v3826, 4294901760
        %3828 = vmatmul.f32.gmra.mxu0 %v3827
        %v3829 = vpop.f32.mrf.mxu0
        %v3830 = vadd.f32 %v3756, %v3829
        %v3831 = vand.u32 %v1081, 4294901760
        %v3832 = vsub.f32 %v1081, %v3831
        %v3833 = vand.u32 %v3832, 4294901760
        %3834 = vmatmul.f32.gmra.mxu0 %v3833
        %v3835 = vpop.f32.mrf.mxu0
        %v3836 = vadd.f32 %v3761, %v3835
        %v3837 = vand.u32 %v1083, 4294901760
        %v3838 = vsub.f32 %v1083, %v3837
        %v3839 = vand.u32 %v3838, 4294901760
        %3840 = vmatmul.f32.gmra.mxu0 %v3839
        %v3841 = vpop.f32.mrf.mxu0
        %v3842 = vadd.f32 %v3766, %v3841
        %v3843 = vand.u32 %v1085, 4294901760
        %v3844 = vsub.f32 %v1085, %v3843
        %v3845 = vand.u32 %v3844, 4294901760
        %3846 = vmatmul.f32.gmra.mxu0 %v3845
        %v3847 = vpop.f32.mrf.mxu0
        %v3848 = vadd.f32 %v3771, %v3847
        %v3849 = vand.u32 %v1087, 4294901760
        %v3850 = vsub.f32 %v1087, %v3849
        %v3851 = vand.u32 %v3850, 4294901760
        %3852 = vmatmul.f32.gmra.mxu0 %v3851
        %v3853 = vpop.f32.mrf.mxu0
        %v3854 = vadd.f32 %v3776, %v3853
        %v3855 = vand.u32 %v1089, 4294901760
        %v3856 = vsub.f32 %v1089, %v3855
        %v3857 = vand.u32 %v3856, 4294901760
        %3858 = vmatmul.f32.gmra.mxu0 %v3857
        %v3859 = vpop.f32.mrf.mxu0
        %v3860 = vadd.f32 %v3781, %v3859
        %v3861 = vand.u32 %v1091, 4294901760
        %v3862 = vsub.f32 %v1091, %v3861
        %v3863 = vand.u32 %v3862, 4294901760
        %3864 = vmatmul.f32.gmra.mxu0 %v3863
        %v3865 = vpop.f32.mrf.mxu0
        %v3866 = vadd.f32 %v3786, %v3865
        %v3867 = vand.u32 %v1093, 4294901760
        %v3868 = vsub.f32 %v1093, %v3867
        %v3869 = vand.u32 %v3868, 4294901760
        %3870 = vmatmul.f32.gmra.mxu0 %v3869
        %v3871 = vpop.f32.mrf.mxu0
        %v3872 = vadd.f32 %v3791, %v3871
        %3873 = vdwg.mxu0
        %v3874 = vand.u32 %v1196, 4294901760
        %v3875 = vsub.f32 %v1196, %v3874
        %v3876 = vand.u32 %v3875, 4294901760
        %3877 = vmatpush.msra.mxu0 %v3876
        %v3878 = vand.u32 %v1193, 4294901760
        %v3879 = vsub.f32 %v1193, %v3878
        %v3880 = vand.u32 %v3879, 4294901760
        %3881 = vmatpush.msra.mxu0 %v3880
        %v3882 = vand.u32 %v1190, 4294901760
        %v3883 = vsub.f32 %v1190, %v3882
        %v3884 = vand.u32 %v3883, 4294901760
        %3885 = vmatpush.msra.mxu0 %v3884
        %v3886 = vand.u32 %v1187, 4294901760
        %v3887 = vsub.f32 %v1187, %v3886
        %v3888 = vand.u32 %v3887, 4294901760
        %3889 = vmatpush.msra.mxu0 %v3888
        %v3890 = vand.u32 %v1184, 4294901760
        %v3891 = vsub.f32 %v1184, %v3890
        %v3892 = vand.u32 %v3891, 4294901760
        %3893 = vmatpush.msra.mxu0 %v3892
        %v3894 = vand.u32 %v1181, 4294901760
        %v3895 = vsub.f32 %v1181, %v3894
        %v3896 = vand.u32 %v3895, 4294901760
        %3897 = vmatpush.msra.mxu0 %v3896
        %v3898 = vand.u32 %v1178, 4294901760
        %v3899 = vsub.f32 %v1178, %v3898
        %v3900 = vand.u32 %v3899, 4294901760
        %3901 = vmatpush.msra.mxu0 %v3900
        %v3902 = vand.u32 %v1175, 4294901760
        %v3903 = vsub.f32 %v1175, %v3902
        %v3904 = vand.u32 %v3903, 4294901760
        %3905 = vmatpush.msra.mxu0 %v3904
        %v3906 = vand.u32 %v1172, 4294901760
        %v3907 = vsub.f32 %v1172, %v3906
        %v3908 = vand.u32 %v3907, 4294901760
        %3909 = vmatpush.msra.mxu0 %v3908
        %v3910 = vand.u32 %v1169, 4294901760
        %v3911 = vsub.f32 %v1169, %v3910
        %v3912 = vand.u32 %v3911, 4294901760
        %3913 = vmatpush.msra.mxu0 %v3912
        %v3914 = vand.u32 %v1166, 4294901760
        %v3915 = vsub.f32 %v1166, %v3914
        %v3916 = vand.u32 %v3915, 4294901760
        %3917 = vmatpush.msra.mxu0 %v3916
        %v3918 = vand.u32 %v1163, 4294901760
        %v3919 = vsub.f32 %v1163, %v3918
        %v3920 = vand.u32 %v3919, 4294901760
        %3921 = vmatpush.msra.mxu0 %v3920
        %v3922 = vand.u32 %v1160, 4294901760
        %v3923 = vsub.f32 %v1160, %v3922
        %v3924 = vand.u32 %v3923, 4294901760
        %3925 = vmatpush.msra.mxu0 %v3924
        %v3926 = vand.u32 %v1157, 4294901760
        %v3927 = vsub.f32 %v1157, %v3926
        %v3928 = vand.u32 %v3927, 4294901760
        %3929 = vmatpush.msra.mxu0 %v3928
        %v3930 = vand.u32 %v1154, 4294901760
        %v3931 = vsub.f32 %v1154, %v3930
        %v3932 = vand.u32 %v3931, 4294901760
        %3933 = vmatpush.msra.mxu0 %v3932
        %v3934 = vand.u32 %v1151, 4294901760
        %v3935 = vsub.f32 %v1151, %v3934
        %v3936 = vand.u32 %v3935, 4294901760
        %3937 = vmatpush.msra.mxu0 %v3936
        %v3938 = vand.u32 %v1079, 4294901760
        %3939 = vmatmul.f32.gmra.mxu0 %v3938
        %v3940 = vpop.f32.mrf.mxu0
        %v3941 = vadd.f32 %v3830, %v3940
        %v3942 = vand.u32 %v1081, 4294901760
        %3943 = vmatmul.f32.gmra.mxu0 %v3942
        %v3944 = vpop.f32.mrf.mxu0
        %v3945 = vadd.f32 %v3836, %v3944
        %v3946 = vand.u32 %v1083, 4294901760
        %3947 = vmatmul.f32.gmra.mxu0 %v3946
        %v3948 = vpop.f32.mrf.mxu0
        %v3949 = vadd.f32 %v3842, %v3948
        %v3950 = vand.u32 %v1085, 4294901760
        %3951 = vmatmul.f32.gmra.mxu0 %v3950
        %v3952 = vpop.f32.mrf.mxu0
        %v3953 = vadd.f32 %v3848, %v3952
        %v3954 = vand.u32 %v1087, 4294901760
        %3955 = vmatmul.f32.gmra.mxu0 %v3954
        %v3956 = vpop.f32.mrf.mxu0
        %v3957 = vadd.f32 %v3854, %v3956
        %v3958 = vand.u32 %v1089, 4294901760
        %3959 = vmatmul.f32.gmra.mxu0 %v3958
        %v3960 = vpop.f32.mrf.mxu0
        %v3961 = vadd.f32 %v3860, %v3960
        %v3962 = vand.u32 %v1091, 4294901760
        %3963 = vmatmul.f32.gmra.mxu0 %v3962
        %v3964 = vpop.f32.mrf.mxu0
        %v3965 = vadd.f32 %v3866, %v3964
        %v3966 = vand.u32 %v1093, 4294901760
        %3967 = vmatmul.f32.gmra.mxu0 %v3966
        %v3968 = vpop.f32.mrf.mxu0
        %v3969 = vadd.f32 %v3872, %v3968
        %3970 = vdwg.mxu0
        %v3971 = vand.u32 %v1196, 4294901760
        %3972 = vmatpush.msra.mxu0 %v3971
        %v3973 = vand.u32 %v1193, 4294901760
        %3974 = vmatpush.msra.mxu0 %v3973
        %v3975 = vand.u32 %v1190, 4294901760
        %3976 = vmatpush.msra.mxu0 %v3975
        %v3977 = vand.u32 %v1187, 4294901760
        %3978 = vmatpush.msra.mxu0 %v3977
        %v3979 = vand.u32 %v1184, 4294901760
        %3980 = vmatpush.msra.mxu0 %v3979
        %v3981 = vand.u32 %v1181, 4294901760
        %3982 = vmatpush.msra.mxu0 %v3981
        %v3983 = vand.u32 %v1178, 4294901760
        %3984 = vmatpush.msra.mxu0 %v3983
        %v3985 = vand.u32 %v1175, 4294901760
        %3986 = vmatpush.msra.mxu0 %v3985
        %v3987 = vand.u32 %v1172, 4294901760
        %3988 = vmatpush.msra.mxu0 %v3987
        %v3989 = vand.u32 %v1169, 4294901760
        %3990 = vmatpush.msra.mxu0 %v3989
        %v3991 = vand.u32 %v1166, 4294901760
        %3992 = vmatpush.msra.mxu0 %v3991
        %v3993 = vand.u32 %v1163, 4294901760
        %3994 = vmatpush.msra.mxu0 %v3993
        %v3995 = vand.u32 %v1160, 4294901760
        %3996 = vmatpush.msra.mxu0 %v3995
        %v3997 = vand.u32 %v1157, 4294901760
        %3998 = vmatpush.msra.mxu0 %v3997
        %v3999 = vand.u32 %v1154, 4294901760
        %4000 = vmatpush.msra.mxu0 %v3999
        %v4001 = vand.u32 %v1151, 4294901760
        %4002 = vmatpush.msra.mxu0 %v4001
        %v4003 = vand.u32 %v1079, 4294901760
        %4004 = vmatmul.f32.gmra.mxu0 %v4003
        %v4005 = vpop.f32.mrf.mxu0
        %v4006 = vadd.f32 %v3941, %v4005
        %v4007 = vand.u32 %v1081, 4294901760
        %4008 = vmatmul.f32.gmra.mxu0 %v4007
        %v4009 = vpop.f32.mrf.mxu0
        %v4010 = vadd.f32 %v3945, %v4009
        %v4011 = vand.u32 %v1083, 4294901760
        %4012 = vmatmul.f32.gmra.mxu0 %v4011
        %v4013 = vpop.f32.mrf.mxu0
        %v4014 = vadd.f32 %v3949, %v4013
        %v4015 = vand.u32 %v1085, 4294901760
        %4016 = vmatmul.f32.gmra.mxu0 %v4015
        %v4017 = vpop.f32.mrf.mxu0
        %v4018 = vadd.f32 %v3953, %v4017
        %v4019 = vand.u32 %v1087, 4294901760
        %4020 = vmatmul.f32.gmra.mxu0 %v4019
        %v4021 = vpop.f32.mrf.mxu0
        %v4022 = vadd.f32 %v3957, %v4021
        %v4023 = vand.u32 %v1089, 4294901760
        %4024 = vmatmul.f32.gmra.mxu0 %v4023
        %v4025 = vpop.f32.mrf.mxu0
        %v4026 = vadd.f32 %v3961, %v4025
        %v4027 = vand.u32 %v1091, 4294901760
        %4028 = vmatmul.f32.gmra.mxu0 %v4027
        %v4029 = vpop.f32.mrf.mxu0
        %v4030 = vadd.f32 %v3965, %v4029
        %v4031 = vand.u32 %v1093, 4294901760
        %4032 = vmatmul.f32.gmra.mxu0 %v4031
        %v4033 = vpop.f32.mrf.mxu0
        %v4034 = vadd.f32 %v3969, %v4033
        %4035 = vdwg.mxu0
        %v4036 = vand.u32 %v1244, 4294901760
        %4037 = vmatpush.msra.mxu0 %v4036
        %v4038 = vand.u32 %v1241, 4294901760
        %4039 = vmatpush.msra.mxu0 %v4038
        %v4040 = vand.u32 %v1238, 4294901760
        %4041 = vmatpush.msra.mxu0 %v4040
        %v4042 = vand.u32 %v1235, 4294901760
        %4043 = vmatpush.msra.mxu0 %v4042
        %v4044 = vand.u32 %v1232, 4294901760
        %4045 = vmatpush.msra.mxu0 %v4044
        %v4046 = vand.u32 %v1229, 4294901760
        %4047 = vmatpush.msra.mxu0 %v4046
        %v4048 = vand.u32 %v1226, 4294901760
        %4049 = vmatpush.msra.mxu0 %v4048
        %v4050 = vand.u32 %v1223, 4294901760
        %4051 = vmatpush.msra.mxu0 %v4050
        %v4052 = vand.u32 %v1220, 4294901760
        %4053 = vmatpush.msra.mxu0 %v4052
        %v4054 = vand.u32 %v1217, 4294901760
        %4055 = vmatpush.msra.mxu0 %v4054
        %v4056 = vand.u32 %v1214, 4294901760
        %4057 = vmatpush.msra.mxu0 %v4056
        %v4058 = vand.u32 %v1211, 4294901760
        %4059 = vmatpush.msra.mxu0 %v4058
        %v4060 = vand.u32 %v1208, 4294901760
        %4061 = vmatpush.msra.mxu0 %v4060
        %v4062 = vand.u32 %v1205, 4294901760
        %4063 = vmatpush.msra.mxu0 %v4062
        %v4064 = vand.u32 %v1202, 4294901760
        %4065 = vmatpush.msra.mxu0 %v4064
        %v4066 = vand.u32 %v1199, 4294901760
        %4067 = vmatpush.msra.mxu0 %v4066
        %v4068 = vand.u32 %v1094, 4294901760
        %v4069 = vsub.f32 %v1094, %v4068
        %v4070 = vand.u32 %v4069, 4294901760
        %v4071 = vsub.f32 %v4069, %v4070
        %v4072 = vand.u32 %v4071, 4294901760
        %4073 = vmatmul.f32.gmra.mxu0 %v4072
        %v4074 = vpop.f32.mrf.mxu0
        %v4075 = vadd.f32 %v4006, %v4074
        %v4076 = vand.u32 %v1095, 4294901760
        %v4077 = vsub.f32 %v1095, %v4076
        %v4078 = vand.u32 %v4077, 4294901760
        %v4079 = vsub.f32 %v4077, %v4078
        %v4080 = vand.u32 %v4079, 4294901760
        %4081 = vmatmul.f32.gmra.mxu0 %v4080
        %v4082 = vpop.f32.mrf.mxu0
        %v4083 = vadd.f32 %v4010, %v4082
        %v4084 = vand.u32 %v1096, 4294901760
        %v4085 = vsub.f32 %v1096, %v4084
        %v4086 = vand.u32 %v4085, 4294901760
        %v4087 = vsub.f32 %v4085, %v4086
        %v4088 = vand.u32 %v4087, 4294901760
        %4089 = vmatmul.f32.gmra.mxu0 %v4088
        %v4090 = vpop.f32.mrf.mxu0
        %v4091 = vadd.f32 %v4014, %v4090
        %v4092 = vand.u32 %v1097, 4294901760
        %v4093 = vsub.f32 %v1097, %v4092
        %v4094 = vand.u32 %v4093, 4294901760
        %v4095 = vsub.f32 %v4093, %v4094
        %v4096 = vand.u32 %v4095, 4294901760
        %4097 = vmatmul.f32.gmra.mxu0 %v4096
        %v4098 = vpop.f32.mrf.mxu0
        %v4099 = vadd.f32 %v4018, %v4098
        %v4100 = vand.u32 %v1098, 4294901760
        %v4101 = vsub.f32 %v1098, %v4100
        %v4102 = vand.u32 %v4101, 4294901760
        %v4103 = vsub.f32 %v4101, %v4102
        %v4104 = vand.u32 %v4103, 4294901760
        %4105 = vmatmul.f32.gmra.mxu0 %v4104
        %v4106 = vpop.f32.mrf.mxu0
        %v4107 = vadd.f32 %v4022, %v4106
        %v4108 = vand.u32 %v1099, 4294901760
        %v4109 = vsub.f32 %v1099, %v4108
        %v4110 = vand.u32 %v4109, 4294901760
        %v4111 = vsub.f32 %v4109, %v4110
        %v4112 = vand.u32 %v4111, 4294901760
        %4113 = vmatmul.f32.gmra.mxu0 %v4112
        %v4114 = vpop.f32.mrf.mxu0
        %v4115 = vadd.f32 %v4026, %v4114
        %v4116 = vand.u32 %v1100, 4294901760
        %v4117 = vsub.f32 %v1100, %v4116
        %v4118 = vand.u32 %v4117, 4294901760
        %v4119 = vsub.f32 %v4117, %v4118
        %v4120 = vand.u32 %v4119, 4294901760
        %4121 = vmatmul.f32.gmra.mxu0 %v4120
        %v4122 = vpop.f32.mrf.mxu0
        %v4123 = vadd.f32 %v4030, %v4122
        %v4124 = vand.u32 %v1101, 4294901760
        %v4125 = vsub.f32 %v1101, %v4124
        %v4126 = vand.u32 %v4125, 4294901760
        %v4127 = vsub.f32 %v4125, %v4126
        %v4128 = vand.u32 %v4127, 4294901760
        %4129 = vmatmul.f32.gmra.mxu0 %v4128
        %v4130 = vpop.f32.mrf.mxu0
        %v4131 = vadd.f32 %v4034, %v4130
        %4132 = vdwg.mxu0
        %v4133 = vand.u32 %v1244, 4294901760
        %v4134 = vsub.f32 %v1244, %v4133
        %v4135 = vand.u32 %v4134, 4294901760
        %v4136 = vsub.f32 %v4134, %v4135
        %v4137 = vand.u32 %v4136, 4294901760
        %4138 = vmatpush.msra.mxu0 %v4137
        %v4139 = vand.u32 %v1241, 4294901760
        %v4140 = vsub.f32 %v1241, %v4139
        %v4141 = vand.u32 %v4140, 4294901760
        %v4142 = vsub.f32 %v4140, %v4141
        %v4143 = vand.u32 %v4142, 4294901760
        %4144 = vmatpush.msra.mxu0 %v4143
        %v4145 = vand.u32 %v1238, 4294901760
        %v4146 = vsub.f32 %v1238, %v4145
        %v4147 = vand.u32 %v4146, 4294901760
        %v4148 = vsub.f32 %v4146, %v4147
        %v4149 = vand.u32 %v4148, 4294901760
        %4150 = vmatpush.msra.mxu0 %v4149
        %v4151 = vand.u32 %v1235, 4294901760
        %v4152 = vsub.f32 %v1235, %v4151
        %v4153 = vand.u32 %v4152, 4294901760
        %v4154 = vsub.f32 %v4152, %v4153
        %v4155 = vand.u32 %v4154, 4294901760
        %4156 = vmatpush.msra.mxu0 %v4155
        %v4157 = vand.u32 %v1232, 4294901760
        %v4158 = vsub.f32 %v1232, %v4157
        %v4159 = vand.u32 %v4158, 4294901760
        %v4160 = vsub.f32 %v4158, %v4159
        %v4161 = vand.u32 %v4160, 4294901760
        %4162 = vmatpush.msra.mxu0 %v4161
        %v4163 = vand.u32 %v1229, 4294901760
        %v4164 = vsub.f32 %v1229, %v4163
        %v4165 = vand.u32 %v4164, 4294901760
        %v4166 = vsub.f32 %v4164, %v4165
        %v4167 = vand.u32 %v4166, 4294901760
        %4168 = vmatpush.msra.mxu0 %v4167
        %v4169 = vand.u32 %v1226, 4294901760
        %v4170 = vsub.f32 %v1226, %v4169
        %v4171 = vand.u32 %v4170, 4294901760
        %v4172 = vsub.f32 %v4170, %v4171
        %v4173 = vand.u32 %v4172, 4294901760
        %4174 = vmatpush.msra.mxu0 %v4173
        %v4175 = vand.u32 %v1223, 4294901760
        %v4176 = vsub.f32 %v1223, %v4175
        %v4177 = vand.u32 %v4176, 4294901760
        %v4178 = vsub.f32 %v4176, %v4177
        %v4179 = vand.u32 %v4178, 4294901760
        %4180 = vmatpush.msra.mxu0 %v4179
        %v4181 = vand.u32 %v1220, 4294901760
        %v4182 = vsub.f32 %v1220, %v4181
        %v4183 = vand.u32 %v4182, 4294901760
        %v4184 = vsub.f32 %v4182, %v4183
        %v4185 = vand.u32 %v4184, 4294901760
        %4186 = vmatpush.msra.mxu0 %v4185
        %v4187 = vand.u32 %v1217, 4294901760
        %v4188 = vsub.f32 %v1217, %v4187
        %v4189 = vand.u32 %v4188, 4294901760
        %v4190 = vsub.f32 %v4188, %v4189
        %v4191 = vand.u32 %v4190, 4294901760
        %4192 = vmatpush.msra.mxu0 %v4191
        %v4193 = vand.u32 %v1214, 4294901760
        %v4194 = vsub.f32 %v1214, %v4193
        %v4195 = vand.u32 %v4194, 4294901760
        %v4196 = vsub.f32 %v4194, %v4195
        %v4197 = vand.u32 %v4196, 4294901760
        %4198 = vmatpush.msra.mxu0 %v4197
        %v4199 = vand.u32 %v1211, 4294901760
        %v4200 = vsub.f32 %v1211, %v4199
        %v4201 = vand.u32 %v4200, 4294901760
        %v4202 = vsub.f32 %v4200, %v4201
        %v4203 = vand.u32 %v4202, 4294901760
        %4204 = vmatpush.msra.mxu0 %v4203
        %v4205 = vand.u32 %v1208, 4294901760
        %v4206 = vsub.f32 %v1208, %v4205
        %v4207 = vand.u32 %v4206, 4294901760
        %v4208 = vsub.f32 %v4206, %v4207
        %v4209 = vand.u32 %v4208, 4294901760
        %4210 = vmatpush.msra.mxu0 %v4209
        %v4211 = vand.u32 %v1205, 4294901760
        %v4212 = vsub.f32 %v1205, %v4211
        %v4213 = vand.u32 %v4212, 4294901760
        %v4214 = vsub.f32 %v4212, %v4213
        %v4215 = vand.u32 %v4214, 4294901760
        %4216 = vmatpush.msra.mxu0 %v4215
        %v4217 = vand.u32 %v1202, 4294901760
        %v4218 = vsub.f32 %v1202, %v4217
        %v4219 = vand.u32 %v4218, 4294901760
        %v4220 = vsub.f32 %v4218, %v4219
        %v4221 = vand.u32 %v4220, 4294901760
        %4222 = vmatpush.msra.mxu0 %v4221
        %v4223 = vand.u32 %v1199, 4294901760
        %v4224 = vsub.f32 %v1199, %v4223
        %v4225 = vand.u32 %v4224, 4294901760
        %v4226 = vsub.f32 %v4224, %v4225
        %v4227 = vand.u32 %v4226, 4294901760
        %4228 = vmatpush.msra.mxu0 %v4227
        %v4229 = vand.u32 %v1094, 4294901760
        %4230 = vmatmul.f32.gmra.mxu0 %v4229
        %v4231 = vpop.f32.mrf.mxu0
        %v4232 = vadd.f32 %v4075, %v4231
        %v4233 = vand.u32 %v1095, 4294901760
        %4234 = vmatmul.f32.gmra.mxu0 %v4233
        %v4235 = vpop.f32.mrf.mxu0
        %v4236 = vadd.f32 %v4083, %v4235
        %v4237 = vand.u32 %v1096, 4294901760
        %4238 = vmatmul.f32.gmra.mxu0 %v4237
        %v4239 = vpop.f32.mrf.mxu0
        %v4240 = vadd.f32 %v4091, %v4239
        %v4241 = vand.u32 %v1097, 4294901760
        %4242 = vmatmul.f32.gmra.mxu0 %v4241
        %v4243 = vpop.f32.mrf.mxu0
        %v4244 = vadd.f32 %v4099, %v4243
        %v4245 = vand.u32 %v1098, 4294901760
        %4246 = vmatmul.f32.gmra.mxu0 %v4245
        %v4247 = vpop.f32.mrf.mxu0
        %v4248 = vadd.f32 %v4107, %v4247
        %v4249 = vand.u32 %v1099, 4294901760
        %4250 = vmatmul.f32.gmra.mxu0 %v4249
        %v4251 = vpop.f32.mrf.mxu0
        %v4252 = vadd.f32 %v4115, %v4251
        %v4253 = vand.u32 %v1100, 4294901760
        %4254 = vmatmul.f32.gmra.mxu0 %v4253
        %v4255 = vpop.f32.mrf.mxu0
        %v4256 = vadd.f32 %v4123, %v4255
        %v4257 = vand.u32 %v1101, 4294901760
        %4258 = vmatmul.f32.gmra.mxu0 %v4257
        %v4259 = vpop.f32.mrf.mxu0
        %v4260 = vadd.f32 %v4131, %v4259
        %4261 = vdwg.mxu0
        %v4262 = vand.u32 %v1244, 4294901760
        %v4263 = vsub.f32 %v1244, %v4262
        %4264 = vmatpush.msra.mxu0 %v4263
        %v4265 = vand.u32 %v1241, 4294901760
        %v4266 = vsub.f32 %v1241, %v4265
        %4267 = vmatpush.msra.mxu0 %v4266
        %v4268 = vand.u32 %v1238, 4294901760
        %v4269 = vsub.f32 %v1238, %v4268
        %4270 = vmatpush.msra.mxu0 %v4269
        %v4271 = vand.u32 %v1235, 4294901760
        %v4272 = vsub.f32 %v1235, %v4271
        %4273 = vmatpush.msra.mxu0 %v4272
        %v4274 = vand.u32 %v1232, 4294901760
        %v4275 = vsub.f32 %v1232, %v4274
        %4276 = vmatpush.msra.mxu0 %v4275
        %v4277 = vand.u32 %v1229, 4294901760
        %v4278 = vsub.f32 %v1229, %v4277
        %4279 = vmatpush.msra.mxu0 %v4278
        %v4280 = vand.u32 %v1226, 4294901760
        %v4281 = vsub.f32 %v1226, %v4280
        %4282 = vmatpush.msra.mxu0 %v4281
        %v4283 = vand.u32 %v1223, 4294901760
        %v4284 = vsub.f32 %v1223, %v4283
        %4285 = vmatpush.msra.mxu0 %v4284
        %v4286 = vand.u32 %v1220, 4294901760
        %v4287 = vsub.f32 %v1220, %v4286
        %4288 = vmatpush.msra.mxu0 %v4287
        %v4289 = vand.u32 %v1217, 4294901760
        %v4290 = vsub.f32 %v1217, %v4289
        %4291 = vmatpush.msra.mxu0 %v4290
        %v4292 = vand.u32 %v1214, 4294901760
        %v4293 = vsub.f32 %v1214, %v4292
        %4294 = vmatpush.msra.mxu0 %v4293
        %v4295 = vand.u32 %v1211, 4294901760
        %v4296 = vsub.f32 %v1211, %v4295
        %4297 = vmatpush.msra.mxu0 %v4296
        %v4298 = vand.u32 %v1208, 4294901760
        %v4299 = vsub.f32 %v1208, %v4298
        %4300 = vmatpush.msra.mxu0 %v4299
        %v4301 = vand.u32 %v1205, 4294901760
        %v4302 = vsub.f32 %v1205, %v4301
        %4303 = vmatpush.msra.mxu0 %v4302
        %v4304 = vand.u32 %v1202, 4294901760
        %v4305 = vsub.f32 %v1202, %v4304
        %4306 = vmatpush.msra.mxu0 %v4305
        %v4307 = vand.u32 %v1199, 4294901760
        %v4308 = vsub.f32 %v1199, %v4307
        %4309 = vmatpush.msra.mxu0 %v4308
        %v4310 = vand.u32 %v1094, 4294901760
        %v4311 = vsub.f32 %v1094, %v4310
        %4312 = vmatmul.f32.gmra.mxu0 %v4311
        %v4313 = vpop.f32.mrf.mxu0
        %v4314 = vadd.f32 %v4232, %v4313
        %v4315 = vand.u32 %v1095, 4294901760
        %v4316 = vsub.f32 %v1095, %v4315
        %4317 = vmatmul.f32.gmra.mxu0 %v4316
        %v4318 = vpop.f32.mrf.mxu0
        %v4319 = vadd.f32 %v4236, %v4318
        %v4320 = vand.u32 %v1096, 4294901760
        %v4321 = vsub.f32 %v1096, %v4320
        %4322 = vmatmul.f32.gmra.mxu0 %v4321
        %v4323 = vpop.f32.mrf.mxu0
        %v4324 = vadd.f32 %v4240, %v4323
        %v4325 = vand.u32 %v1097, 4294901760
        %v4326 = vsub.f32 %v1097, %v4325
        %4327 = vmatmul.f32.gmra.mxu0 %v4326
        %v4328 = vpop.f32.mrf.mxu0
        %v4329 = vadd.f32 %v4244, %v4328
        %v4330 = vand.u32 %v1098, 4294901760
        %v4331 = vsub.f32 %v1098, %v4330
        %4332 = vmatmul.f32.gmra.mxu0 %v4331
        %v4333 = vpop.f32.mrf.mxu0
        %v4334 = vadd.f32 %v4248, %v4333
        %v4335 = vand.u32 %v1099, 4294901760
        %v4336 = vsub.f32 %v1099, %v4335
        %4337 = vmatmul.f32.gmra.mxu0 %v4336
        %v4338 = vpop.f32.mrf.mxu0
        %v4339 = vadd.f32 %v4252, %v4338
        %v4340 = vand.u32 %v1100, 4294901760
        %v4341 = vsub.f32 %v1100, %v4340
        %4342 = vmatmul.f32.gmra.mxu0 %v4341
        %v4343 = vpop.f32.mrf.mxu0
        %v4344 = vadd.f32 %v4256, %v4343
        %v4345 = vand.u32 %v1101, 4294901760
        %v4346 = vsub.f32 %v1101, %v4345
        %4347 = vmatmul.f32.gmra.mxu0 %v4346
        %v4348 = vpop.f32.mrf.mxu0
        %v4349 = vadd.f32 %v4260, %v4348
        %4350 = vdwg.mxu0
        %v4351 = vand.u32 %v1244, 4294901760
        %4352 = vmatpush.msra.mxu0 %v4351
        %v4353 = vand.u32 %v1241, 4294901760
        %4354 = vmatpush.msra.mxu0 %v4353
        %v4355 = vand.u32 %v1238, 4294901760
        %4356 = vmatpush.msra.mxu0 %v4355
        %v4357 = vand.u32 %v1235, 4294901760
        %4358 = vmatpush.msra.mxu0 %v4357
        %v4359 = vand.u32 %v1232, 4294901760
        %4360 = vmatpush.msra.mxu0 %v4359
        %v4361 = vand.u32 %v1229, 4294901760
        %4362 = vmatpush.msra.mxu0 %v4361
        %v4363 = vand.u32 %v1226, 4294901760
        %4364 = vmatpush.msra.mxu0 %v4363
        %v4365 = vand.u32 %v1223, 4294901760
        %4366 = vmatpush.msra.mxu0 %v4365
        %v4367 = vand.u32 %v1220, 4294901760
        %4368 = vmatpush.msra.mxu0 %v4367
        %v4369 = vand.u32 %v1217, 4294901760
        %4370 = vmatpush.msra.mxu0 %v4369
        %v4371 = vand.u32 %v1214, 4294901760
        %4372 = vmatpush.msra.mxu0 %v4371
        %v4373 = vand.u32 %v1211, 4294901760
        %4374 = vmatpush.msra.mxu0 %v4373
        %v4375 = vand.u32 %v1208, 4294901760
        %4376 = vmatpush.msra.mxu0 %v4375
        %v4377 = vand.u32 %v1205, 4294901760
        %4378 = vmatpush.msra.mxu0 %v4377
        %v4379 = vand.u32 %v1202, 4294901760
        %4380 = vmatpush.msra.mxu0 %v4379
        %v4381 = vand.u32 %v1199, 4294901760
        %4382 = vmatpush.msra.mxu0 %v4381
        %v4383 = vand.u32 %v1094, 4294901760
        %v4384 = vsub.f32 %v1094, %v4383
        %v4385 = vand.u32 %v4384, 4294901760
        %4386 = vmatmul.f32.gmra.mxu0 %v4385
        %v4387 = vpop.f32.mrf.mxu0
        %v4388 = vadd.f32 %v4314, %v4387
        %v4389 = vand.u32 %v1095, 4294901760
        %v4390 = vsub.f32 %v1095, %v4389
        %v4391 = vand.u32 %v4390, 4294901760
        %4392 = vmatmul.f32.gmra.mxu0 %v4391
        %v4393 = vpop.f32.mrf.mxu0
        %v4394 = vadd.f32 %v4319, %v4393
        %v4395 = vand.u32 %v1096, 4294901760
        %v4396 = vsub.f32 %v1096, %v4395
        %v4397 = vand.u32 %v4396, 4294901760
        %4398 = vmatmul.f32.gmra.mxu0 %v4397
        %v4399 = vpop.f32.mrf.mxu0
        %v4400 = vadd.f32 %v4324, %v4399
        %v4401 = vand.u32 %v1097, 4294901760
        %v4402 = vsub.f32 %v1097, %v4401
        %v4403 = vand.u32 %v4402, 4294901760
        %4404 = vmatmul.f32.gmra.mxu0 %v4403
        %v4405 = vpop.f32.mrf.mxu0
        %v4406 = vadd.f32 %v4329, %v4405
        %v4407 = vand.u32 %v1098, 4294901760
        %v4408 = vsub.f32 %v1098, %v4407
        %v4409 = vand.u32 %v4408, 4294901760
        %4410 = vmatmul.f32.gmra.mxu0 %v4409
        %v4411 = vpop.f32.mrf.mxu0
        %v4412 = vadd.f32 %v4334, %v4411
        %v4413 = vand.u32 %v1099, 4294901760
        %v4414 = vsub.f32 %v1099, %v4413
        %v4415 = vand.u32 %v4414, 4294901760
        %4416 = vmatmul.f32.gmra.mxu0 %v4415
        %v4417 = vpop.f32.mrf.mxu0
        %v4418 = vadd.f32 %v4339, %v4417
        %v4419 = vand.u32 %v1100, 4294901760
        %v4420 = vsub.f32 %v1100, %v4419
        %v4421 = vand.u32 %v4420, 4294901760
        %4422 = vmatmul.f32.gmra.mxu0 %v4421
        %v4423 = vpop.f32.mrf.mxu0
        %v4424 = vadd.f32 %v4344, %v4423
        %v4425 = vand.u32 %v1101, 4294901760
        %v4426 = vsub.f32 %v1101, %v4425
        %v4427 = vand.u32 %v4426, 4294901760
        %4428 = vmatmul.f32.gmra.mxu0 %v4427
        %v4429 = vpop.f32.mrf.mxu0
        %v4430 = vadd.f32 %v4349, %v4429
        %4431 = vdwg.mxu0
        %v4432 = vand.u32 %v1244, 4294901760
        %v4433 = vsub.f32 %v1244, %v4432
        %v4434 = vand.u32 %v4433, 4294901760
        %4435 = vmatpush.msra.mxu0 %v4434
        %v4436 = vand.u32 %v1241, 4294901760
        %v4437 = vsub.f32 %v1241, %v4436
        %v4438 = vand.u32 %v4437, 4294901760
        %4439 = vmatpush.msra.mxu0 %v4438
        %v4440 = vand.u32 %v1238, 4294901760
        %v4441 = vsub.f32 %v1238, %v4440
        %v4442 = vand.u32 %v4441, 4294901760
        %4443 = vmatpush.msra.mxu0 %v4442
        %v4444 = vand.u32 %v1235, 4294901760
        %v4445 = vsub.f32 %v1235, %v4444
        %v4446 = vand.u32 %v4445, 4294901760
        %4447 = vmatpush.msra.mxu0 %v4446
        %v4448 = vand.u32 %v1232, 4294901760
        %v4449 = vsub.f32 %v1232, %v4448
        %v4450 = vand.u32 %v4449, 4294901760
        %4451 = vmatpush.msra.mxu0 %v4450
        %v4452 = vand.u32 %v1229, 4294901760
        %v4453 = vsub.f32 %v1229, %v4452
        %v4454 = vand.u32 %v4453, 4294901760
        %4455 = vmatpush.msra.mxu0 %v4454
        %v4456 = vand.u32 %v1226, 4294901760
        %v4457 = vsub.f32 %v1226, %v4456
        %v4458 = vand.u32 %v4457, 4294901760
        %4459 = vmatpush.msra.mxu0 %v4458
        %v4460 = vand.u32 %v1223, 4294901760
        %v4461 = vsub.f32 %v1223, %v4460
        %v4462 = vand.u32 %v4461, 4294901760
        %4463 = vmatpush.msra.mxu0 %v4462
        %v4464 = vand.u32 %v1220, 4294901760
        %v4465 = vsub.f32 %v1220, %v4464
        %v4466 = vand.u32 %v4465, 4294901760
        %4467 = vmatpush.msra.mxu0 %v4466
        %v4468 = vand.u32 %v1217, 4294901760
        %v4469 = vsub.f32 %v1217, %v4468
        %v4470 = vand.u32 %v4469, 4294901760
        %4471 = vmatpush.msra.mxu0 %v4470
        %v4472 = vand.u32 %v1214, 4294901760
        %v4473 = vsub.f32 %v1214, %v4472
        %v4474 = vand.u32 %v4473, 4294901760
        %4475 = vmatpush.msra.mxu0 %v4474
        %v4476 = vand.u32 %v1211, 4294901760
        %v4477 = vsub.f32 %v1211, %v4476
        %v4478 = vand.u32 %v4477, 4294901760
        %4479 = vmatpush.msra.mxu0 %v4478
        %v4480 = vand.u32 %v1208, 4294901760
        %v4481 = vsub.f32 %v1208, %v4480
        %v4482 = vand.u32 %v4481, 4294901760
        %4483 = vmatpush.msra.mxu0 %v4482
        %v4484 = vand.u32 %v1205, 4294901760
        %v4485 = vsub.f32 %v1205, %v4484
        %v4486 = vand.u32 %v4485, 4294901760
        %4487 = vmatpush.msra.mxu0 %v4486
        %v4488 = vand.u32 %v1202, 4294901760
        %v4489 = vsub.f32 %v1202, %v4488
        %v4490 = vand.u32 %v4489, 4294901760
        %4491 = vmatpush.msra.mxu0 %v4490
        %v4492 = vand.u32 %v1199, 4294901760
        %v4493 = vsub.f32 %v1199, %v4492
        %v4494 = vand.u32 %v4493, 4294901760
        %4495 = vmatpush.msra.mxu0 %v4494
        %v4496 = vand.u32 %v1094, 4294901760
        %4497 = vmatmul.f32.gmra.mxu0 %v4496
        %v4498 = vpop.f32.mrf.mxu0
        %v4499 = vadd.f32 %v4388, %v4498
        %v4500 = vand.u32 %v1095, 4294901760
        %4501 = vmatmul.f32.gmra.mxu0 %v4500
        %v4502 = vpop.f32.mrf.mxu0
        %v4503 = vadd.f32 %v4394, %v4502
        %v4504 = vand.u32 %v1096, 4294901760
        %4505 = vmatmul.f32.gmra.mxu0 %v4504
        %v4506 = vpop.f32.mrf.mxu0
        %v4507 = vadd.f32 %v4400, %v4506
        %v4508 = vand.u32 %v1097, 4294901760
        %4509 = vmatmul.f32.gmra.mxu0 %v4508
        %v4510 = vpop.f32.mrf.mxu0
        %v4511 = vadd.f32 %v4406, %v4510
        %v4512 = vand.u32 %v1098, 4294901760
        %4513 = vmatmul.f32.gmra.mxu0 %v4512
        %v4514 = vpop.f32.mrf.mxu0
        %v4515 = vadd.f32 %v4412, %v4514
        %v4516 = vand.u32 %v1099, 4294901760
        %4517 = vmatmul.f32.gmra.mxu0 %v4516
        %v4518 = vpop.f32.mrf.mxu0
        %v4519 = vadd.f32 %v4418, %v4518
        %v4520 = vand.u32 %v1100, 4294901760
        %4521 = vmatmul.f32.gmra.mxu0 %v4520
        %v4522 = vpop.f32.mrf.mxu0
        %v4523 = vadd.f32 %v4424, %v4522
        %v4524 = vand.u32 %v1101, 4294901760
        %4525 = vmatmul.f32.gmra.mxu0 %v4524
        %v4526 = vpop.f32.mrf.mxu0
        %v4527 = vadd.f32 %v4430, %v4526
        %4528 = vdwg.mxu0
        %v4529 = vand.u32 %v1244, 4294901760
        %4530 = vmatpush.msra.mxu0 %v4529
        %v4531 = vand.u32 %v1241, 4294901760
        %4532 = vmatpush.msra.mxu0 %v4531
        %v4533 = vand.u32 %v1238, 4294901760
        %4534 = vmatpush.msra.mxu0 %v4533
        %v4535 = vand.u32 %v1235, 4294901760
        %4536 = vmatpush.msra.mxu0 %v4535
        %v4537 = vand.u32 %v1232, 4294901760
        %4538 = vmatpush.msra.mxu0 %v4537
        %v4539 = vand.u32 %v1229, 4294901760
        %4540 = vmatpush.msra.mxu0 %v4539
        %v4541 = vand.u32 %v1226, 4294901760
        %4542 = vmatpush.msra.mxu0 %v4541
        %v4543 = vand.u32 %v1223, 4294901760
        %4544 = vmatpush.msra.mxu0 %v4543
        %v4545 = vand.u32 %v1220, 4294901760
        %4546 = vmatpush.msra.mxu0 %v4545
        %v4547 = vand.u32 %v1217, 4294901760
        %4548 = vmatpush.msra.mxu0 %v4547
        %v4549 = vand.u32 %v1214, 4294901760
        %4550 = vmatpush.msra.mxu0 %v4549
        %v4551 = vand.u32 %v1211, 4294901760
        %4552 = vmatpush.msra.mxu0 %v4551
        %v4553 = vand.u32 %v1208, 4294901760
        %4554 = vmatpush.msra.mxu0 %v4553
        %v4555 = vand.u32 %v1205, 4294901760
        %4556 = vmatpush.msra.mxu0 %v4555
        %v4557 = vand.u32 %v1202, 4294901760
        %4558 = vmatpush.msra.mxu0 %v4557
        %v4559 = vand.u32 %v1199, 4294901760
        %4560 = vmatpush.msra.mxu0 %v4559
        %v4561 = vand.u32 %v1094, 4294901760
        %4562 = vmatmul.f32.gmra.mxu0 %v4561
        %v4563 = vpop.f32.mrf.mxu0
        %v4564 = vadd.f32 %v4499, %v4563
        %v4565 = vand.u32 %v1095, 4294901760
        %4566 = vmatmul.f32.gmra.mxu0 %v4565
        %v4567 = vpop.f32.mrf.mxu0
        %v4568 = vadd.f32 %v4503, %v4567
        %v4569 = vand.u32 %v1096, 4294901760
        %4570 = vmatmul.f32.gmra.mxu0 %v4569
        %v4571 = vpop.f32.mrf.mxu0
        %v4572 = vadd.f32 %v4507, %v4571
        %v4573 = vand.u32 %v1097, 4294901760
        %4574 = vmatmul.f32.gmra.mxu0 %v4573
        %v4575 = vpop.f32.mrf.mxu0
        %v4576 = vadd.f32 %v4511, %v4575
        %v4577 = vand.u32 %v1098, 4294901760
        %4578 = vmatmul.f32.gmra.mxu0 %v4577
        %v4579 = vpop.f32.mrf.mxu0
        %v4580 = vadd.f32 %v4515, %v4579
        %v4581 = vand.u32 %v1099, 4294901760
        %4582 = vmatmul.f32.gmra.mxu0 %v4581
        %v4583 = vpop.f32.mrf.mxu0
        %v4584 = vadd.f32 %v4519, %v4583
        %v4585 = vand.u32 %v1100, 4294901760
        %4586 = vmatmul.f32.gmra.mxu0 %v4585
        %v4587 = vpop.f32.mrf.mxu0
        %v4588 = vadd.f32 %v4523, %v4587
        %v4589 = vand.u32 %v1101, 4294901760
        %4590 = vmatmul.f32.gmra.mxu0 %v4589
        %v4591 = vpop.f32.mrf.mxu0
        %v4592 = vadd.f32 %v4527, %v4591
        %4593 = vdwg.mxu0
        %v4594 = vand.u32 %v1149, 4294901760
        %4595 = vmatpush.msra.mxu0 %v4594
        %v4596 = vand.u32 %v1146, 4294901760
        %4597 = vmatpush.msra.mxu0 %v4596
        %v4598 = vand.u32 %v1143, 4294901760
        %4599 = vmatpush.msra.mxu0 %v4598
        %v4600 = vand.u32 %v1140, 4294901760
        %4601 = vmatpush.msra.mxu0 %v4600
        %v4602 = vand.u32 %v1137, 4294901760
        %4603 = vmatpush.msra.mxu0 %v4602
        %v4604 = vand.u32 %v1134, 4294901760
        %4605 = vmatpush.msra.mxu0 %v4604
        %v4606 = vand.u32 %v1131, 4294901760
        %4607 = vmatpush.msra.mxu0 %v4606
        %v4608 = vand.u32 %v1128, 4294901760
        %4609 = vmatpush.msra.mxu0 %v4608
        %v4610 = vand.u32 %v1125, 4294901760
        %4611 = vmatpush.msra.mxu0 %v4610
        %v4612 = vand.u32 %v1122, 4294901760
        %4613 = vmatpush.msra.mxu0 %v4612
        %v4614 = vand.u32 %v1119, 4294901760
        %4615 = vmatpush.msra.mxu0 %v4614
        %v4616 = vand.u32 %v1116, 4294901760
        %4617 = vmatpush.msra.mxu0 %v4616
        %v4618 = vand.u32 %v1113, 4294901760
        %4619 = vmatpush.msra.mxu0 %v4618
        %v4620 = vand.u32 %v1110, 4294901760
        %4621 = vmatpush.msra.mxu0 %v4620
        %v4622 = vand.u32 %v1107, 4294901760
        %4623 = vmatpush.msra.mxu0 %v4622
        %v4624 = vand.u32 %v1104, 4294901760
        %4625 = vmatpush.msra.mxu0 %v4624
        %v4626 = vand.u32 %v1078, 4294901760
        %v4627 = vsub.f32 %v1078, %v4626
        %v4628 = vand.u32 %v4627, 4294901760
        %v4629 = vsub.f32 %v4627, %v4628
        %v4630 = vand.u32 %v4629, 4294901760
        %4631 = vmatmul.f32.gmra.mxu0 %v4630
        %v4632 = vpop.f32.mrf.mxu0
        %v4633 = vadd.f32 0.0, %v4632
        %v4634 = vand.u32 %v1080, 4294901760
        %v4635 = vsub.f32 %v1080, %v4634
        %v4636 = vand.u32 %v4635, 4294901760
        %v4637 = vsub.f32 %v4635, %v4636
        %v4638 = vand.u32 %v4637, 4294901760
        %4639 = vmatmul.f32.gmra.mxu0 %v4638
        %v4640 = vpop.f32.mrf.mxu0
        %v4641 = vadd.f32 0.0, %v4640
        %v4642 = vand.u32 %v1082, 4294901760
        %v4643 = vsub.f32 %v1082, %v4642
        %v4644 = vand.u32 %v4643, 4294901760
        %v4645 = vsub.f32 %v4643, %v4644
        %v4646 = vand.u32 %v4645, 4294901760
        %4647 = vmatmul.f32.gmra.mxu0 %v4646
        %v4648 = vpop.f32.mrf.mxu0
        %v4649 = vadd.f32 0.0, %v4648
        %v4650 = vand.u32 %v1084, 4294901760
        %v4651 = vsub.f32 %v1084, %v4650
        %v4652 = vand.u32 %v4651, 4294901760
        %v4653 = vsub.f32 %v4651, %v4652
        %v4654 = vand.u32 %v4653, 4294901760
        %4655 = vmatmul.f32.gmra.mxu0 %v4654
        %v4656 = vpop.f32.mrf.mxu0
        %v4657 = vadd.f32 0.0, %v4656
        %v4658 = vand.u32 %v1086, 4294901760
        %v4659 = vsub.f32 %v1086, %v4658
        %v4660 = vand.u32 %v4659, 4294901760
        %v4661 = vsub.f32 %v4659, %v4660
        %v4662 = vand.u32 %v4661, 4294901760
        %4663 = vmatmul.f32.gmra.mxu0 %v4662
        %v4664 = vpop.f32.mrf.mxu0
        %v4665 = vadd.f32 0.0, %v4664
        %v4666 = vand.u32 %v1088, 4294901760
        %v4667 = vsub.f32 %v1088, %v4666
        %v4668 = vand.u32 %v4667, 4294901760
        %v4669 = vsub.f32 %v4667, %v4668
        %v4670 = vand.u32 %v4669, 4294901760
        %4671 = vmatmul.f32.gmra.mxu0 %v4670
        %v4672 = vpop.f32.mrf.mxu0
        %v4673 = vadd.f32 0.0, %v4672
        %v4674 = vand.u32 %v1090, 4294901760
        %v4675 = vsub.f32 %v1090, %v4674
        %v4676 = vand.u32 %v4675, 4294901760
        %v4677 = vsub.f32 %v4675, %v4676
        %v4678 = vand.u32 %v4677, 4294901760
        %4679 = vmatmul.f32.gmra.mxu0 %v4678
        %v4680 = vpop.f32.mrf.mxu0
        %v4681 = vadd.f32 0.0, %v4680
        %v4682 = vand.u32 %v1092, 4294901760
        %v4683 = vsub.f32 %v1092, %v4682
        %v4684 = vand.u32 %v4683, 4294901760
        %v4685 = vsub.f32 %v4683, %v4684
        %v4686 = vand.u32 %v4685, 4294901760
        %4687 = vmatmul.f32.gmra.mxu0 %v4686
        %v4688 = vpop.f32.mrf.mxu0
        %v4689 = vadd.f32 0.0, %v4688
        %4690 = vdwg.mxu0
        %v4691 = vand.u32 %v1149, 4294901760
        %v4692 = vsub.f32 %v1149, %v4691
        %v4693 = vand.u32 %v4692, 4294901760
        %v4694 = vsub.f32 %v4692, %v4693
        %v4695 = vand.u32 %v4694, 4294901760
        %4696 = vmatpush.msra.mxu0 %v4695
        %v4697 = vand.u32 %v1146, 4294901760
        %v4698 = vsub.f32 %v1146, %v4697
        %v4699 = vand.u32 %v4698, 4294901760
        %v4700 = vsub.f32 %v4698, %v4699
        %v4701 = vand.u32 %v4700, 4294901760
        %4702 = vmatpush.msra.mxu0 %v4701
        %v4703 = vand.u32 %v1143, 4294901760
        %v4704 = vsub.f32 %v1143, %v4703
        %v4705 = vand.u32 %v4704, 4294901760
        %v4706 = vsub.f32 %v4704, %v4705
        %v4707 = vand.u32 %v4706, 4294901760
        %4708 = vmatpush.msra.mxu0 %v4707
        %v4709 = vand.u32 %v1140, 4294901760
        %v4710 = vsub.f32 %v1140, %v4709
        %v4711 = vand.u32 %v4710, 4294901760
        %v4712 = vsub.f32 %v4710, %v4711
        %v4713 = vand.u32 %v4712, 4294901760
        %4714 = vmatpush.msra.mxu0 %v4713
        %v4715 = vand.u32 %v1137, 4294901760
        %v4716 = vsub.f32 %v1137, %v4715
        %v4717 = vand.u32 %v4716, 4294901760
        %v4718 = vsub.f32 %v4716, %v4717
        %v4719 = vand.u32 %v4718, 4294901760
        %4720 = vmatpush.msra.mxu0 %v4719
        %v4721 = vand.u32 %v1134, 4294901760
        %v4722 = vsub.f32 %v1134, %v4721
        %v4723 = vand.u32 %v4722, 4294901760
        %v4724 = vsub.f32 %v4722, %v4723
        %v4725 = vand.u32 %v4724, 4294901760
        %4726 = vmatpush.msra.mxu0 %v4725
        %v4727 = vand.u32 %v1131, 4294901760
        %v4728 = vsub.f32 %v1131, %v4727
        %v4729 = vand.u32 %v4728, 4294901760
        %v4730 = vsub.f32 %v4728, %v4729
        %v4731 = vand.u32 %v4730, 4294901760
        %4732 = vmatpush.msra.mxu0 %v4731
        %v4733 = vand.u32 %v1128, 4294901760
        %v4734 = vsub.f32 %v1128, %v4733
        %v4735 = vand.u32 %v4734, 4294901760
        %v4736 = vsub.f32 %v4734, %v4735
        %v4737 = vand.u32 %v4736, 4294901760
        %4738 = vmatpush.msra.mxu0 %v4737
        %v4739 = vand.u32 %v1125, 4294901760
        %v4740 = vsub.f32 %v1125, %v4739
        %v4741 = vand.u32 %v4740, 4294901760
        %v4742 = vsub.f32 %v4740, %v4741
        %v4743 = vand.u32 %v4742, 4294901760
        %4744 = vmatpush.msra.mxu0 %v4743
        %v4745 = vand.u32 %v1122, 4294901760
        %v4746 = vsub.f32 %v1122, %v4745
        %v4747 = vand.u32 %v4746, 4294901760
        %v4748 = vsub.f32 %v4746, %v4747
        %v4749 = vand.u32 %v4748, 4294901760
        %4750 = vmatpush.msra.mxu0 %v4749
        %v4751 = vand.u32 %v1119, 4294901760
        %v4752 = vsub.f32 %v1119, %v4751
        %v4753 = vand.u32 %v4752, 4294901760
        %v4754 = vsub.f32 %v4752, %v4753
        %v4755 = vand.u32 %v4754, 4294901760
        %4756 = vmatpush.msra.mxu0 %v4755
        %v4757 = vand.u32 %v1116, 4294901760
        %v4758 = vsub.f32 %v1116, %v4757
        %v4759 = vand.u32 %v4758, 4294901760
        %v4760 = vsub.f32 %v4758, %v4759
        %v4761 = vand.u32 %v4760, 4294901760
        %4762 = vmatpush.msra.mxu0 %v4761
        %v4763 = vand.u32 %v1113, 4294901760
        %v4764 = vsub.f32 %v1113, %v4763
        %v4765 = vand.u32 %v4764, 4294901760
        %v4766 = vsub.f32 %v4764, %v4765
        %v4767 = vand.u32 %v4766, 4294901760
        %4768 = vmatpush.msra.mxu0 %v4767
        %v4769 = vand.u32 %v1110, 4294901760
        %v4770 = vsub.f32 %v1110, %v4769
        %v4771 = vand.u32 %v4770, 4294901760
        %v4772 = vsub.f32 %v4770, %v4771
        %v4773 = vand.u32 %v4772, 4294901760
        %4774 = vmatpush.msra.mxu0 %v4773
        %v4775 = vand.u32 %v1107, 4294901760
        %v4776 = vsub.f32 %v1107, %v4775
        %v4777 = vand.u32 %v4776, 4294901760
        %v4778 = vsub.f32 %v4776, %v4777
        %v4779 = vand.u32 %v4778, 4294901760
        %4780 = vmatpush.msra.mxu0 %v4779
        %v4781 = vand.u32 %v1104, 4294901760
        %v4782 = vsub.f32 %v1104, %v4781
        %v4783 = vand.u32 %v4782, 4294901760
        %v4784 = vsub.f32 %v4782, %v4783
        %v4785 = vand.u32 %v4784, 4294901760
        %4786 = vmatpush.msra.mxu0 %v4785
        %v4787 = vand.u32 %v1078, 4294901760
        %4788 = vmatmul.f32.gmra.mxu0 %v4787
        %v4789 = vpop.f32.mrf.mxu0
        %v4790 = vadd.f32 %v4633, %v4789
        %v4791 = vand.u32 %v1080, 4294901760
        %4792 = vmatmul.f32.gmra.mxu0 %v4791
        %v4793 = vpop.f32.mrf.mxu0
        %v4794 = vadd.f32 %v4641, %v4793
        %v4795 = vand.u32 %v1082, 4294901760
        %4796 = vmatmul.f32.gmra.mxu0 %v4795
        %v4797 = vpop.f32.mrf.mxu0
        %v4798 = vadd.f32 %v4649, %v4797
        %v4799 = vand.u32 %v1084, 4294901760
        %4800 = vmatmul.f32.gmra.mxu0 %v4799
        %v4801 = vpop.f32.mrf.mxu0
        %v4802 = vadd.f32 %v4657, %v4801
        %v4803 = vand.u32 %v1086, 4294901760
        %4804 = vmatmul.f32.gmra.mxu0 %v4803
        %v4805 = vpop.f32.mrf.mxu0
        %v4806 = vadd.f32 %v4665, %v4805
        %v4807 = vand.u32 %v1088, 4294901760
        %4808 = vmatmul.f32.gmra.mxu0 %v4807
        %v4809 = vpop.f32.mrf.mxu0
        %v4810 = vadd.f32 %v4673, %v4809
        %v4811 = vand.u32 %v1090, 4294901760
        %4812 = vmatmul.f32.gmra.mxu0 %v4811
        %v4813 = vpop.f32.mrf.mxu0
        %v4814 = vadd.f32 %v4681, %v4813
        %v4815 = vand.u32 %v1092, 4294901760
        %4816 = vmatmul.f32.gmra.mxu0 %v4815
        %v4817 = vpop.f32.mrf.mxu0
        %v4818 = vadd.f32 %v4689, %v4817
        %4819 = vdwg.mxu0
        %v4820 = vand.u32 %v1149, 4294901760
        %v4821 = vsub.f32 %v1149, %v4820
        %4822 = vmatpush.msra.mxu0 %v4821
        %v4823 = vand.u32 %v1146, 4294901760
        %v4824 = vsub.f32 %v1146, %v4823
        %4825 = vmatpush.msra.mxu0 %v4824
        %v4826 = vand.u32 %v1143, 4294901760
        %v4827 = vsub.f32 %v1143, %v4826
        %4828 = vmatpush.msra.mxu0 %v4827
        %v4829 = vand.u32 %v1140, 4294901760
        %v4830 = vsub.f32 %v1140, %v4829
        %4831 = vmatpush.msra.mxu0 %v4830
        %v4832 = vand.u32 %v1137, 4294901760
        %v4833 = vsub.f32 %v1137, %v4832
        %4834 = vmatpush.msra.mxu0 %v4833
        %v4835 = vand.u32 %v1134, 4294901760
        %v4836 = vsub.f32 %v1134, %v4835
        %4837 = vmatpush.msra.mxu0 %v4836
        %v4838 = vand.u32 %v1131, 4294901760
        %v4839 = vsub.f32 %v1131, %v4838
        %4840 = vmatpush.msra.mxu0 %v4839
        %v4841 = vand.u32 %v1128, 4294901760
        %v4842 = vsub.f32 %v1128, %v4841
        %4843 = vmatpush.msra.mxu0 %v4842
        %v4844 = vand.u32 %v1125, 4294901760
        %v4845 = vsub.f32 %v1125, %v4844
        %4846 = vmatpush.msra.mxu0 %v4845
        %v4847 = vand.u32 %v1122, 4294901760
        %v4848 = vsub.f32 %v1122, %v4847
        %4849 = vmatpush.msra.mxu0 %v4848
        %v4850 = vand.u32 %v1119, 4294901760
        %v4851 = vsub.f32 %v1119, %v4850
        %4852 = vmatpush.msra.mxu0 %v4851
        %v4853 = vand.u32 %v1116, 4294901760
        %v4854 = vsub.f32 %v1116, %v4853
        %4855 = vmatpush.msra.mxu0 %v4854
        %v4856 = vand.u32 %v1113, 4294901760
        %v4857 = vsub.f32 %v1113, %v4856
        %4858 = vmatpush.msra.mxu0 %v4857
        %v4859 = vand.u32 %v1110, 4294901760
        %v4860 = vsub.f32 %v1110, %v4859
        %4861 = vmatpush.msra.mxu0 %v4860
        %v4862 = vand.u32 %v1107, 4294901760
        %v4863 = vsub.f32 %v1107, %v4862
        %4864 = vmatpush.msra.mxu0 %v4863
        %v4865 = vand.u32 %v1104, 4294901760
        %v4866 = vsub.f32 %v1104, %v4865
        %4867 = vmatpush.msra.mxu0 %v4866
        %v4868 = vand.u32 %v1078, 4294901760
        %v4869 = vsub.f32 %v1078, %v4868
        %4870 = vmatmul.f32.gmra.mxu0 %v4869
        %v4871 = vpop.f32.mrf.mxu0
        %v4872 = vadd.f32 %v4790, %v4871
        %v4873 = vand.u32 %v1080, 4294901760
        %v4874 = vsub.f32 %v1080, %v4873
        %4875 = vmatmul.f32.gmra.mxu0 %v4874
        %v4876 = vpop.f32.mrf.mxu0
        %v4877 = vadd.f32 %v4794, %v4876
        %v4878 = vand.u32 %v1082, 4294901760
        %v4879 = vsub.f32 %v1082, %v4878
        %4880 = vmatmul.f32.gmra.mxu0 %v4879
        %v4881 = vpop.f32.mrf.mxu0
        %v4882 = vadd.f32 %v4798, %v4881
        %v4883 = vand.u32 %v1084, 4294901760
        %v4884 = vsub.f32 %v1084, %v4883
        %4885 = vmatmul.f32.gmra.mxu0 %v4884
        %v4886 = vpop.f32.mrf.mxu0
        %v4887 = vadd.f32 %v4802, %v4886
        %v4888 = vand.u32 %v1086, 4294901760
        %v4889 = vsub.f32 %v1086, %v4888
        %4890 = vmatmul.f32.gmra.mxu0 %v4889
        %v4891 = vpop.f32.mrf.mxu0
        %v4892 = vadd.f32 %v4806, %v4891
        %v4893 = vand.u32 %v1088, 4294901760
        %v4894 = vsub.f32 %v1088, %v4893
        %4895 = vmatmul.f32.gmra.mxu0 %v4894
        %v4896 = vpop.f32.mrf.mxu0
        %v4897 = vadd.f32 %v4810, %v4896
        %v4898 = vand.u32 %v1090, 4294901760
        %v4899 = vsub.f32 %v1090, %v4898
        %4900 = vmatmul.f32.gmra.mxu0 %v4899
        %v4901 = vpop.f32.mrf.mxu0
        %v4902 = vadd.f32 %v4814, %v4901
        %v4903 = vand.u32 %v1092, 4294901760
        %v4904 = vsub.f32 %v1092, %v4903
        %4905 = vmatmul.f32.gmra.mxu0 %v4904
        %v4906 = vpop.f32.mrf.mxu0
        %v4907 = vadd.f32 %v4818, %v4906
        %4908 = vdwg.mxu0
        %v4909 = vand.u32 %v1149, 4294901760
        %4910 = vmatpush.msra.mxu0 %v4909
        %v4911 = vand.u32 %v1146, 4294901760
        %4912 = vmatpush.msra.mxu0 %v4911
        %v4913 = vand.u32 %v1143, 4294901760
        %4914 = vmatpush.msra.mxu0 %v4913
        %v4915 = vand.u32 %v1140, 4294901760
        %4916 = vmatpush.msra.mxu0 %v4915
        %v4917 = vand.u32 %v1137, 4294901760
        %4918 = vmatpush.msra.mxu0 %v4917
        %v4919 = vand.u32 %v1134, 4294901760
        %4920 = vmatpush.msra.mxu0 %v4919
        %v4921 = vand.u32 %v1131, 4294901760
        %4922 = vmatpush.msra.mxu0 %v4921
        %v4923 = vand.u32 %v1128, 4294901760
        %4924 = vmatpush.msra.mxu0 %v4923
        %v4925 = vand.u32 %v1125, 4294901760
        %4926 = vmatpush.msra.mxu0 %v4925
        %v4927 = vand.u32 %v1122, 4294901760
        %4928 = vmatpush.msra.mxu0 %v4927
        %v4929 = vand.u32 %v1119, 4294901760
        %4930 = vmatpush.msra.mxu0 %v4929
        %v4931 = vand.u32 %v1116, 4294901760
        %4932 = vmatpush.msra.mxu0 %v4931
        %v4933 = vand.u32 %v1113, 4294901760
        %4934 = vmatpush.msra.mxu0 %v4933
        %v4935 = vand.u32 %v1110, 4294901760
        %4936 = vmatpush.msra.mxu0 %v4935
        %v4937 = vand.u32 %v1107, 4294901760
        %4938 = vmatpush.msra.mxu0 %v4937
        %v4939 = vand.u32 %v1104, 4294901760
        %4940 = vmatpush.msra.mxu0 %v4939
        %v4941 = vand.u32 %v1078, 4294901760
        %v4942 = vsub.f32 %v1078, %v4941
        %v4943 = vand.u32 %v4942, 4294901760
        %4944 = vmatmul.f32.gmra.mxu0 %v4943
        %v4945 = vpop.f32.mrf.mxu0
        %v4946 = vadd.f32 %v4872, %v4945
        %v4947 = vand.u32 %v1080, 4294901760
        %v4948 = vsub.f32 %v1080, %v4947
        %v4949 = vand.u32 %v4948, 4294901760
        %4950 = vmatmul.f32.gmra.mxu0 %v4949
        %v4951 = vpop.f32.mrf.mxu0
        %v4952 = vadd.f32 %v4877, %v4951
        %v4953 = vand.u32 %v1082, 4294901760
        %v4954 = vsub.f32 %v1082, %v4953
        %v4955 = vand.u32 %v4954, 4294901760
        %4956 = vmatmul.f32.gmra.mxu0 %v4955
        %v4957 = vpop.f32.mrf.mxu0
        %v4958 = vadd.f32 %v4882, %v4957
        %v4959 = vand.u32 %v1084, 4294901760
        %v4960 = vsub.f32 %v1084, %v4959
        %v4961 = vand.u32 %v4960, 4294901760
        %4962 = vmatmul.f32.gmra.mxu0 %v4961
        %v4963 = vpop.f32.mrf.mxu0
        %v4964 = vadd.f32 %v4887, %v4963
        %v4965 = vand.u32 %v1086, 4294901760
        %v4966 = vsub.f32 %v1086, %v4965
        %v4967 = vand.u32 %v4966, 4294901760
        %4968 = vmatmul.f32.gmra.mxu0 %v4967
        %v4969 = vpop.f32.mrf.mxu0
        %v4970 = vadd.f32 %v4892, %v4969
        %v4971 = vand.u32 %v1088, 4294901760
        %v4972 = vsub.f32 %v1088, %v4971
        %v4973 = vand.u32 %v4972, 4294901760
        %4974 = vmatmul.f32.gmra.mxu0 %v4973
        %v4975 = vpop.f32.mrf.mxu0
        %v4976 = vadd.f32 %v4897, %v4975
        %v4977 = vand.u32 %v1090, 4294901760
        %v4978 = vsub.f32 %v1090, %v4977
        %v4979 = vand.u32 %v4978, 4294901760
        %4980 = vmatmul.f32.gmra.mxu0 %v4979
        %v4981 = vpop.f32.mrf.mxu0
        %v4982 = vadd.f32 %v4902, %v4981
        %v4983 = vand.u32 %v1092, 4294901760
        %v4984 = vsub.f32 %v1092, %v4983
        %v4985 = vand.u32 %v4984, 4294901760
        %4986 = vmatmul.f32.gmra.mxu0 %v4985
        %v4987 = vpop.f32.mrf.mxu0
        %v4988 = vadd.f32 %v4907, %v4987
        %4989 = vdwg.mxu0
        %v4990 = vand.u32 %v1149, 4294901760
        %v4991 = vsub.f32 %v1149, %v4990
        %v4992 = vand.u32 %v4991, 4294901760
        %4993 = vmatpush.msra.mxu0 %v4992
        %v4994 = vand.u32 %v1146, 4294901760
        %v4995 = vsub.f32 %v1146, %v4994
        %v4996 = vand.u32 %v4995, 4294901760
        %4997 = vmatpush.msra.mxu0 %v4996
        %v4998 = vand.u32 %v1143, 4294901760
        %v4999 = vsub.f32 %v1143, %v4998
        %v5000 = vand.u32 %v4999, 4294901760
        %5001 = vmatpush.msra.mxu0 %v5000
        %v5002 = vand.u32 %v1140, 4294901760
        %v5003 = vsub.f32 %v1140, %v5002
        %v5004 = vand.u32 %v5003, 4294901760
        %5005 = vmatpush.msra.mxu0 %v5004
        %v5006 = vand.u32 %v1137, 4294901760
        %v5007 = vsub.f32 %v1137, %v5006
        %v5008 = vand.u32 %v5007, 4294901760
        %5009 = vmatpush.msra.mxu0 %v5008
        %v5010 = vand.u32 %v1134, 4294901760
        %v5011 = vsub.f32 %v1134, %v5010
        %v5012 = vand.u32 %v5011, 4294901760
        %5013 = vmatpush.msra.mxu0 %v5012
        %v5014 = vand.u32 %v1131, 4294901760
        %v5015 = vsub.f32 %v1131, %v5014
        %v5016 = vand.u32 %v5015, 4294901760
        %5017 = vmatpush.msra.mxu0 %v5016
        %v5018 = vand.u32 %v1128, 4294901760
        %v5019 = vsub.f32 %v1128, %v5018
        %v5020 = vand.u32 %v5019, 4294901760
        %5021 = vmatpush.msra.mxu0 %v5020
        %v5022 = vand.u32 %v1125, 4294901760
        %v5023 = vsub.f32 %v1125, %v5022
        %v5024 = vand.u32 %v5023, 4294901760
        %5025 = vmatpush.msra.mxu0 %v5024
        %v5026 = vand.u32 %v1122, 4294901760
        %v5027 = vsub.f32 %v1122, %v5026
        %v5028 = vand.u32 %v5027, 4294901760
        %5029 = vmatpush.msra.mxu0 %v5028
        %v5030 = vand.u32 %v1119, 4294901760
        %v5031 = vsub.f32 %v1119, %v5030
        %v5032 = vand.u32 %v5031, 4294901760
        %5033 = vmatpush.msra.mxu0 %v5032
        %v5034 = vand.u32 %v1116, 4294901760
        %v5035 = vsub.f32 %v1116, %v5034
        %v5036 = vand.u32 %v5035, 4294901760
        %5037 = vmatpush.msra.mxu0 %v5036
        %v5038 = vand.u32 %v1113, 4294901760
        %v5039 = vsub.f32 %v1113, %v5038
        %v5040 = vand.u32 %v5039, 4294901760
        %5041 = vmatpush.msra.mxu0 %v5040
        %v5042 = vand.u32 %v1110, 4294901760
        %v5043 = vsub.f32 %v1110, %v5042
        %v5044 = vand.u32 %v5043, 4294901760
        %5045 = vmatpush.msra.mxu0 %v5044
        %v5046 = vand.u32 %v1107, 4294901760
        %v5047 = vsub.f32 %v1107, %v5046
        %v5048 = vand.u32 %v5047, 4294901760
        %5049 = vmatpush.msra.mxu0 %v5048
        %v5050 = vand.u32 %v1104, 4294901760
        %v5051 = vsub.f32 %v1104, %v5050
        %v5052 = vand.u32 %v5051, 4294901760
        %5053 = vmatpush.msra.mxu0 %v5052
        %v5054 = vand.u32 %v1078, 4294901760
        %5055 = vmatmul.f32.gmra.mxu0 %v5054
        %v5056 = vpop.f32.mrf.mxu0
        %v5057 = vadd.f32 %v4946, %v5056
        %v5058 = vand.u32 %v1080, 4294901760
        %5059 = vmatmul.f32.gmra.mxu0 %v5058
        %v5060 = vpop.f32.mrf.mxu0
        %v5061 = vadd.f32 %v4952, %v5060
        %v5062 = vand.u32 %v1082, 4294901760
        %5063 = vmatmul.f32.gmra.mxu0 %v5062
        %v5064 = vpop.f32.mrf.mxu0
        %v5065 = vadd.f32 %v4958, %v5064
        %v5066 = vand.u32 %v1084, 4294901760
        %5067 = vmatmul.f32.gmra.mxu0 %v5066
        %v5068 = vpop.f32.mrf.mxu0
        %v5069 = vadd.f32 %v4964, %v5068
        %v5070 = vand.u32 %v1086, 4294901760
        %5071 = vmatmul.f32.gmra.mxu0 %v5070
        %v5072 = vpop.f32.mrf.mxu0
        %v5073 = vadd.f32 %v4970, %v5072
        %v5074 = vand.u32 %v1088, 4294901760
        %5075 = vmatmul.f32.gmra.mxu0 %v5074
        %v5076 = vpop.f32.mrf.mxu0
        %v5077 = vadd.f32 %v4976, %v5076
        %v5078 = vand.u32 %v1090, 4294901760
        %5079 = vmatmul.f32.gmra.mxu0 %v5078
        %v5080 = vpop.f32.mrf.mxu0
        %v5081 = vadd.f32 %v4982, %v5080
        %v5082 = vand.u32 %v1092, 4294901760
        %5083 = vmatmul.f32.gmra.mxu0 %v5082
        %v5084 = vpop.f32.mrf.mxu0
        %v5085 = vadd.f32 %v4988, %v5084
        %5086 = vdwg.mxu0
        %v5087 = vand.u32 %v1149, 4294901760
        %5088 = vmatpush.msra.mxu0 %v5087
        %v5089 = vand.u32 %v1146, 4294901760
        %5090 = vmatpush.msra.mxu0 %v5089
        %v5091 = vand.u32 %v1143, 4294901760
        %5092 = vmatpush.msra.mxu0 %v5091
        %v5093 = vand.u32 %v1140, 4294901760
        %5094 = vmatpush.msra.mxu0 %v5093
        %v5095 = vand.u32 %v1137, 4294901760
        %5096 = vmatpush.msra.mxu0 %v5095
        %v5097 = vand.u32 %v1134, 4294901760
        %5098 = vmatpush.msra.mxu0 %v5097
        %v5099 = vand.u32 %v1131, 4294901760
        %5100 = vmatpush.msra.mxu0 %v5099
        %v5101 = vand.u32 %v1128, 4294901760
        %5102 = vmatpush.msra.mxu0 %v5101
        %v5103 = vand.u32 %v1125, 4294901760
        %5104 = vmatpush.msra.mxu0 %v5103
        %v5105 = vand.u32 %v1122, 4294901760
        %5106 = vmatpush.msra.mxu0 %v5105
        %v5107 = vand.u32 %v1119, 4294901760
        %5108 = vmatpush.msra.mxu0 %v5107
        %v5109 = vand.u32 %v1116, 4294901760
        %5110 = vmatpush.msra.mxu0 %v5109
        %v5111 = vand.u32 %v1113, 4294901760
        %5112 = vmatpush.msra.mxu0 %v5111
        %v5113 = vand.u32 %v1110, 4294901760
        %5114 = vmatpush.msra.mxu0 %v5113
        %v5115 = vand.u32 %v1107, 4294901760
        %5116 = vmatpush.msra.mxu0 %v5115
        %v5117 = vand.u32 %v1104, 4294901760
        %5118 = vmatpush.msra.mxu0 %v5117
        %v5119 = vand.u32 %v1078, 4294901760
        %5120 = vmatmul.f32.gmra.mxu0 %v5119
        %v5121 = vpop.f32.mrf.mxu0
        %v5122 = vadd.f32 %v5057, %v5121
        %v5123 = vand.u32 %v1080, 4294901760
        %5124 = vmatmul.f32.gmra.mxu0 %v5123
        %v5125 = vpop.f32.mrf.mxu0
        %v5126 = vadd.f32 %v5061, %v5125
        %v5127 = vand.u32 %v1082, 4294901760
        %5128 = vmatmul.f32.gmra.mxu0 %v5127
        %v5129 = vpop.f32.mrf.mxu0
        %v5130 = vadd.f32 %v5065, %v5129
        %v5131 = vand.u32 %v1084, 4294901760
        %5132 = vmatmul.f32.gmra.mxu0 %v5131
        %v5133 = vpop.f32.mrf.mxu0
        %v5134 = vadd.f32 %v5069, %v5133
        %v5135 = vand.u32 %v1086, 4294901760
        %5136 = vmatmul.f32.gmra.mxu0 %v5135
        %v5137 = vpop.f32.mrf.mxu0
        %v5138 = vadd.f32 %v5073, %v5137
        %v5139 = vand.u32 %v1088, 4294901760
        %5140 = vmatmul.f32.gmra.mxu0 %v5139
        %v5141 = vpop.f32.mrf.mxu0
        %v5142 = vadd.f32 %v5077, %v5141
        %v5143 = vand.u32 %v1090, 4294901760
        %5144 = vmatmul.f32.gmra.mxu0 %v5143
        %v5145 = vpop.f32.mrf.mxu0
        %v5146 = vadd.f32 %v5081, %v5145
        %v5147 = vand.u32 %v1092, 4294901760
        %5148 = vmatmul.f32.gmra.mxu0 %v5147
        %v5149 = vpop.f32.mrf.mxu0
        %v5150 = vadd.f32 %v5085, %v5149
        %5151 = vdwg.mxu0
        %v5152 = vand.u32 %v1197, 4294901760
        %5153 = vmatpush.msra.mxu0 %v5152
        %v5154 = vand.u32 %v1194, 4294901760
        %5155 = vmatpush.msra.mxu0 %v5154
        %v5156 = vand.u32 %v1191, 4294901760
        %5157 = vmatpush.msra.mxu0 %v5156
        %v5158 = vand.u32 %v1188, 4294901760
        %5159 = vmatpush.msra.mxu0 %v5158
        %v5160 = vand.u32 %v1185, 4294901760
        %5161 = vmatpush.msra.mxu0 %v5160
        %v5162 = vand.u32 %v1182, 4294901760
        %5163 = vmatpush.msra.mxu0 %v5162
        %v5164 = vand.u32 %v1179, 4294901760
        %5165 = vmatpush.msra.mxu0 %v5164
        %v5166 = vand.u32 %v1176, 4294901760
        %5167 = vmatpush.msra.mxu0 %v5166
        %v5168 = vand.u32 %v1173, 4294901760
        %5169 = vmatpush.msra.mxu0 %v5168
        %v5170 = vand.u32 %v1170, 4294901760
        %5171 = vmatpush.msra.mxu0 %v5170
        %v5172 = vand.u32 %v1167, 4294901760
        %5173 = vmatpush.msra.mxu0 %v5172
        %v5174 = vand.u32 %v1164, 4294901760
        %5175 = vmatpush.msra.mxu0 %v5174
        %v5176 = vand.u32 %v1161, 4294901760
        %5177 = vmatpush.msra.mxu0 %v5176
        %v5178 = vand.u32 %v1158, 4294901760
        %5179 = vmatpush.msra.mxu0 %v5178
        %v5180 = vand.u32 %v1155, 4294901760
        %5181 = vmatpush.msra.mxu0 %v5180
        %v5182 = vand.u32 %v1152, 4294901760
        %5183 = vmatpush.msra.mxu0 %v5182
        %v5184 = vand.u32 %v1079, 4294901760
        %v5185 = vsub.f32 %v1079, %v5184
        %v5186 = vand.u32 %v5185, 4294901760
        %v5187 = vsub.f32 %v5185, %v5186
        %v5188 = vand.u32 %v5187, 4294901760
        %5189 = vmatmul.f32.gmra.mxu0 %v5188
        %v5190 = vpop.f32.mrf.mxu0
        %v5191 = vadd.f32 %v5122, %v5190
        %v5192 = vand.u32 %v1081, 4294901760
        %v5193 = vsub.f32 %v1081, %v5192
        %v5194 = vand.u32 %v5193, 4294901760
        %v5195 = vsub.f32 %v5193, %v5194
        %v5196 = vand.u32 %v5195, 4294901760
        %5197 = vmatmul.f32.gmra.mxu0 %v5196
        %v5198 = vpop.f32.mrf.mxu0
        %v5199 = vadd.f32 %v5126, %v5198
        %v5200 = vand.u32 %v1083, 4294901760
        %v5201 = vsub.f32 %v1083, %v5200
        %v5202 = vand.u32 %v5201, 4294901760
        %v5203 = vsub.f32 %v5201, %v5202
        %v5204 = vand.u32 %v5203, 4294901760
        %5205 = vmatmul.f32.gmra.mxu0 %v5204
        %v5206 = vpop.f32.mrf.mxu0
        %v5207 = vadd.f32 %v5130, %v5206
        %v5208 = vand.u32 %v1085, 4294901760
        %v5209 = vsub.f32 %v1085, %v5208
        %v5210 = vand.u32 %v5209, 4294901760
        %v5211 = vsub.f32 %v5209, %v5210
        %v5212 = vand.u32 %v5211, 4294901760
        %5213 = vmatmul.f32.gmra.mxu0 %v5212
        %v5214 = vpop.f32.mrf.mxu0
        %v5215 = vadd.f32 %v5134, %v5214
        %v5216 = vand.u32 %v1087, 4294901760
        %v5217 = vsub.f32 %v1087, %v5216
        %v5218 = vand.u32 %v5217, 4294901760
        %v5219 = vsub.f32 %v5217, %v5218
        %v5220 = vand.u32 %v5219, 4294901760
        %5221 = vmatmul.f32.gmra.mxu0 %v5220
        %v5222 = vpop.f32.mrf.mxu0
        %v5223 = vadd.f32 %v5138, %v5222
        %v5224 = vand.u32 %v1089, 4294901760
        %v5225 = vsub.f32 %v1089, %v5224
        %v5226 = vand.u32 %v5225, 4294901760
        %v5227 = vsub.f32 %v5225, %v5226
        %v5228 = vand.u32 %v5227, 4294901760
        %5229 = vmatmul.f32.gmra.mxu0 %v5228
        %v5230 = vpop.f32.mrf.mxu0
        %v5231 = vadd.f32 %v5142, %v5230
        %v5232 = vand.u32 %v1091, 4294901760
        %v5233 = vsub.f32 %v1091, %v5232
        %v5234 = vand.u32 %v5233, 4294901760
        %v5235 = vsub.f32 %v5233, %v5234
        %v5236 = vand.u32 %v5235, 4294901760
        %5237 = vmatmul.f32.gmra.mxu0 %v5236
        %v5238 = vpop.f32.mrf.mxu0
        %v5239 = vadd.f32 %v5146, %v5238
        %v5240 = vand.u32 %v1093, 4294901760
        %v5241 = vsub.f32 %v1093, %v5240
        %v5242 = vand.u32 %v5241, 4294901760
        %v5243 = vsub.f32 %v5241, %v5242
        %v5244 = vand.u32 %v5243, 4294901760
        %5245 = vmatmul.f32.gmra.mxu0 %v5244
        %v5246 = vpop.f32.mrf.mxu0
        %v5247 = vadd.f32 %v5150, %v5246
        %5248 = vdwg.mxu0
        %v5249 = vand.u32 %v1197, 4294901760
        %v5250 = vsub.f32 %v1197, %v5249
        %v5251 = vand.u32 %v5250, 4294901760
        %v5252 = vsub.f32 %v5250, %v5251
        %v5253 = vand.u32 %v5252, 4294901760
        %5254 = vmatpush.msra.mxu0 %v5253
        %v5255 = vand.u32 %v1194, 4294901760
        %v5256 = vsub.f32 %v1194, %v5255
        %v5257 = vand.u32 %v5256, 4294901760
        %v5258 = vsub.f32 %v5256, %v5257
        %v5259 = vand.u32 %v5258, 4294901760
        %5260 = vmatpush.msra.mxu0 %v5259
        %v5261 = vand.u32 %v1191, 4294901760
        %v5262 = vsub.f32 %v1191, %v5261
        %v5263 = vand.u32 %v5262, 4294901760
        %v5264 = vsub.f32 %v5262, %v5263
        %v5265 = vand.u32 %v5264, 4294901760
        %5266 = vmatpush.msra.mxu0 %v5265
        %v5267 = vand.u32 %v1188, 4294901760
        %v5268 = vsub.f32 %v1188, %v5267
        %v5269 = vand.u32 %v5268, 4294901760
        %v5270 = vsub.f32 %v5268, %v5269
        %v5271 = vand.u32 %v5270, 4294901760
        %5272 = vmatpush.msra.mxu0 %v5271
        %v5273 = vand.u32 %v1185, 4294901760
        %v5274 = vsub.f32 %v1185, %v5273
        %v5275 = vand.u32 %v5274, 4294901760
        %v5276 = vsub.f32 %v5274, %v5275
        %v5277 = vand.u32 %v5276, 4294901760
        %5278 = vmatpush.msra.mxu0 %v5277
        %v5279 = vand.u32 %v1182, 4294901760
        %v5280 = vsub.f32 %v1182, %v5279
        %v5281 = vand.u32 %v5280, 4294901760
        %v5282 = vsub.f32 %v5280, %v5281
        %v5283 = vand.u32 %v5282, 4294901760
        %5284 = vmatpush.msra.mxu0 %v5283
        %v5285 = vand.u32 %v1179, 4294901760
        %v5286 = vsub.f32 %v1179, %v5285
        %v5287 = vand.u32 %v5286, 4294901760
        %v5288 = vsub.f32 %v5286, %v5287
        %v5289 = vand.u32 %v5288, 4294901760
        %5290 = vmatpush.msra.mxu0 %v5289
        %v5291 = vand.u32 %v1176, 4294901760
        %v5292 = vsub.f32 %v1176, %v5291
        %v5293 = vand.u32 %v5292, 4294901760
        %v5294 = vsub.f32 %v5292, %v5293
        %v5295 = vand.u32 %v5294, 4294901760
        %5296 = vmatpush.msra.mxu0 %v5295
        %v5297 = vand.u32 %v1173, 4294901760
        %v5298 = vsub.f32 %v1173, %v5297
        %v5299 = vand.u32 %v5298, 4294901760
        %v5300 = vsub.f32 %v5298, %v5299
        %v5301 = vand.u32 %v5300, 4294901760
        %5302 = vmatpush.msra.mxu0 %v5301
        %v5303 = vand.u32 %v1170, 4294901760
        %v5304 = vsub.f32 %v1170, %v5303
        %v5305 = vand.u32 %v5304, 4294901760
        %v5306 = vsub.f32 %v5304, %v5305
        %v5307 = vand.u32 %v5306, 4294901760
        %5308 = vmatpush.msra.mxu0 %v5307
        %v5309 = vand.u32 %v1167, 4294901760
        %v5310 = vsub.f32 %v1167, %v5309
        %v5311 = vand.u32 %v5310, 4294901760
        %v5312 = vsub.f32 %v5310, %v5311
        %v5313 = vand.u32 %v5312, 4294901760
        %5314 = vmatpush.msra.mxu0 %v5313
        %v5315 = vand.u32 %v1164, 4294901760
        %v5316 = vsub.f32 %v1164, %v5315
        %v5317 = vand.u32 %v5316, 4294901760
        %v5318 = vsub.f32 %v5316, %v5317
        %v5319 = vand.u32 %v5318, 4294901760
        %5320 = vmatpush.msra.mxu0 %v5319
        %v5321 = vand.u32 %v1161, 4294901760
        %v5322 = vsub.f32 %v1161, %v5321
        %v5323 = vand.u32 %v5322, 4294901760
        %v5324 = vsub.f32 %v5322, %v5323
        %v5325 = vand.u32 %v5324, 4294901760
        %5326 = vmatpush.msra.mxu0 %v5325
        %v5327 = vand.u32 %v1158, 4294901760
        %v5328 = vsub.f32 %v1158, %v5327
        %v5329 = vand.u32 %v5328, 4294901760
        %v5330 = vsub.f32 %v5328, %v5329
        %v5331 = vand.u32 %v5330, 4294901760
        %5332 = vmatpush.msra.mxu0 %v5331
        %v5333 = vand.u32 %v1155, 4294901760
        %v5334 = vsub.f32 %v1155, %v5333
        %v5335 = vand.u32 %v5334, 4294901760
        %v5336 = vsub.f32 %v5334, %v5335
        %v5337 = vand.u32 %v5336, 4294901760
        %5338 = vmatpush.msra.mxu0 %v5337
        %v5339 = vand.u32 %v1152, 4294901760
        %v5340 = vsub.f32 %v1152, %v5339
        %v5341 = vand.u32 %v5340, 4294901760
        %v5342 = vsub.f32 %v5340, %v5341
        %v5343 = vand.u32 %v5342, 4294901760
        %5344 = vmatpush.msra.mxu0 %v5343
        %v5345 = vand.u32 %v1079, 4294901760
        %5346 = vmatmul.f32.gmra.mxu0 %v5345
        %v5347 = vpop.f32.mrf.mxu0
        %v5348 = vadd.f32 %v5191, %v5347
        %v5349 = vand.u32 %v1081, 4294901760
        %5350 = vmatmul.f32.gmra.mxu0 %v5349
        %v5351 = vpop.f32.mrf.mxu0
        %v5352 = vadd.f32 %v5199, %v5351
        %v5353 = vand.u32 %v1083, 4294901760
        %5354 = vmatmul.f32.gmra.mxu0 %v5353
        %v5355 = vpop.f32.mrf.mxu0
        %v5356 = vadd.f32 %v5207, %v5355
        %v5357 = vand.u32 %v1085, 4294901760
        %5358 = vmatmul.f32.gmra.mxu0 %v5357
        %v5359 = vpop.f32.mrf.mxu0
        %v5360 = vadd.f32 %v5215, %v5359
        %v5361 = vand.u32 %v1087, 4294901760
        %5362 = vmatmul.f32.gmra.mxu0 %v5361
        %v5363 = vpop.f32.mrf.mxu0
        %v5364 = vadd.f32 %v5223, %v5363
        %v5365 = vand.u32 %v1089, 4294901760
        %5366 = vmatmul.f32.gmra.mxu0 %v5365
        %v5367 = vpop.f32.mrf.mxu0
        %v5368 = vadd.f32 %v5231, %v5367
        %v5369 = vand.u32 %v1091, 4294901760
        %5370 = vmatmul.f32.gmra.mxu0 %v5369
        %v5371 = vpop.f32.mrf.mxu0
        %v5372 = vadd.f32 %v5239, %v5371
        %v5373 = vand.u32 %v1093, 4294901760
        %5374 = vmatmul.f32.gmra.mxu0 %v5373
        %v5375 = vpop.f32.mrf.mxu0
        %v5376 = vadd.f32 %v5247, %v5375
        %5377 = vdwg.mxu0
        %v5378 = vand.u32 %v1197, 4294901760
        %v5379 = vsub.f32 %v1197, %v5378
        %5380 = vmatpush.msra.mxu0 %v5379
        %v5381 = vand.u32 %v1194, 4294901760
        %v5382 = vsub.f32 %v1194, %v5381
        %5383 = vmatpush.msra.mxu0 %v5382
        %v5384 = vand.u32 %v1191, 4294901760
        %v5385 = vsub.f32 %v1191, %v5384
        %5386 = vmatpush.msra.mxu0 %v5385
        %v5387 = vand.u32 %v1188, 4294901760
        %v5388 = vsub.f32 %v1188, %v5387
        %5389 = vmatpush.msra.mxu0 %v5388
        %v5390 = vand.u32 %v1185, 4294901760
        %v5391 = vsub.f32 %v1185, %v5390
        %5392 = vmatpush.msra.mxu0 %v5391
        %v5393 = vand.u32 %v1182, 4294901760
        %v5394 = vsub.f32 %v1182, %v5393
        %5395 = vmatpush.msra.mxu0 %v5394
        %v5396 = vand.u32 %v1179, 4294901760
        %v5397 = vsub.f32 %v1179, %v5396
        %5398 = vmatpush.msra.mxu0 %v5397
        %v5399 = vand.u32 %v1176, 4294901760
        %v5400 = vsub.f32 %v1176, %v5399
        %5401 = vmatpush.msra.mxu0 %v5400
        %v5402 = vand.u32 %v1173, 4294901760
        %v5403 = vsub.f32 %v1173, %v5402
        %5404 = vmatpush.msra.mxu0 %v5403
        %v5405 = vand.u32 %v1170, 4294901760
        %v5406 = vsub.f32 %v1170, %v5405
        %5407 = vmatpush.msra.mxu0 %v5406
        %v5408 = vand.u32 %v1167, 4294901760
        %v5409 = vsub.f32 %v1167, %v5408
        %5410 = vmatpush.msra.mxu0 %v5409
        %v5411 = vand.u32 %v1164, 4294901760
        %v5412 = vsub.f32 %v1164, %v5411
        %5413 = vmatpush.msra.mxu0 %v5412
        %v5414 = vand.u32 %v1161, 4294901760
        %v5415 = vsub.f32 %v1161, %v5414
        %5416 = vmatpush.msra.mxu0 %v5415
        %v5417 = vand.u32 %v1158, 4294901760
        %v5418 = vsub.f32 %v1158, %v5417
        %5419 = vmatpush.msra.mxu0 %v5418
        %v5420 = vand.u32 %v1155, 4294901760
        %v5421 = vsub.f32 %v1155, %v5420
        %5422 = vmatpush.msra.mxu0 %v5421
        %v5423 = vand.u32 %v1152, 4294901760
        %v5424 = vsub.f32 %v1152, %v5423
        %5425 = vmatpush.msra.mxu0 %v5424
        %v5426 = vand.u32 %v1079, 4294901760
        %v5427 = vsub.f32 %v1079, %v5426
        %5428 = vmatmul.f32.gmra.mxu0 %v5427
        %v5429 = vpop.f32.mrf.mxu0
        %v5430 = vadd.f32 %v5348, %v5429
        %v5431 = vand.u32 %v1081, 4294901760
        %v5432 = vsub.f32 %v1081, %v5431
        %5433 = vmatmul.f32.gmra.mxu0 %v5432
        %v5434 = vpop.f32.mrf.mxu0
        %v5435 = vadd.f32 %v5352, %v5434
        %v5436 = vand.u32 %v1083, 4294901760
        %v5437 = vsub.f32 %v1083, %v5436
        %5438 = vmatmul.f32.gmra.mxu0 %v5437
        %v5439 = vpop.f32.mrf.mxu0
        %v5440 = vadd.f32 %v5356, %v5439
        %v5441 = vand.u32 %v1085, 4294901760
        %v5442 = vsub.f32 %v1085, %v5441
        %5443 = vmatmul.f32.gmra.mxu0 %v5442
        %v5444 = vpop.f32.mrf.mxu0
        %v5445 = vadd.f32 %v5360, %v5444
        %v5446 = vand.u32 %v1087, 4294901760
        %v5447 = vsub.f32 %v1087, %v5446
        %5448 = vmatmul.f32.gmra.mxu0 %v5447
        %v5449 = vpop.f32.mrf.mxu0
        %v5450 = vadd.f32 %v5364, %v5449
        %v5451 = vand.u32 %v1089, 4294901760
        %v5452 = vsub.f32 %v1089, %v5451
        %5453 = vmatmul.f32.gmra.mxu0 %v5452
        %v5454 = vpop.f32.mrf.mxu0
        %v5455 = vadd.f32 %v5368, %v5454
        %v5456 = vand.u32 %v1091, 4294901760
        %v5457 = vsub.f32 %v1091, %v5456
        %5458 = vmatmul.f32.gmra.mxu0 %v5457
        %v5459 = vpop.f32.mrf.mxu0
        %v5460 = vadd.f32 %v5372, %v5459
        %v5461 = vand.u32 %v1093, 4294901760
        %v5462 = vsub.f32 %v1093, %v5461
        %5463 = vmatmul.f32.gmra.mxu0 %v5462
        %v5464 = vpop.f32.mrf.mxu0
        %v5465 = vadd.f32 %v5376, %v5464
        %5466 = vdwg.mxu0
        %v5467 = vand.u32 %v1197, 4294901760
        %5468 = vmatpush.msra.mxu0 %v5467
        %v5469 = vand.u32 %v1194, 4294901760
        %5470 = vmatpush.msra.mxu0 %v5469
        %v5471 = vand.u32 %v1191, 4294901760
        %5472 = vmatpush.msra.mxu0 %v5471
        %v5473 = vand.u32 %v1188, 4294901760
        %5474 = vmatpush.msra.mxu0 %v5473
        %v5475 = vand.u32 %v1185, 4294901760
        %5476 = vmatpush.msra.mxu0 %v5475
        %v5477 = vand.u32 %v1182, 4294901760
        %5478 = vmatpush.msra.mxu0 %v5477
        %v5479 = vand.u32 %v1179, 4294901760
        %5480 = vmatpush.msra.mxu0 %v5479
        %v5481 = vand.u32 %v1176, 4294901760
        %5482 = vmatpush.msra.mxu0 %v5481
        %v5483 = vand.u32 %v1173, 4294901760
        %5484 = vmatpush.msra.mxu0 %v5483
        %v5485 = vand.u32 %v1170, 4294901760
        %5486 = vmatpush.msra.mxu0 %v5485
        %v5487 = vand.u32 %v1167, 4294901760
        %5488 = vmatpush.msra.mxu0 %v5487
        %v5489 = vand.u32 %v1164, 4294901760
        %5490 = vmatpush.msra.mxu0 %v5489
        %v5491 = vand.u32 %v1161, 4294901760
        %5492 = vmatpush.msra.mxu0 %v5491
        %v5493 = vand.u32 %v1158, 4294901760
        %5494 = vmatpush.msra.mxu0 %v5493
        %v5495 = vand.u32 %v1155, 4294901760
        %5496 = vmatpush.msra.mxu0 %v5495
        %v5497 = vand.u32 %v1152, 4294901760
        %5498 = vmatpush.msra.mxu0 %v5497
        %v5499 = vand.u32 %v1079, 4294901760
        %v5500 = vsub.f32 %v1079, %v5499
        %v5501 = vand.u32 %v5500, 4294901760
        %5502 = vmatmul.f32.gmra.mxu0 %v5501
        %v5503 = vpop.f32.mrf.mxu0
        %v5504 = vadd.f32 %v5430, %v5503
        %v5505 = vand.u32 %v1081, 4294901760
        %v5506 = vsub.f32 %v1081, %v5505
        %v5507 = vand.u32 %v5506, 4294901760
        %5508 = vmatmul.f32.gmra.mxu0 %v5507
        %v5509 = vpop.f32.mrf.mxu0
        %v5510 = vadd.f32 %v5435, %v5509
        %v5511 = vand.u32 %v1083, 4294901760
        %v5512 = vsub.f32 %v1083, %v5511
        %v5513 = vand.u32 %v5512, 4294901760
        %5514 = vmatmul.f32.gmra.mxu0 %v5513
        %v5515 = vpop.f32.mrf.mxu0
        %v5516 = vadd.f32 %v5440, %v5515
        %v5517 = vand.u32 %v1085, 4294901760
        %v5518 = vsub.f32 %v1085, %v5517
        %v5519 = vand.u32 %v5518, 4294901760
        %5520 = vmatmul.f32.gmra.mxu0 %v5519
        %v5521 = vpop.f32.mrf.mxu0
        %v5522 = vadd.f32 %v5445, %v5521
        %v5523 = vand.u32 %v1087, 4294901760
        %v5524 = vsub.f32 %v1087, %v5523
        %v5525 = vand.u32 %v5524, 4294901760
        %5526 = vmatmul.f32.gmra.mxu0 %v5525
        %v5527 = vpop.f32.mrf.mxu0
        %v5528 = vadd.f32 %v5450, %v5527
        %v5529 = vand.u32 %v1089, 4294901760
        %v5530 = vsub.f32 %v1089, %v5529
        %v5531 = vand.u32 %v5530, 4294901760
        %5532 = vmatmul.f32.gmra.mxu0 %v5531
        %v5533 = vpop.f32.mrf.mxu0
        %v5534 = vadd.f32 %v5455, %v5533
        %v5535 = vand.u32 %v1091, 4294901760
        %v5536 = vsub.f32 %v1091, %v5535
        %v5537 = vand.u32 %v5536, 4294901760
        %5538 = vmatmul.f32.gmra.mxu0 %v5537
        %v5539 = vpop.f32.mrf.mxu0
        %v5540 = vadd.f32 %v5460, %v5539
        %v5541 = vand.u32 %v1093, 4294901760
        %v5542 = vsub.f32 %v1093, %v5541
        %v5543 = vand.u32 %v5542, 4294901760
        %5544 = vmatmul.f32.gmra.mxu0 %v5543
        %v5545 = vpop.f32.mrf.mxu0
        %v5546 = vadd.f32 %v5465, %v5545
        %5547 = vdwg.mxu0
        %v5548 = vand.u32 %v1197, 4294901760
        %v5549 = vsub.f32 %v1197, %v5548
        %v5550 = vand.u32 %v5549, 4294901760
        %5551 = vmatpush.msra.mxu0 %v5550
        %v5552 = vand.u32 %v1194, 4294901760
        %v5553 = vsub.f32 %v1194, %v5552
        %v5554 = vand.u32 %v5553, 4294901760
        %5555 = vmatpush.msra.mxu0 %v5554
        %v5556 = vand.u32 %v1191, 4294901760
        %v5557 = vsub.f32 %v1191, %v5556
        %v5558 = vand.u32 %v5557, 4294901760
        %5559 = vmatpush.msra.mxu0 %v5558
        %v5560 = vand.u32 %v1188, 4294901760
        %v5561 = vsub.f32 %v1188, %v5560
        %v5562 = vand.u32 %v5561, 4294901760
        %5563 = vmatpush.msra.mxu0 %v5562
        %v5564 = vand.u32 %v1185, 4294901760
        %v5565 = vsub.f32 %v1185, %v5564
        %v5566 = vand.u32 %v5565, 4294901760
        %5567 = vmatpush.msra.mxu0 %v5566
        %v5568 = vand.u32 %v1182, 4294901760
        %v5569 = vsub.f32 %v1182, %v5568
        %v5570 = vand.u32 %v5569, 4294901760
        %5571 = vmatpush.msra.mxu0 %v5570
        %v5572 = vand.u32 %v1179, 4294901760
        %v5573 = vsub.f32 %v1179, %v5572
        %v5574 = vand.u32 %v5573, 4294901760
        %5575 = vmatpush.msra.mxu0 %v5574
        %v5576 = vand.u32 %v1176, 4294901760
        %v5577 = vsub.f32 %v1176, %v5576
        %v5578 = vand.u32 %v5577, 4294901760
        %5579 = vmatpush.msra.mxu0 %v5578
        %v5580 = vand.u32 %v1173, 4294901760
        %v5581 = vsub.f32 %v1173, %v5580
        %v5582 = vand.u32 %v5581, 4294901760
        %5583 = vmatpush.msra.mxu0 %v5582
        %v5584 = vand.u32 %v1170, 4294901760
        %v5585 = vsub.f32 %v1170, %v5584
        %v5586 = vand.u32 %v5585, 4294901760
        %5587 = vmatpush.msra.mxu0 %v5586
        %v5588 = vand.u32 %v1167, 4294901760
        %v5589 = vsub.f32 %v1167, %v5588
        %v5590 = vand.u32 %v5589, 4294901760
        %5591 = vmatpush.msra.mxu0 %v5590
        %v5592 = vand.u32 %v1164, 4294901760
        %v5593 = vsub.f32 %v1164, %v5592
        %v5594 = vand.u32 %v5593, 4294901760
        %5595 = vmatpush.msra.mxu0 %v5594
        %v5596 = vand.u32 %v1161, 4294901760
        %v5597 = vsub.f32 %v1161, %v5596
        %v5598 = vand.u32 %v5597, 4294901760
        %5599 = vmatpush.msra.mxu0 %v5598
        %v5600 = vand.u32 %v1158, 4294901760
        %v5601 = vsub.f32 %v1158, %v5600
        %v5602 = vand.u32 %v5601, 4294901760
        %5603 = vmatpush.msra.mxu0 %v5602
        %v5604 = vand.u32 %v1155, 4294901760
        %v5605 = vsub.f32 %v1155, %v5604
        %v5606 = vand.u32 %v5605, 4294901760
        %5607 = vmatpush.msra.mxu0 %v5606
        %v5608 = vand.u32 %v1152, 4294901760
        %v5609 = vsub.f32 %v1152, %v5608
        %v5610 = vand.u32 %v5609, 4294901760
        %5611 = vmatpush.msra.mxu0 %v5610
        %v5612 = vand.u32 %v1079, 4294901760
        %5613 = vmatmul.f32.gmra.mxu0 %v5612
        %v5614 = vpop.f32.mrf.mxu0
        %v5615 = vadd.f32 %v5504, %v5614
        %v5616 = vand.u32 %v1081, 4294901760
        %5617 = vmatmul.f32.gmra.mxu0 %v5616
        %v5618 = vpop.f32.mrf.mxu0
        %v5619 = vadd.f32 %v5510, %v5618
        %v5620 = vand.u32 %v1083, 4294901760
        %5621 = vmatmul.f32.gmra.mxu0 %v5620
        %v5622 = vpop.f32.mrf.mxu0
        %v5623 = vadd.f32 %v5516, %v5622
        %v5624 = vand.u32 %v1085, 4294901760
        %5625 = vmatmul.f32.gmra.mxu0 %v5624
        %v5626 = vpop.f32.mrf.mxu0
        %v5627 = vadd.f32 %v5522, %v5626
        %v5628 = vand.u32 %v1087, 4294901760
        %5629 = vmatmul.f32.gmra.mxu0 %v5628
        %v5630 = vpop.f32.mrf.mxu0
        %v5631 = vadd.f32 %v5528, %v5630
        %v5632 = vand.u32 %v1089, 4294901760
        %5633 = vmatmul.f32.gmra.mxu0 %v5632
        %v5634 = vpop.f32.mrf.mxu0
        %v5635 = vadd.f32 %v5534, %v5634
        %v5636 = vand.u32 %v1091, 4294901760
        %5637 = vmatmul.f32.gmra.mxu0 %v5636
        %v5638 = vpop.f32.mrf.mxu0
        %v5639 = vadd.f32 %v5540, %v5638
        %v5640 = vand.u32 %v1093, 4294901760
        %5641 = vmatmul.f32.gmra.mxu0 %v5640
        %v5642 = vpop.f32.mrf.mxu0
        %v5643 = vadd.f32 %v5546, %v5642
        %5644 = vdwg.mxu0
        %v5645 = vand.u32 %v1197, 4294901760
        %5646 = vmatpush.msra.mxu0 %v5645
        %v5647 = vand.u32 %v1194, 4294901760
        %5648 = vmatpush.msra.mxu0 %v5647
        %v5649 = vand.u32 %v1191, 4294901760
        %5650 = vmatpush.msra.mxu0 %v5649
        %v5651 = vand.u32 %v1188, 4294901760
        %5652 = vmatpush.msra.mxu0 %v5651
        %v5653 = vand.u32 %v1185, 4294901760
        %5654 = vmatpush.msra.mxu0 %v5653
        %v5655 = vand.u32 %v1182, 4294901760
        %5656 = vmatpush.msra.mxu0 %v5655
        %v5657 = vand.u32 %v1179, 4294901760
        %5658 = vmatpush.msra.mxu0 %v5657
        %v5659 = vand.u32 %v1176, 4294901760
        %5660 = vmatpush.msra.mxu0 %v5659
        %v5661 = vand.u32 %v1173, 4294901760
        %5662 = vmatpush.msra.mxu0 %v5661
        %v5663 = vand.u32 %v1170, 4294901760
        %5664 = vmatpush.msra.mxu0 %v5663
        %v5665 = vand.u32 %v1167, 4294901760
        %5666 = vmatpush.msra.mxu0 %v5665
        %v5667 = vand.u32 %v1164, 4294901760
        %5668 = vmatpush.msra.mxu0 %v5667
        %v5669 = vand.u32 %v1161, 4294901760
        %5670 = vmatpush.msra.mxu0 %v5669
        %v5671 = vand.u32 %v1158, 4294901760
        %5672 = vmatpush.msra.mxu0 %v5671
        %v5673 = vand.u32 %v1155, 4294901760
        %5674 = vmatpush.msra.mxu0 %v5673
        %v5675 = vand.u32 %v1152, 4294901760
        %5676 = vmatpush.msra.mxu0 %v5675
        %v5677 = vand.u32 %v1079, 4294901760
        %5678 = vmatmul.f32.gmra.mxu0 %v5677
        %v5679 = vpop.f32.mrf.mxu0
        %v5680 = vadd.f32 %v5615, %v5679
        %v5681 = vand.u32 %v1081, 4294901760
        %5682 = vmatmul.f32.gmra.mxu0 %v5681
        %v5683 = vpop.f32.mrf.mxu0
        %v5684 = vadd.f32 %v5619, %v5683
        %v5685 = vand.u32 %v1083, 4294901760
        %5686 = vmatmul.f32.gmra.mxu0 %v5685
        %v5687 = vpop.f32.mrf.mxu0
        %v5688 = vadd.f32 %v5623, %v5687
        %v5689 = vand.u32 %v1085, 4294901760
        %5690 = vmatmul.f32.gmra.mxu0 %v5689
        %v5691 = vpop.f32.mrf.mxu0
        %v5692 = vadd.f32 %v5627, %v5691
        %v5693 = vand.u32 %v1087, 4294901760
        %5694 = vmatmul.f32.gmra.mxu0 %v5693
        %v5695 = vpop.f32.mrf.mxu0
        %v5696 = vadd.f32 %v5631, %v5695
        %v5697 = vand.u32 %v1089, 4294901760
        %5698 = vmatmul.f32.gmra.mxu0 %v5697
        %v5699 = vpop.f32.mrf.mxu0
        %v5700 = vadd.f32 %v5635, %v5699
        %v5701 = vand.u32 %v1091, 4294901760
        %5702 = vmatmul.f32.gmra.mxu0 %v5701
        %v5703 = vpop.f32.mrf.mxu0
        %v5704 = vadd.f32 %v5639, %v5703
        %v5705 = vand.u32 %v1093, 4294901760
        %5706 = vmatmul.f32.gmra.mxu0 %v5705
        %v5707 = vpop.f32.mrf.mxu0
        %v5708 = vadd.f32 %v5643, %v5707
        %5709 = vdwg.mxu0
        %v5710 = vand.u32 %v1245, 4294901760
        %5711 = vmatpush.msra.mxu0 %v5710
        %v5712 = vand.u32 %v1242, 4294901760
        %5713 = vmatpush.msra.mxu0 %v5712
        %v5714 = vand.u32 %v1239, 4294901760
        %5715 = vmatpush.msra.mxu0 %v5714
        %v5716 = vand.u32 %v1236, 4294901760
        %5717 = vmatpush.msra.mxu0 %v5716
        %v5718 = vand.u32 %v1233, 4294901760
        %5719 = vmatpush.msra.mxu0 %v5718
        %v5720 = vand.u32 %v1230, 4294901760
        %5721 = vmatpush.msra.mxu0 %v5720
        %v5722 = vand.u32 %v1227, 4294901760
        %5723 = vmatpush.msra.mxu0 %v5722
        %v5724 = vand.u32 %v1224, 4294901760
        %5725 = vmatpush.msra.mxu0 %v5724
        %v5726 = vand.u32 %v1221, 4294901760
        %5727 = vmatpush.msra.mxu0 %v5726
        %v5728 = vand.u32 %v1218, 4294901760
        %5729 = vmatpush.msra.mxu0 %v5728
        %v5730 = vand.u32 %v1215, 4294901760
        %5731 = vmatpush.msra.mxu0 %v5730
        %v5732 = vand.u32 %v1212, 4294901760
        %5733 = vmatpush.msra.mxu0 %v5732
        %v5734 = vand.u32 %v1209, 4294901760
        %5735 = vmatpush.msra.mxu0 %v5734
        %v5736 = vand.u32 %v1206, 4294901760
        %5737 = vmatpush.msra.mxu0 %v5736
        %v5738 = vand.u32 %v1203, 4294901760
        %5739 = vmatpush.msra.mxu0 %v5738
        %v5740 = vand.u32 %v1200, 4294901760
        %5741 = vmatpush.msra.mxu0 %v5740
        %v5742 = vand.u32 %v1094, 4294901760
        %v5743 = vsub.f32 %v1094, %v5742
        %v5744 = vand.u32 %v5743, 4294901760
        %v5745 = vsub.f32 %v5743, %v5744
        %v5746 = vand.u32 %v5745, 4294901760
        %5747 = vmatmul.f32.gmra.mxu0 %v5746
        %v5748 = vpop.f32.mrf.mxu0
        %v5749 = vadd.f32 %v5680, %v5748
        %v5750 = vand.u32 %v1095, 4294901760
        %v5751 = vsub.f32 %v1095, %v5750
        %v5752 = vand.u32 %v5751, 4294901760
        %v5753 = vsub.f32 %v5751, %v5752
        %v5754 = vand.u32 %v5753, 4294901760
        %5755 = vmatmul.f32.gmra.mxu0 %v5754
        %v5756 = vpop.f32.mrf.mxu0
        %v5757 = vadd.f32 %v5684, %v5756
        %v5758 = vand.u32 %v1096, 4294901760
        %v5759 = vsub.f32 %v1096, %v5758
        %v5760 = vand.u32 %v5759, 4294901760
        %v5761 = vsub.f32 %v5759, %v5760
        %v5762 = vand.u32 %v5761, 4294901760
        %5763 = vmatmul.f32.gmra.mxu0 %v5762
        %v5764 = vpop.f32.mrf.mxu0
        %v5765 = vadd.f32 %v5688, %v5764
        %v5766 = vand.u32 %v1097, 4294901760
        %v5767 = vsub.f32 %v1097, %v5766
        %v5768 = vand.u32 %v5767, 4294901760
        %v5769 = vsub.f32 %v5767, %v5768
        %v5770 = vand.u32 %v5769, 4294901760
        %5771 = vmatmul.f32.gmra.mxu0 %v5770
        %v5772 = vpop.f32.mrf.mxu0
        %v5773 = vadd.f32 %v5692, %v5772
        %v5774 = vand.u32 %v1098, 4294901760
        %v5775 = vsub.f32 %v1098, %v5774
        %v5776 = vand.u32 %v5775, 4294901760
        %v5777 = vsub.f32 %v5775, %v5776
        %v5778 = vand.u32 %v5777, 4294901760
        %5779 = vmatmul.f32.gmra.mxu0 %v5778
        %v5780 = vpop.f32.mrf.mxu0
        %v5781 = vadd.f32 %v5696, %v5780
        %v5782 = vand.u32 %v1099, 4294901760
        %v5783 = vsub.f32 %v1099, %v5782
        %v5784 = vand.u32 %v5783, 4294901760
        %v5785 = vsub.f32 %v5783, %v5784
        %v5786 = vand.u32 %v5785, 4294901760
        %5787 = vmatmul.f32.gmra.mxu0 %v5786
        %v5788 = vpop.f32.mrf.mxu0
        %v5789 = vadd.f32 %v5700, %v5788
        %v5790 = vand.u32 %v1100, 4294901760
        %v5791 = vsub.f32 %v1100, %v5790
        %v5792 = vand.u32 %v5791, 4294901760
        %v5793 = vsub.f32 %v5791, %v5792
        %v5794 = vand.u32 %v5793, 4294901760
        %5795 = vmatmul.f32.gmra.mxu0 %v5794
        %v5796 = vpop.f32.mrf.mxu0
        %v5797 = vadd.f32 %v5704, %v5796
        %v5798 = vand.u32 %v1101, 4294901760
        %v5799 = vsub.f32 %v1101, %v5798
        %v5800 = vand.u32 %v5799, 4294901760
        %v5801 = vsub.f32 %v5799, %v5800
        %v5802 = vand.u32 %v5801, 4294901760
        %5803 = vmatmul.f32.gmra.mxu0 %v5802
        %v5804 = vpop.f32.mrf.mxu0
        %v5805 = vadd.f32 %v5708, %v5804
        %5806 = vdwg.mxu0
        %v5807 = vand.u32 %v1245, 4294901760
        %v5808 = vsub.f32 %v1245, %v5807
        %v5809 = vand.u32 %v5808, 4294901760
        %v5810 = vsub.f32 %v5808, %v5809
        %v5811 = vand.u32 %v5810, 4294901760
        %5812 = vmatpush.msra.mxu0 %v5811
        %v5813 = vand.u32 %v1242, 4294901760
        %v5814 = vsub.f32 %v1242, %v5813
        %v5815 = vand.u32 %v5814, 4294901760
        %v5816 = vsub.f32 %v5814, %v5815
        %v5817 = vand.u32 %v5816, 4294901760
        %5818 = vmatpush.msra.mxu0 %v5817
        %v5819 = vand.u32 %v1239, 4294901760
        %v5820 = vsub.f32 %v1239, %v5819
        %v5821 = vand.u32 %v5820, 4294901760
        %v5822 = vsub.f32 %v5820, %v5821
        %v5823 = vand.u32 %v5822, 4294901760
        %5824 = vmatpush.msra.mxu0 %v5823
        %v5825 = vand.u32 %v1236, 4294901760
        %v5826 = vsub.f32 %v1236, %v5825
        %v5827 = vand.u32 %v5826, 4294901760
        %v5828 = vsub.f32 %v5826, %v5827
        %v5829 = vand.u32 %v5828, 4294901760
        %5830 = vmatpush.msra.mxu0 %v5829
        %v5831 = vand.u32 %v1233, 4294901760
        %v5832 = vsub.f32 %v1233, %v5831
        %v5833 = vand.u32 %v5832, 4294901760
        %v5834 = vsub.f32 %v5832, %v5833
        %v5835 = vand.u32 %v5834, 4294901760
        %5836 = vmatpush.msra.mxu0 %v5835
        %v5837 = vand.u32 %v1230, 4294901760
        %v5838 = vsub.f32 %v1230, %v5837
        %v5839 = vand.u32 %v5838, 4294901760
        %v5840 = vsub.f32 %v5838, %v5839
        %v5841 = vand.u32 %v5840, 4294901760
        %5842 = vmatpush.msra.mxu0 %v5841
        %v5843 = vand.u32 %v1227, 4294901760
        %v5844 = vsub.f32 %v1227, %v5843
        %v5845 = vand.u32 %v5844, 4294901760
        %v5846 = vsub.f32 %v5844, %v5845
        %v5847 = vand.u32 %v5846, 4294901760
        %5848 = vmatpush.msra.mxu0 %v5847
        %v5849 = vand.u32 %v1224, 4294901760
        %v5850 = vsub.f32 %v1224, %v5849
        %v5851 = vand.u32 %v5850, 4294901760
        %v5852 = vsub.f32 %v5850, %v5851
        %v5853 = vand.u32 %v5852, 4294901760
        %5854 = vmatpush.msra.mxu0 %v5853
        %v5855 = vand.u32 %v1221, 4294901760
        %v5856 = vsub.f32 %v1221, %v5855
        %v5857 = vand.u32 %v5856, 4294901760
        %v5858 = vsub.f32 %v5856, %v5857
        %v5859 = vand.u32 %v5858, 4294901760
        %5860 = vmatpush.msra.mxu0 %v5859
        %v5861 = vand.u32 %v1218, 4294901760
        %v5862 = vsub.f32 %v1218, %v5861
        %v5863 = vand.u32 %v5862, 4294901760
        %v5864 = vsub.f32 %v5862, %v5863
        %v5865 = vand.u32 %v5864, 4294901760
        %5866 = vmatpush.msra.mxu0 %v5865
        %v5867 = vand.u32 %v1215, 4294901760
        %v5868 = vsub.f32 %v1215, %v5867
        %v5869 = vand.u32 %v5868, 4294901760
        %v5870 = vsub.f32 %v5868, %v5869
        %v5871 = vand.u32 %v5870, 4294901760
        %5872 = vmatpush.msra.mxu0 %v5871
        %v5873 = vand.u32 %v1212, 4294901760
        %v5874 = vsub.f32 %v1212, %v5873
        %v5875 = vand.u32 %v5874, 4294901760
        %v5876 = vsub.f32 %v5874, %v5875
        %v5877 = vand.u32 %v5876, 4294901760
        %5878 = vmatpush.msra.mxu0 %v5877
        %v5879 = vand.u32 %v1209, 4294901760
        %v5880 = vsub.f32 %v1209, %v5879
        %v5881 = vand.u32 %v5880, 4294901760
        %v5882 = vsub.f32 %v5880, %v5881
        %v5883 = vand.u32 %v5882, 4294901760
        %5884 = vmatpush.msra.mxu0 %v5883
        %v5885 = vand.u32 %v1206, 4294901760
        %v5886 = vsub.f32 %v1206, %v5885
        %v5887 = vand.u32 %v5886, 4294901760
        %v5888 = vsub.f32 %v5886, %v5887
        %v5889 = vand.u32 %v5888, 4294901760
        %5890 = vmatpush.msra.mxu0 %v5889
        %v5891 = vand.u32 %v1203, 4294901760
        %v5892 = vsub.f32 %v1203, %v5891
        %v5893 = vand.u32 %v5892, 4294901760
        %v5894 = vsub.f32 %v5892, %v5893
        %v5895 = vand.u32 %v5894, 4294901760
        %5896 = vmatpush.msra.mxu0 %v5895
        %v5897 = vand.u32 %v1200, 4294901760
        %v5898 = vsub.f32 %v1200, %v5897
        %v5899 = vand.u32 %v5898, 4294901760
        %v5900 = vsub.f32 %v5898, %v5899
        %v5901 = vand.u32 %v5900, 4294901760
        %5902 = vmatpush.msra.mxu0 %v5901
        %v5903 = vand.u32 %v1094, 4294901760
        %5904 = vmatmul.f32.gmra.mxu0 %v5903
        %v5905 = vpop.f32.mrf.mxu0
        %v5906 = vadd.f32 %v5749, %v5905
        %v5907 = vand.u32 %v1095, 4294901760
        %5908 = vmatmul.f32.gmra.mxu0 %v5907
        %v5909 = vpop.f32.mrf.mxu0
        %v5910 = vadd.f32 %v5757, %v5909
        %v5911 = vand.u32 %v1096, 4294901760
        %5912 = vmatmul.f32.gmra.mxu0 %v5911
        %v5913 = vpop.f32.mrf.mxu0
        %v5914 = vadd.f32 %v5765, %v5913
        %v5915 = vand.u32 %v1097, 4294901760
        %5916 = vmatmul.f32.gmra.mxu0 %v5915
        %v5917 = vpop.f32.mrf.mxu0
        %v5918 = vadd.f32 %v5773, %v5917
        %v5919 = vand.u32 %v1098, 4294901760
        %5920 = vmatmul.f32.gmra.mxu0 %v5919
        %v5921 = vpop.f32.mrf.mxu0
        %v5922 = vadd.f32 %v5781, %v5921
        %v5923 = vand.u32 %v1099, 4294901760
        %5924 = vmatmul.f32.gmra.mxu0 %v5923
        %v5925 = vpop.f32.mrf.mxu0
        %v5926 = vadd.f32 %v5789, %v5925
        %v5927 = vand.u32 %v1100, 4294901760
        %5928 = vmatmul.f32.gmra.mxu0 %v5927
        %v5929 = vpop.f32.mrf.mxu0
        %v5930 = vadd.f32 %v5797, %v5929
        %v5931 = vand.u32 %v1101, 4294901760
        %5932 = vmatmul.f32.gmra.mxu0 %v5931
        %v5933 = vpop.f32.mrf.mxu0
        %v5934 = vadd.f32 %v5805, %v5933
        %5935 = vdwg.mxu0
        %v5936 = vand.u32 %v1245, 4294901760
        %v5937 = vsub.f32 %v1245, %v5936
        %5938 = vmatpush.msra.mxu0 %v5937
        %v5939 = vand.u32 %v1242, 4294901760
        %v5940 = vsub.f32 %v1242, %v5939
        %5941 = vmatpush.msra.mxu0 %v5940
        %v5942 = vand.u32 %v1239, 4294901760
        %v5943 = vsub.f32 %v1239, %v5942
        %5944 = vmatpush.msra.mxu0 %v5943
        %v5945 = vand.u32 %v1236, 4294901760
        %v5946 = vsub.f32 %v1236, %v5945
        %5947 = vmatpush.msra.mxu0 %v5946
        %v5948 = vand.u32 %v1233, 4294901760
        %v5949 = vsub.f32 %v1233, %v5948
        %5950 = vmatpush.msra.mxu0 %v5949
        %v5951 = vand.u32 %v1230, 4294901760
        %v5952 = vsub.f32 %v1230, %v5951
        %5953 = vmatpush.msra.mxu0 %v5952
        %v5954 = vand.u32 %v1227, 4294901760
        %v5955 = vsub.f32 %v1227, %v5954
        %5956 = vmatpush.msra.mxu0 %v5955
        %v5957 = vand.u32 %v1224, 4294901760
        %v5958 = vsub.f32 %v1224, %v5957
        %5959 = vmatpush.msra.mxu0 %v5958
        %v5960 = vand.u32 %v1221, 4294901760
        %v5961 = vsub.f32 %v1221, %v5960
        %5962 = vmatpush.msra.mxu0 %v5961
        %v5963 = vand.u32 %v1218, 4294901760
        %v5964 = vsub.f32 %v1218, %v5963
        %5965 = vmatpush.msra.mxu0 %v5964
        %v5966 = vand.u32 %v1215, 4294901760
        %v5967 = vsub.f32 %v1215, %v5966
        %5968 = vmatpush.msra.mxu0 %v5967
        %v5969 = vand.u32 %v1212, 4294901760
        %v5970 = vsub.f32 %v1212, %v5969
        %5971 = vmatpush.msra.mxu0 %v5970
        %v5972 = vand.u32 %v1209, 4294901760
        %v5973 = vsub.f32 %v1209, %v5972
        %5974 = vmatpush.msra.mxu0 %v5973
        %v5975 = vand.u32 %v1206, 4294901760
        %v5976 = vsub.f32 %v1206, %v5975
        %5977 = vmatpush.msra.mxu0 %v5976
        %v5978 = vand.u32 %v1203, 4294901760
        %v5979 = vsub.f32 %v1203, %v5978
        %5980 = vmatpush.msra.mxu0 %v5979
        %v5981 = vand.u32 %v1200, 4294901760
        %v5982 = vsub.f32 %v1200, %v5981
        %5983 = vmatpush.msra.mxu0 %v5982
        %v5984 = vand.u32 %v1094, 4294901760
        %v5985 = vsub.f32 %v1094, %v5984
        %5986 = vmatmul.f32.gmra.mxu0 %v5985
        %v5987 = vpop.f32.mrf.mxu0
        %v5988 = vadd.f32 %v5906, %v5987
        %v5989 = vand.u32 %v1095, 4294901760
        %v5990 = vsub.f32 %v1095, %v5989
        %5991 = vmatmul.f32.gmra.mxu0 %v5990
        %v5992 = vpop.f32.mrf.mxu0
        %v5993 = vadd.f32 %v5910, %v5992
        %v5994 = vand.u32 %v1096, 4294901760
        %v5995 = vsub.f32 %v1096, %v5994
        %5996 = vmatmul.f32.gmra.mxu0 %v5995
        %v5997 = vpop.f32.mrf.mxu0
        %v5998 = vadd.f32 %v5914, %v5997
        %v5999 = vand.u32 %v1097, 4294901760
        %v6000 = vsub.f32 %v1097, %v5999
        %6001 = vmatmul.f32.gmra.mxu0 %v6000
        %v6002 = vpop.f32.mrf.mxu0
        %v6003 = vadd.f32 %v5918, %v6002
        %v6004 = vand.u32 %v1098, 4294901760
        %v6005 = vsub.f32 %v1098, %v6004
        %6006 = vmatmul.f32.gmra.mxu0 %v6005
        %v6007 = vpop.f32.mrf.mxu0
        %v6008 = vadd.f32 %v5922, %v6007
        %v6009 = vand.u32 %v1099, 4294901760
        %v6010 = vsub.f32 %v1099, %v6009
        %6011 = vmatmul.f32.gmra.mxu0 %v6010
        %v6012 = vpop.f32.mrf.mxu0
        %v6013 = vadd.f32 %v5926, %v6012
        %v6014 = vand.u32 %v1100, 4294901760
        %v6015 = vsub.f32 %v1100, %v6014
        %6016 = vmatmul.f32.gmra.mxu0 %v6015
        %v6017 = vpop.f32.mrf.mxu0
        %v6018 = vadd.f32 %v5930, %v6017
        %v6019 = vand.u32 %v1101, 4294901760
        %v6020 = vsub.f32 %v1101, %v6019
        %6021 = vmatmul.f32.gmra.mxu0 %v6020
        %v6022 = vpop.f32.mrf.mxu0
        %v6023 = vadd.f32 %v5934, %v6022
        %6024 = vdwg.mxu0
        %v6025 = vand.u32 %v1245, 4294901760
        %6026 = vmatpush.msra.mxu0 %v6025
        %v6027 = vand.u32 %v1242, 4294901760
        %6028 = vmatpush.msra.mxu0 %v6027
        %v6029 = vand.u32 %v1239, 4294901760
        %6030 = vmatpush.msra.mxu0 %v6029
        %v6031 = vand.u32 %v1236, 4294901760
        %6032 = vmatpush.msra.mxu0 %v6031
        %v6033 = vand.u32 %v1233, 4294901760
        %6034 = vmatpush.msra.mxu0 %v6033
        %v6035 = vand.u32 %v1230, 4294901760
        %6036 = vmatpush.msra.mxu0 %v6035
        %v6037 = vand.u32 %v1227, 4294901760
        %6038 = vmatpush.msra.mxu0 %v6037
        %v6039 = vand.u32 %v1224, 4294901760
        %6040 = vmatpush.msra.mxu0 %v6039
        %v6041 = vand.u32 %v1221, 4294901760
        %6042 = vmatpush.msra.mxu0 %v6041
        %v6043 = vand.u32 %v1218, 4294901760
        %6044 = vmatpush.msra.mxu0 %v6043
        %v6045 = vand.u32 %v1215, 4294901760
        %6046 = vmatpush.msra.mxu0 %v6045
        %v6047 = vand.u32 %v1212, 4294901760
        %6048 = vmatpush.msra.mxu0 %v6047
        %v6049 = vand.u32 %v1209, 4294901760
        %6050 = vmatpush.msra.mxu0 %v6049
        %v6051 = vand.u32 %v1206, 4294901760
        %6052 = vmatpush.msra.mxu0 %v6051
        %v6053 = vand.u32 %v1203, 4294901760
        %6054 = vmatpush.msra.mxu0 %v6053
        %v6055 = vand.u32 %v1200, 4294901760
        %6056 = vmatpush.msra.mxu0 %v6055
        %v6057 = vand.u32 %v1094, 4294901760
        %v6058 = vsub.f32 %v1094, %v6057
        %v6059 = vand.u32 %v6058, 4294901760
        %6060 = vmatmul.f32.gmra.mxu0 %v6059
        %v6061 = vpop.f32.mrf.mxu0
        %v6062 = vadd.f32 %v5988, %v6061
        %v6063 = vand.u32 %v1095, 4294901760
        %v6064 = vsub.f32 %v1095, %v6063
        %v6065 = vand.u32 %v6064, 4294901760
        %6066 = vmatmul.f32.gmra.mxu0 %v6065
        %v6067 = vpop.f32.mrf.mxu0
        %v6068 = vadd.f32 %v5993, %v6067
        %v6069 = vand.u32 %v1096, 4294901760
        %v6070 = vsub.f32 %v1096, %v6069
        %v6071 = vand.u32 %v6070, 4294901760
        %6072 = vmatmul.f32.gmra.mxu0 %v6071
        %v6073 = vpop.f32.mrf.mxu0
        %v6074 = vadd.f32 %v5998, %v6073
        %v6075 = vand.u32 %v1097, 4294901760
        %v6076 = vsub.f32 %v1097, %v6075
        %v6077 = vand.u32 %v6076, 4294901760
        %6078 = vmatmul.f32.gmra.mxu0 %v6077
        %v6079 = vpop.f32.mrf.mxu0
        %v6080 = vadd.f32 %v6003, %v6079
        %v6081 = vand.u32 %v1098, 4294901760
        %v6082 = vsub.f32 %v1098, %v6081
        %v6083 = vand.u32 %v6082, 4294901760
        %6084 = vmatmul.f32.gmra.mxu0 %v6083
        %v6085 = vpop.f32.mrf.mxu0
        %v6086 = vadd.f32 %v6008, %v6085
        %v6087 = vand.u32 %v1099, 4294901760
        %v6088 = vsub.f32 %v1099, %v6087
        %v6089 = vand.u32 %v6088, 4294901760
        %6090 = vmatmul.f32.gmra.mxu0 %v6089
        %v6091 = vpop.f32.mrf.mxu0
        %v6092 = vadd.f32 %v6013, %v6091
        %v6093 = vand.u32 %v1100, 4294901760
        %v6094 = vsub.f32 %v1100, %v6093
        %v6095 = vand.u32 %v6094, 4294901760
        %6096 = vmatmul.f32.gmra.mxu0 %v6095
        %v6097 = vpop.f32.mrf.mxu0
        %v6098 = vadd.f32 %v6018, %v6097
        %v6099 = vand.u32 %v1101, 4294901760
        %v6100 = vsub.f32 %v1101, %v6099
        %v6101 = vand.u32 %v6100, 4294901760
        %6102 = vmatmul.f32.gmra.mxu0 %v6101
        %v6103 = vpop.f32.mrf.mxu0
        %v6104 = vadd.f32 %v6023, %v6103
        %6105 = vdwg.mxu0
        %v6106 = vand.u32 %v1245, 4294901760
        %v6107 = vsub.f32 %v1245, %v6106
        %v6108 = vand.u32 %v6107, 4294901760
        %6109 = vmatpush.msra.mxu0 %v6108
        %v6110 = vand.u32 %v1242, 4294901760
        %v6111 = vsub.f32 %v1242, %v6110
        %v6112 = vand.u32 %v6111, 4294901760
        %6113 = vmatpush.msra.mxu0 %v6112
        %v6114 = vand.u32 %v1239, 4294901760
        %v6115 = vsub.f32 %v1239, %v6114
        %v6116 = vand.u32 %v6115, 4294901760
        %6117 = vmatpush.msra.mxu0 %v6116
        %v6118 = vand.u32 %v1236, 4294901760
        %v6119 = vsub.f32 %v1236, %v6118
        %v6120 = vand.u32 %v6119, 4294901760
        %6121 = vmatpush.msra.mxu0 %v6120
        %v6122 = vand.u32 %v1233, 4294901760
        %v6123 = vsub.f32 %v1233, %v6122
        %v6124 = vand.u32 %v6123, 4294901760
        %6125 = vmatpush.msra.mxu0 %v6124
        %v6126 = vand.u32 %v1230, 4294901760
        %v6127 = vsub.f32 %v1230, %v6126
        %v6128 = vand.u32 %v6127, 4294901760
        %6129 = vmatpush.msra.mxu0 %v6128
        %v6130 = vand.u32 %v1227, 4294901760
        %v6131 = vsub.f32 %v1227, %v6130
        %v6132 = vand.u32 %v6131, 4294901760
        %6133 = vmatpush.msra.mxu0 %v6132
        %v6134 = vand.u32 %v1224, 4294901760
        %v6135 = vsub.f32 %v1224, %v6134
        %v6136 = vand.u32 %v6135, 4294901760
        %6137 = vmatpush.msra.mxu0 %v6136
        %v6138 = vand.u32 %v1221, 4294901760
        %v6139 = vsub.f32 %v1221, %v6138
        %v6140 = vand.u32 %v6139, 4294901760
        %6141 = vmatpush.msra.mxu0 %v6140
        %v6142 = vand.u32 %v1218, 4294901760
        %v6143 = vsub.f32 %v1218, %v6142
        %v6144 = vand.u32 %v6143, 4294901760
        %6145 = vmatpush.msra.mxu0 %v6144
        %v6146 = vand.u32 %v1215, 4294901760
        %v6147 = vsub.f32 %v1215, %v6146
        %v6148 = vand.u32 %v6147, 4294901760
        %6149 = vmatpush.msra.mxu0 %v6148
        %v6150 = vand.u32 %v1212, 4294901760
        %v6151 = vsub.f32 %v1212, %v6150
        %v6152 = vand.u32 %v6151, 4294901760
        %6153 = vmatpush.msra.mxu0 %v6152
        %v6154 = vand.u32 %v1209, 4294901760
        %v6155 = vsub.f32 %v1209, %v6154
        %v6156 = vand.u32 %v6155, 4294901760
        %6157 = vmatpush.msra.mxu0 %v6156
        %v6158 = vand.u32 %v1206, 4294901760
        %v6159 = vsub.f32 %v1206, %v6158
        %v6160 = vand.u32 %v6159, 4294901760
        %6161 = vmatpush.msra.mxu0 %v6160
        %v6162 = vand.u32 %v1203, 4294901760
        %v6163 = vsub.f32 %v1203, %v6162
        %v6164 = vand.u32 %v6163, 4294901760
        %6165 = vmatpush.msra.mxu0 %v6164
        %v6166 = vand.u32 %v1200, 4294901760
        %v6167 = vsub.f32 %v1200, %v6166
        %v6168 = vand.u32 %v6167, 4294901760
        %6169 = vmatpush.msra.mxu0 %v6168
        %v6170 = vand.u32 %v1094, 4294901760
        %6171 = vmatmul.f32.gmra.mxu0 %v6170
        %v6172 = vpop.f32.mrf.mxu0
        %v6173 = vadd.f32 %v6062, %v6172
        %v6174 = vand.u32 %v1095, 4294901760
        %6175 = vmatmul.f32.gmra.mxu0 %v6174
        %v6176 = vpop.f32.mrf.mxu0
        %v6177 = vadd.f32 %v6068, %v6176
        %v6178 = vand.u32 %v1096, 4294901760
        %6179 = vmatmul.f32.gmra.mxu0 %v6178
        %v6180 = vpop.f32.mrf.mxu0
        %v6181 = vadd.f32 %v6074, %v6180
        %v6182 = vand.u32 %v1097, 4294901760
        %6183 = vmatmul.f32.gmra.mxu0 %v6182
        %v6184 = vpop.f32.mrf.mxu0
        %v6185 = vadd.f32 %v6080, %v6184
        %v6186 = vand.u32 %v1098, 4294901760
        %6187 = vmatmul.f32.gmra.mxu0 %v6186
        %v6188 = vpop.f32.mrf.mxu0
        %v6189 = vadd.f32 %v6086, %v6188
        %v6190 = vand.u32 %v1099, 4294901760
        %6191 = vmatmul.f32.gmra.mxu0 %v6190
        %v6192 = vpop.f32.mrf.mxu0
        %v6193 = vadd.f32 %v6092, %v6192
        %v6194 = vand.u32 %v1100, 4294901760
        %6195 = vmatmul.f32.gmra.mxu0 %v6194
        %v6196 = vpop.f32.mrf.mxu0
        %v6197 = vadd.f32 %v6098, %v6196
        %v6198 = vand.u32 %v1101, 4294901760
        %6199 = vmatmul.f32.gmra.mxu0 %v6198
        %v6200 = vpop.f32.mrf.mxu0
        %v6201 = vadd.f32 %v6104, %v6200
        %6202 = vdwg.mxu0
        %v6203 = vand.u32 %v1245, 4294901760
        %6204 = vmatpush.msra.mxu0 %v6203
        %v6205 = vand.u32 %v1242, 4294901760
        %6206 = vmatpush.msra.mxu0 %v6205
        %v6207 = vand.u32 %v1239, 4294901760
        %6208 = vmatpush.msra.mxu0 %v6207
        %v6209 = vand.u32 %v1236, 4294901760
        %6210 = vmatpush.msra.mxu0 %v6209
        %v6211 = vand.u32 %v1233, 4294901760
        %6212 = vmatpush.msra.mxu0 %v6211
        %v6213 = vand.u32 %v1230, 4294901760
        %6214 = vmatpush.msra.mxu0 %v6213
        %v6215 = vand.u32 %v1227, 4294901760
        %6216 = vmatpush.msra.mxu0 %v6215
        %v6217 = vand.u32 %v1224, 4294901760
        %6218 = vmatpush.msra.mxu0 %v6217
        %v6219 = vand.u32 %v1221, 4294901760
        %6220 = vmatpush.msra.mxu0 %v6219
        %v6221 = vand.u32 %v1218, 4294901760
        %6222 = vmatpush.msra.mxu0 %v6221
        %v6223 = vand.u32 %v1215, 4294901760
        %6224 = vmatpush.msra.mxu0 %v6223
        %v6225 = vand.u32 %v1212, 4294901760
        %6226 = vmatpush.msra.mxu0 %v6225
        %v6227 = vand.u32 %v1209, 4294901760
        %6228 = vmatpush.msra.mxu0 %v6227
        %v6229 = vand.u32 %v1206, 4294901760
        %6230 = vmatpush.msra.mxu0 %v6229
        %v6231 = vand.u32 %v1203, 4294901760
        %6232 = vmatpush.msra.mxu0 %v6231
        %v6233 = vand.u32 %v1200, 4294901760
        %6234 = vmatpush.msra.mxu0 %v6233
        %v6235 = vand.u32 %v1094, 4294901760
        %6236 = vmatmul.f32.gmra.mxu0 %v6235
        %v6237 = vpop.f32.mrf.mxu0
        %v6238 = vadd.f32 %v6173, %v6237
        %v6239 = vand.u32 %v1095, 4294901760
        %6240 = vmatmul.f32.gmra.mxu0 %v6239
        %v6241 = vpop.f32.mrf.mxu0
        %v6242 = vadd.f32 %v6177, %v6241
        %v6243 = vand.u32 %v1096, 4294901760
        %6244 = vmatmul.f32.gmra.mxu0 %v6243
        %v6245 = vpop.f32.mrf.mxu0
        %v6246 = vadd.f32 %v6181, %v6245
        %v6247 = vand.u32 %v1097, 4294901760
        %6248 = vmatmul.f32.gmra.mxu0 %v6247
        %v6249 = vpop.f32.mrf.mxu0
        %v6250 = vadd.f32 %v6185, %v6249
        %v6251 = vand.u32 %v1098, 4294901760
        %6252 = vmatmul.f32.gmra.mxu0 %v6251
        %v6253 = vpop.f32.mrf.mxu0
        %v6254 = vadd.f32 %v6189, %v6253
        %v6255 = vand.u32 %v1099, 4294901760
        %6256 = vmatmul.f32.gmra.mxu0 %v6255
        %v6257 = vpop.f32.mrf.mxu0
        %v6258 = vadd.f32 %v6193, %v6257
        %v6259 = vand.u32 %v1100, 4294901760
        %6260 = vmatmul.f32.gmra.mxu0 %v6259
        %v6261 = vpop.f32.mrf.mxu0
        %v6262 = vadd.f32 %v6197, %v6261
        %v6263 = vand.u32 %v1101, 4294901760
        %6264 = vmatmul.f32.gmra.mxu0 %v6263
        %v6265 = vpop.f32.mrf.mxu0
        %v6266 = vadd.f32 %v6201, %v6265
        %6267 = vdwg.mxu0
        %6268 = vst [vmem:[%s224] sm:$0xff] %v2890
        %6269 = vst [vmem:[%s224 + $0x8] sm:$0xff] %v4564
        %6270 = vst [vmem:[%s224 + $0x10] sm:$0xff] %v6238
        %6271 = vst [vmem:[%s224 + $0x18] sm:$0xff] %v2894
        %6272 = vst [vmem:[%s224 + $0x20] sm:$0xff] %v4568
        %6273 = vst [vmem:[%s224 + $0x28] sm:$0xff] %v6242
        %6274 = vst [vmem:[%s224 + $0x30] sm:$0xff] %v2898
        %6275 = vst [vmem:[%s224 + $0x38] sm:$0xff] %v4572
        %6276 = vst [vmem:[%s224 + $0x40] sm:$0xff] %v6246
        %6277 = vst [vmem:[%s224 + $0x48] sm:$0xff] %v2902
        %6278 = vst [vmem:[%s224 + $0x50] sm:$0xff] %v4576
        %6279 = vst [vmem:[%s224 + $0x58] sm:$0xff] %v6250
        %6280 = vst [vmem:[%s224 + $0x60] sm:$0xff] %v2906
        %6281 = vst [vmem:[%s224 + $0x68] sm:$0xff] %v4580
        %6282 = vst [vmem:[%s224 + $0x70] sm:$0xff] %v6254
        %6283 = vst [vmem:[%s224 + $0x78] sm:$0xff] %v2910
        %6284 = vst [vmem:[%s224 + $0x80] sm:$0xff] %v4584
        %6285 = vst [vmem:[%s224 + $0x88] sm:$0xff] %v6258
        %6286 = vst [vmem:[%s224 + $0x90] sm:$0xff] %v2914
        %6287 = vst [vmem:[%s224 + $0x98] sm:$0xff] %v4588
        %6288 = vst [vmem:[%s224 + $0xa0] sm:$0xff] %v6262
        %6289 = vst [vmem:[%s224 + $0xa8] sm:$0xff] %v2918
        %6290 = vst [vmem:[%s224 + $0xb0] sm:$0xff] %v4592
        %6291 = vst [vmem:[%s224 + $0xb8] sm:$0xff] %v6266
        %s6292 = sand.u32 %s121, 1
        %s6293 = scalar_lea.sflag [#allocation4], %s6292
        %s6294 = sand.u32 %s121, 1
        %s6295 = smul.addr %s6294, 192
        %s6296 = scalar_lea.vmem [#allocation5], %s6295
        // Predicated region
        $region41: #{tpu_custom_call.1} parent=35 // pred_check
          %p6297 = pneg %p131
        $region42: #{tpu_custom_call.1} parent=35 // pred_check_branch
          %6299 = sbr.rel (%p6297) target = $region44
        $region43: #{tpu_custom_call.1} parent=35 // pred_region
          %s6300 = smul.u32 8, %s19
          %6302 = vsyncadd %s6293, 0
          %s6303 = smul.addr %s6300, 3
          %s6304 = smul.addr %s6303, 8
          %s6305 = scalar_lea.hbm %s4, %s6304
          %s6306 = sshll.u32 %s6296, 4
          %s6307 = int_to_ptr.vmem [resolvable:$true] %s6306
          %s6308 = sshll.u32 %s6305, 4
          %s6309 = int_to_ptr.hbm [resolvable:$true] %s6308
          %6314 = dma.vmem_to_hbm [thread:$0]  %s6307, 3072, %s6309, %s6293, 384, 384, 24
        $region44: #{tpu_custom_call.1} parent=35 // pred_fallthru
          _
      $region36: #{tpu_custom_call.1} parent=5 // pred_fallthru
        _
      %p6315 = scmp.le.s32.totalorder 2, %s14
      // Predicated region
      $region45: #{tpu_custom_call.1} parent=5 // pred_check
        %p6316 = pneg %p6315
      $region46: #{tpu_custom_call.1} parent=5 // pred_check_branch
        %6318 = sbr.rel (%p6316) target = $region48
      $region47: #{tpu_custom_call.1} parent=5 // pred_region
        %s6319 = ssub.s32 %s14, 2
        // Predicated region
        $region49: #{tpu_custom_call.1} parent=47 // pred_check
          %p6320 = pneg %p137
        $region50: #{tpu_custom_call.1} parent=47 // pred_check_branch
          %6322 = sbr.rel (%p6320) target = $region52
        $region51: #{tpu_custom_call.1} parent=47 // pred_region
          %s6323 = sand.u32 %s122, 1
          %s6324 = scalar_lea.sflag [#allocation4], %s6323
          %s6325 = sand.u32 %s122, 1
          %s6326 = smul.addr %s6325, 192
          %s6327 = scalar_lea.vmem [#allocation5], %s6326
          %6329 = dma.done %s6324, 3072
        $region52: #{tpu_custom_call.1} parent=47 // pred_fallthru
          _
      $region48: #{tpu_custom_call.1} parent=5 // pred_fallthru
        _
    $region6: #{tpu_custom_call.1} parent=1 // loop_footer
      %s18 = sadd.s32 1, %s14
    $region7: #{tpu_custom_call.1} parent=1 // loop_footer_branch
      %13 = sbr.rel target = $region3
    $region8: #{tpu_custom_call.1} parent=1 // loop_exit
      _
    %6330 = vsyncpa [#allocation3], 1
    %s6331 = scalar_lea.sflag [#allocation3], 1
    %6332 = vsyncpa %s6331, 1
    %6333 = vsyncpa [#allocation4], 1
    %s6334 = scalar_lea.sflag [#allocation4], 1
    %6335 = vsyncpa %s6334, 1

</llo_original>
